<compile_context>
chip_gen: v7x
topology: tpu7x:2x2x1
jax: 0.10.0
libtpu: 0.0.40
codegen_flags: <defaults>
</compile_context>

<pallas_src>
import math

import jax
import jax.numpy as jnp
import numpy as np
from jax.experimental import pallas as pl
from jax.experimental.pallas import tpu as pltpu

CHNS_ALEX = [64, 192, 384, 256, 256]          # net == 'alex'
SHIFT = (-0.030, -0.088, -0.188)              # ScalingLayer buffers
SCALE = (0.458, 0.448, 0.450)
EPS = 1e-10

_VMEM = pltpu.MemorySpace.VMEM


# ---------------------------------------------------------------- kernel ----

def _make_fused_kernel(chns, has_pool):
    """Fused kernel: folded scaling + per-level hierarchical pool / 1x1-conv /
    ReLU + normalize_tensor + FeatureScalingLayer + spatial_average.

    Ref layout (all whole-array VMEM blocks):
      refs[0]        x      (3, N*S)            raw image, channel-major
      per level kk   [Q_kk  (N*S_{k-1}, N*S_k)] block-diag 2x2 avg-pool matrix
                                                (only when has_pool[kk])
                     wT_kk  (Ck, 3)             stand-in conv weight, 1/scale folded in
                     b_kk   (Ck, 1)             folded ScalingLayer shift (bias)
                     g_kk   (Ck, 1)             FeatureScalingLayer weight
                     M_kk   (N*Sk, N)           block-diag spatial-mean matrix
      refs[-1]       out    (sum(chns), N)
    """
    n_lvl = len(chns)

    def kernel(*refs):
        x_ref = refs[0]
        out_ref = refs[-1]
        p = refs[1:-1]

        xp = x_ref[...]                                                   # (3, N*S)
        i = 0
        off = 0
        for kk in range(n_lvl):
            ck = chns[kk]
            if has_pool[kk]:
                # hierarchical 2x2 avg pool: chain off previous level's input
                xp = jnp.dot(xp, p[i][...],                               # (3, N*Sk)
                             preferred_element_type=jnp.float32)
                i += 1
            wT = p[i][...]                                                # (Ck, 3)
            b = p[i + 1][...]                                             # (Ck, 1)
            g = p[i + 2][...]                                             # (Ck, 1)
            mm = p[i + 3][...]                                            # (N*Sk, N)
            i += 4

            # stand-in backbone 1x1 conv (ScalingLayer folded in) + ReLU
            f = jnp.dot(wT, xp, preferred_element_type=jnp.float32) + b  # (Ck, N*Sk)
            f = jnp.maximum(f, 0.0)

            # normalize_tensor: f / (||f||_2 over channels + eps); recip on the EUP
            ss = jnp.sum(f * f, axis=0, keepdims=True)                    # (1, N*Sk)
            fn = f * pl.reciprocal(jnp.sqrt(ss) + EPS, approx=True)

            # spatial_average per batch element as one MXU matmul;
            # FeatureScalingLayer weight factored out of the mean.
            m = jnp.dot(fn, mm, preferred_element_type=jnp.float32)       # (Ck, N)
            out_ref[off:off + ck, :] = m * g
            off += ck

    return kernel


# --------------------------------------------------------- host-side setup --

def _pool_matrix(h, w, f):
    """(S, Sk) matrix realizing non-overlapping f x f average pooling of a
    row-major flattened (h, w) image."""
    hk, wk = h // f, w // f
    p = np.zeros((h * w, hk * wk), np.float32)
    inv = 1.0 / float(f * f)
    for i in range(h):
        for j in range(w):
            p[i * w + j, (i // f) * wk + (j // f)] = inv
    return p


class EmbeddingModelPallas:
    """JAX/Pallas port of EmbeddingModel(net='alex', use_dropout=True) in eval mode."""

    def __init__(self, key, net="alex"):
        assert net == "alex"
        self.chns = list(CHNS_ALEX)
        self.L = len(self.chns)
        self.out_features = sum(self.chns)

        keys = jax.random.split(key, 2 * self.L)
        # FeatureScalingLayer.weight: kaiming_uniform_(a=sqrt(5)) on (C,1,1)
        # -> fan_in = 1 -> Uniform(-1, 1).
        self.lin_w = [
            jax.random.uniform(keys[i], (c,), jnp.float32, -1.0, 1.0)
            for i, c in enumerate(self.chns)
        ]
        # Deterministic synthetic stand-in for the pretrained backbone.
        self.net_w = [
            jax.random.normal(keys[self.L + i], (3, c), jnp.float32) / math.sqrt(3.0)
            for i, c in enumerate(self.chns)
        ]

    def __call__(self, in0, normalize=False):
        n, c, h, w = in0.shape
        assert c == 3
        s = h * w

        # Fold the optional [-1,1] renormalization and the ScalingLayer into the
        # stand-in conv:  ((2x-1) - shift)/scale == (x - (1+shift)/2) / (scale/2).
        shift = jnp.asarray(SHIFT, jnp.float32)
        scale = jnp.asarray(SCALE, jnp.float32)
        if normalize:
            shift = (1.0 + shift) * 0.5
            scale = scale * 0.5
        inv_scale = 1.0 / scale

        # Channel-major image, batch folded onto lanes: (3, N*S).
        x2 = in0.astype(jnp.float32).transpose(1, 0, 2, 3).reshape(3, n * s)

        args = [x2]
        has_pool = []
        flops = 0
        trans = 0

        hk, wk = h, w                 # current (hierarchically pooled) resolution
        prev_factor = 1
        for kk in range(self.L):
            ck = self.chns[kk]
            factor = min(2 ** kk, h)                       # coarser per level
            assert factor % prev_factor == 0
            step = factor // prev_factor
            if step > 1:
                assert hk % step == 0 and wk % step == 0
                s_prev = hk * wk
                p_kk = _pool_matrix(hk, wk, step)                        # (S_{k-1}, S_k)
                q_kk = np.kron(np.eye(n, dtype=np.float32), p_kk)        # block-diag
                args.append(jnp.asarray(q_kk))
                hk //= step
                wk //= step
                flops += 2 * 3 * (n * s_prev) * (n * hk * wk)
            prev_factor = factor
            has_pool.append(step > 1)
            sk = hk * wk

            w_kk = self.net_w[kk]                                        # (3, Ck)
            w_fold = (w_kk * inv_scale[:, None]).T                       # (Ck, 3)
            b_fold = jnp.matmul(-(shift * inv_scale), w_kk)              # (Ck,)
            m_kk = np.kron(np.eye(n, dtype=np.float32),
                           np.full((sk, 1), 1.0 / sk, np.float32))       # (N*Sk, N)
            args.append(w_fold)
            args.append(b_fold.reshape(ck, 1))
            args.append(self.lin_w[kk].reshape(ck, 1))
            args.append(jnp.asarray(m_kk))

            flops += 2 * ck * 3 * (n * sk)          # conv
            flops += 2 * ck * (n * sk) * n          # spatial-mean matmul
            flops += 5 * ck * (n * sk)              # relu / square / sum / mul
            trans += 2 * n * sk                     # sqrt + reciprocal per column

        bytes_accessed = (sum(int(np.prod(a.shape)) for a in args)
                          + self.out_features * n) * 4

        kernel = _make_fused_kernel(self.chns, has_pool)
        out_t = pl.pallas_call(
            kernel,
            out_shape=jax.ShapeDtypeStruct((self.out_features, n), jnp.float32),
            in_specs=[pl.BlockSpec(memory_space=_VMEM)] * len(args),
            out_specs=pl.BlockSpec(memory_space=_VMEM),
            compiler_params=pltpu.CompilerParams(
                vmem_limit_bytes=32 * 1024 * 1024),
            cost_estimate=pl.CostEstimate(flops=flops,
                                          transcendentals=trans,
                                          bytes_accessed=bytes_accessed),
        )(*args)
        return out_t.T                                                   # (N, sum(chns))


if __name__ == "__main__":
    key = jax.random.PRNGKey(0)
    k_params, k_input = jax.random.split(key)

    model = EmbeddingModelPallas(k_params, net="alex")
    in0 = jax.random.uniform(k_input, (2, 3, 16, 16), jnp.float32)  # NCHW

    out = model(in0, normalize=True)
    out = jax.block_until_ready(out)

    assert out.shape == (2, sum(CHNS_ALEX)), out.shape
    assert out.dtype == jnp.float32
    assert bool(jnp.all(jnp.isfinite(out)))
    print("KERNEL_OK")
</pallas_src>

<mosaic_0001>
module attributes {stable_mosaic.version = 11 : i64} {
  func.func @kernel(%arg0: memref<3x512xf32, #tpu.memory_space<vmem>>, %arg1: memref<64x3xf32, #tpu.memory_space<vmem>>, %arg2: memref<64x1xf32, #tpu.memory_space<vmem>>, %arg3: memref<64x1xf32, #tpu.memory_space<vmem>>, %arg4: memref<512x2xf32, #tpu.memory_space<vmem>>, %arg5: memref<512x128xf32, #tpu.memory_space<vmem>>, %arg6: memref<192x3xf32, #tpu.memory_space<vmem>>, %arg7: memref<192x1xf32, #tpu.memory_space<vmem>>, %arg8: memref<192x1xf32, #tpu.memory_space<vmem>>, %arg9: memref<128x2xf32, #tpu.memory_space<vmem>>, %arg10: memref<128x32xf32, #tpu.memory_space<vmem>>, %arg11: memref<384x3xf32, #tpu.memory_space<vmem>>, %arg12: memref<384x1xf32, #tpu.memory_space<vmem>>, %arg13: memref<384x1xf32, #tpu.memory_space<vmem>>, %arg14: memref<32x2xf32, #tpu.memory_space<vmem>>, %arg15: memref<32x8xf32, #tpu.memory_space<vmem>>, %arg16: memref<256x3xf32, #tpu.memory_space<vmem>>, %arg17: memref<256x1xf32, #tpu.memory_space<vmem>>, %arg18: memref<256x1xf32, #tpu.memory_space<vmem>>, %arg19: memref<8x2xf32, #tpu.memory_space<vmem>>, %arg20: memref<8x2xf32, #tpu.memory_space<vmem>>, %arg21: memref<256x3xf32, #tpu.memory_space<vmem>>, %arg22: memref<256x1xf32, #tpu.memory_space<vmem>>, %arg23: memref<256x1xf32, #tpu.memory_space<vmem>>, %arg24: memref<2x2xf32, #tpu.memory_space<vmem>>, %arg25: memref<1152x2xf32, #tpu.memory_space<vmem>>) attributes {dimension_semantics = [], scalar_prefetch = 0 : i64, scratch_operands = 0 : i64, tpu.core_type = #tpu.core_type<tc>} {
    %c0 = arith.constant 0 : index
    %c0_0 = arith.constant 0 : index
    %0 = vector.load %arg0[%c0, %c0_0] : memref<3x512xf32, #tpu.memory_space<vmem>>, vector<3x512xf32>
    %c0_1 = arith.constant 0 : index
    %c0_2 = arith.constant 0 : index
    %1 = vector.load %arg1[%c0_1, %c0_2] : memref<64x3xf32, #tpu.memory_space<vmem>>, vector<64x3xf32>
    %c0_3 = arith.constant 0 : index
    %c0_4 = arith.constant 0 : index
    %2 = vector.load %arg2[%c0_3, %c0_4] : memref<64x1xf32, #tpu.memory_space<vmem>>, vector<64x1xf32>
    %c0_5 = arith.constant 0 : index
    %c0_6 = arith.constant 0 : index
    %3 = vector.load %arg3[%c0_5, %c0_6] : memref<64x1xf32, #tpu.memory_space<vmem>>, vector<64x1xf32>
    %c0_7 = arith.constant 0 : index
    %c0_8 = arith.constant 0 : index
    %4 = vector.load %arg4[%c0_7, %c0_8] : memref<512x2xf32, #tpu.memory_space<vmem>>, vector<512x2xf32>
    %cst = arith.constant dense<0.000000e+00> : vector<64x512xf32>
    %5 = tpu.matmul %1, %0, %cst {dimension_numbers = #tpu.dot_dimension_numbers<[1], [0], [0], [1], [0, 0, 1, 1], [], []>} : vector<64x3xf32>, vector<3x512xf32>, vector<64x512xf32> -> vector<64x512xf32>
    %6 = vector.broadcast %2 : vector<64x1xf32> to vector<64x512xf32>
    %7 = arith.addf %5, %6 : vector<64x512xf32>
    %cst_9 = arith.constant 0.000000e+00 : f32
    %8 = vector.broadcast %cst_9 : f32 to vector<64x512xf32>
    %9 = arith.maximumf %7, %8 : vector<64x512xf32>
    %10 = arith.mulf %9, %9 : vector<64x512xf32>
    %cst_10 = arith.constant dense<0.000000e+00> : vector<512xf32>
    %11 = vector.multi_reduction <add>, %10, %cst_10 [0] : vector<64x512xf32> to vector<512xf32>
    %12 = vector.shape_cast %11 : vector<512xf32> to vector<1x512xf32>
    %13 = math.sqrt %12 : vector<1x512xf32>
    %cst_11 = arith.constant 1.000000e-10 : f32
    %14 = vector.broadcast %cst_11 : f32 to vector<1x512xf32>
    %15 = arith.addf %13, %14 : vector<1x512xf32>
    %16 = tpu.reciprocal %15 {approx = true} : vector<1x512xf32> -> vector<1x512xf32>
    %17 = vector.broadcast %16 : vector<1x512xf32> to vector<64x512xf32>
    %18 = arith.mulf %9, %17 : vector<64x512xf32>
    %cst_12 = arith.constant dense<0.000000e+00> : vector<64x2xf32>
    %19 = tpu.matmul %18, %4, %cst_12 {dimension_numbers = #tpu.dot_dimension_numbers<[1], [0], [0], [1], [0, 0, 1, 1], [], []>} : vector<64x512xf32>, vector<512x2xf32>, vector<64x2xf32> -> vector<64x2xf32>
    %20 = vector.broadcast %3 : vector<64x1xf32> to vector<64x2xf32>
    %21 = arith.mulf %19, %20 : vector<64x2xf32>
    %c0_13 = arith.constant 0 : index
    %c0_14 = arith.constant 0 : index
    %22 = vector.load %arg25[%c0_13, %c0_14] : memref<1152x2xf32, #tpu.memory_space<vmem>>, vector<64x2xf32>
    tpu.vector_store %arg25[%c0_13, %c0_14], %21 {strides = array<i32>} : memref<1152x2xf32, #tpu.memory_space<vmem>>, vector<64x2xf32>,
    %c0_15 = arith.constant 0 : index
    %c0_16 = arith.constant 0 : index
    %23 = vector.load %arg5[%c0_15, %c0_16] : memref<512x128xf32, #tpu.memory_space<vmem>>, vector<512x128xf32>
    %cst_17 = arith.constant dense<0.000000e+00> : vector<3x128xf32>
    %24 = tpu.matmul %0, %23, %cst_17 {dimension_numbers = #tpu.dot_dimension_numbers<[1], [0], [0], [1], [0, 0, 1, 1], [], []>} : vector<3x512xf32>, vector<512x128xf32>, vector<3x128xf32> -> vector<3x128xf32>
    %c0_18 = arith.constant 0 : index
    %c0_19 = arith.constant 0 : index
    %25 = vector.load %arg6[%c0_18, %c0_19] : memref<192x3xf32, #tpu.memory_space<vmem>>, vector<192x3xf32>
    %c0_20 = arith.constant 0 : index
    %c0_21 = arith.constant 0 : index
    %26 = vector.load %arg7[%c0_20, %c0_21] : memref<192x1xf32, #tpu.memory_space<vmem>>, vector<192x1xf32>
    %c0_22 = arith.constant 0 : index
    %c0_23 = arith.constant 0 : index
    %27 = vector.load %arg8[%c0_22, %c0_23] : memref<192x1xf32, #tpu.memory_space<vmem>>, vector<192x1xf32>
    %c0_24 = arith.constant 0 : index
    %c0_25 = arith.constant 0 : index
    %28 = vector.load %arg9[%c0_24, %c0_25] : memref<128x2xf32, #tpu.memory_space<vmem>>, vector<128x2xf32>
    %cst_26 = arith.constant dense<0.000000e+00> : vector<192x128xf32>
    %29 = tpu.matmul %25, %24, %cst_26 {dimension_numbers = #tpu.dot_dimension_numbers<[1], [0], [0], [1], [0, 0, 1, 1], [], []>} : vector<192x3xf32>, vector<3x128xf32>, vector<192x128xf32> -> vector<192x128xf32>
    %30 = vector.broadcast %26 : vector<192x1xf32> to vector<192x128xf32>
    %31 = arith.addf %29, %30 : vector<192x128xf32>
    %cst_27 = arith.constant 0.000000e+00 : f32
    %32 = vector.broadcast %cst_27 : f32 to vector<192x128xf32>
    %33 = arith.maximumf %31, %32 : vector<192x128xf32>
    %34 = arith.mulf %33, %33 : vector<192x128xf32>
    %cst_28 = arith.constant dense<0.000000e+00> : vector<128xf32>
    %35 = vector.multi_reduction <add>, %34, %cst_28 [0] : vector<192x128xf32> to vector<128xf32>
    %36 = vector.shape_cast %35 : vector<128xf32> to vector<1x128xf32>
    %37 = math.sqrt %36 : vector<1x128xf32>
    %cst_29 = arith.constant 1.000000e-10 : f32
    %38 = vector.broadcast %cst_29 : f32 to vector<1x128xf32>
    %39 = arith.addf %37, %38 : vector<1x128xf32>
    %40 = tpu.reciprocal %39 {approx = true} : vector<1x128xf32> -> vector<1x128xf32>
    %41 = vector.broadcast %40 : vector<1x128xf32> to vector<192x128xf32>
    %42 = arith.mulf %33, %41 : vector<192x128xf32>
    %cst_30 = arith.constant dense<0.000000e+00> : vector<192x2xf32>
    %43 = tpu.matmul %42, %28, %cst_30 {dimension_numbers = #tpu.dot_dimension_numbers<[1], [0], [0], [1], [0, 0, 1, 1], [], []>} : vector<192x128xf32>, vector<128x2xf32>, vector<192x2xf32> -> vector<192x2xf32>
    %44 = vector.broadcast %27 : vector<192x1xf32> to vector<192x2xf32>
    %45 = arith.mulf %43, %44 : vector<192x2xf32>
    %c64 = arith.constant 64 : index
    %c0_31 = arith.constant 0 : index
    %46 = vector.load %arg25[%c64, %c0_31] : memref<1152x2xf32, #tpu.memory_space<vmem>>, vector<192x2xf32>
    tpu.vector_store %arg25[%c64, %c0_31], %45 {strides = array<i32>} : memref<1152x2xf32, #tpu.memory_space<vmem>>, vector<192x2xf32>,
    %c0_32 = arith.constant 0 : index
    %c0_33 = arith.constant 0 : index
    %47 = vector.load %arg10[%c0_32, %c0_33] : memref<128x32xf32, #tpu.memory_space<vmem>>, vector<128x32xf32>
    %cst_34 = arith.constant dense<0.000000e+00> : vector<3x32xf32>
    %48 = tpu.matmul %24, %47, %cst_34 {dimension_numbers = #tpu.dot_dimension_numbers<[1], [0], [0], [1], [0, 0, 1, 1], [], []>} : vector<3x128xf32>, vector<128x32xf32>, vector<3x32xf32> -> vector<3x32xf32>
    %c0_35 = arith.constant 0 : index
    %c0_36 = arith.constant 0 : index
    %49 = vector.load %arg11[%c0_35, %c0_36] : memref<384x3xf32, #tpu.memory_space<vmem>>, vector<384x3xf32>
    %c0_37 = arith.constant 0 : index
    %c0_38 = arith.constant 0 : index
    %50 = vector.load %arg12[%c0_37, %c0_38] : memref<384x1xf32, #tpu.memory_space<vmem>>, vector<384x1xf32>
    %c0_39 = arith.constant 0 : index
    %c0_40 = arith.constant 0 : index
    %51 = vector.load %arg13[%c0_39, %c0_40] : memref<384x1xf32, #tpu.memory_space<vmem>>, vector<384x1xf32>
    %c0_41 = arith.constant 0 : index
    %c0_42 = arith.constant 0 : index
    %52 = vector.load %arg14[%c0_41, %c0_42] : memref<32x2xf32, #tpu.memory_space<vmem>>, vector<32x2xf32>
    %cst_43 = arith.constant dense<0.000000e+00> : vector<384x32xf32>
    %53 = tpu.matmul %49, %48, %cst_43 {dimension_numbers = #tpu.dot_dimension_numbers<[1], [0], [0], [1], [0, 0, 1, 1], [], []>} : vector<384x3xf32>, vector<3x32xf32>, vector<384x32xf32> -> vector<384x32xf32>
    %54 = vector.broadcast %50 : vector<384x1xf32> to vector<384x32xf32>
    %55 = arith.addf %53, %54 : vector<384x32xf32>
    %cst_44 = arith.constant 0.000000e+00 : f32
    %56 = vector.broadcast %cst_44 : f32 to vector<384x32xf32>
    %57 = arith.maximumf %55, %56 : vector<384x32xf32>
    %58 = arith.mulf %57, %57 : vector<384x32xf32>
    %cst_45 = arith.constant dense<0.000000e+00> : vector<32xf32>
    %59 = vector.multi_reduction <add>, %58, %cst_45 [0] : vector<384x32xf32> to vector<32xf32>
    %60 = vector.shape_cast %59 : vector<32xf32> to vector<1x32xf32>
    %61 = math.sqrt %60 : vector<1x32xf32>
    %cst_46 = arith.constant 1.000000e-10 : f32
    %62 = vector.broadcast %cst_46 : f32 to vector<1x32xf32>
    %63 = arith.addf %61, %62 : vector<1x32xf32>
    %64 = tpu.reciprocal %63 {approx = true} : vector<1x32xf32> -> vector<1x32xf32>
    %65 = vector.broadcast %64 : vector<1x32xf32> to vector<384x32xf32>
    %66 = arith.mulf %57, %65 : vector<384x32xf32>
    %cst_47 = arith.constant dense<0.000000e+00> : vector<384x2xf32>
    %67 = tpu.matmul %66, %52, %cst_47 {dimension_numbers = #tpu.dot_dimension_numbers<[1], [0], [0], [1], [0, 0, 1, 1], [], []>} : vector<384x32xf32>, vector<32x2xf32>, vector<384x2xf32> -> vector<384x2xf32>
    %68 = vector.broadcast %51 : vector<384x1xf32> to vector<384x2xf32>
    %69 = arith.mulf %67, %68 : vector<384x2xf32>
    %c256 = arith.constant 256 : index
    %c0_48 = arith.constant 0 : index
    %70 = vector.load %arg25[%c256, %c0_48] : memref<1152x2xf32, #tpu.memory_space<vmem>>, vector<384x2xf32>
    tpu.vector_store %arg25[%c256, %c0_48], %69 {strides = array<i32>} : memref<1152x2xf32, #tpu.memory_space<vmem>>, vector<384x2xf32>,
    %c0_49 = arith.constant 0 : index
    %c0_50 = arith.constant 0 : index
    %71 = vector.load %arg15[%c0_49, %c0_50] : memref<32x8xf32, #tpu.memory_space<vmem>>, vector<32x8xf32>
    %cst_51 = arith.constant dense<0.000000e+00> : vector<3x8xf32>
    %72 = tpu.matmul %48, %71, %cst_51 {dimension_numbers = #tpu.dot_dimension_numbers<[1], [0], [0], [1], [0, 0, 1, 1], [], []>} : vector<3x32xf32>, vector<32x8xf32>, vector<3x8xf32> -> vector<3x8xf32>
    %c0_52 = arith.constant 0 : index
    %c0_53 = arith.constant 0 : index
    %73 = vector.load %arg16[%c0_52, %c0_53] : memref<256x3xf32, #tpu.memory_space<vmem>>, vector<256x3xf32>
    %c0_54 = arith.constant 0 : index
    %c0_55 = arith.constant 0 : index
    %74 = vector.load %arg17[%c0_54, %c0_55] : memref<256x1xf32, #tpu.memory_space<vmem>>, vector<256x1xf32>
    %c0_56 = arith.constant 0 : index
    %c0_57 = arith.constant 0 : index
    %75 = vector.load %arg18[%c0_56, %c0_57] : memref<256x1xf32, #tpu.memory_space<vmem>>, vector<256x1xf32>
    %c0_58 = arith.constant 0 : index
    %c0_59 = arith.constant 0 : index
    %76 = vector.load %arg19[%c0_58, %c0_59] : memref<8x2xf32, #tpu.memory_space<vmem>>, vector<8x2xf32>
    %cst_60 = arith.constant dense<0.000000e+00> : vector<256x8xf32>
    %77 = tpu.matmul %73, %72, %cst_60 {dimension_numbers = #tpu.dot_dimension_numbers<[1], [0], [0], [1], [0, 0, 1, 1], [], []>} : vector<256x3xf32>, vector<3x8xf32>, vector<256x8xf32> -> vector<256x8xf32>
    %78 = vector.broadcast %74 : vector<256x1xf32> to vector<256x8xf32>
    %79 = arith.addf %77, %78 : vector<256x8xf32>
    %cst_61 = arith.constant 0.000000e+00 : f32
    %80 = vector.broadcast %cst_61 : f32 to vector<256x8xf32>
    %81 = arith.maximumf %79, %80 : vector<256x8xf32>
    %82 = arith.mulf %81, %81 : vector<256x8xf32>
    %cst_62 = arith.constant dense<0.000000e+00> : vector<8xf32>
    %83 = vector.multi_reduction <add>, %82, %cst_62 [0] : vector<256x8xf32> to vector<8xf32>
    %84 = vector.shape_cast %83 : vector<8xf32> to vector<1x8xf32>
    %85 = math.sqrt %84 : vector<1x8xf32>
    %cst_63 = arith.constant 1.000000e-10 : f32
    %86 = vector.broadcast %cst_63 : f32 to vector<1x8xf32>
    %87 = arith.addf %85, %86 : vector<1x8xf32>
    %88 = tpu.reciprocal %87 {approx = true} : vector<1x8xf32> -> vector<1x8xf32>
    %89 = vector.broadcast %88 : vector<1x8xf32> to vector<256x8xf32>
    %90 = arith.mulf %81, %89 : vector<256x8xf32>
    %cst_64 = arith.constant dense<0.000000e+00> : vector<256x2xf32>
    %91 = tpu.matmul %90, %76, %cst_64 {dimension_numbers = #tpu.dot_dimension_numbers<[1], [0], [0], [1], [0, 0, 1, 1], [], []>} : vector<256x8xf32>, vector<8x2xf32>, vector<256x2xf32> -> vector<256x2xf32>
    %92 = vector.broadcast %75 : vector<256x1xf32> to vector<256x2xf32>
    %93 = arith.mulf %91, %92 : vector<256x2xf32>
    %c640 = arith.constant 640 : index
    %c0_65 = arith.constant 0 : index
    %94 = vector.load %arg25[%c640, %c0_65] : memref<1152x2xf32, #tpu.memory_space<vmem>>, vector<256x2xf32>
    tpu.vector_store %arg25[%c640, %c0_65], %93 {strides = array<i32>} : memref<1152x2xf32, #tpu.memory_space<vmem>>, vector<256x2xf32>,
    %c0_66 = arith.constant 0 : index
    %c0_67 = arith.constant 0 : index
    %95 = vector.load %arg20[%c0_66, %c0_67] : memref<8x2xf32, #tpu.memory_space<vmem>>, vector<8x2xf32>
    %cst_68 = arith.constant dense<0.000000e+00> : vector<3x2xf32>
    %96 = tpu.matmul %72, %95, %cst_68 {dimension_numbers = #tpu.dot_dimension_numbers<[1], [0], [0], [1], [0, 0, 1, 1], [], []>} : vector<3x8xf32>, vector<8x2xf32>, vector<3x2xf32> -> vector<3x2xf32>
    %c0_69 = arith.constant 0 : index
    %c0_70 = arith.constant 0 : index
    %97 = vector.load %arg21[%c0_69, %c0_70] : memref<256x3xf32, #tpu.memory_space<vmem>>, vector<256x3xf32>
    %c0_71 = arith.constant 0 : index
    %c0_72 = arith.constant 0 : index
    %98 = vector.load %arg22[%c0_71, %c0_72] : memref<256x1xf32, #tpu.memory_space<vmem>>, vector<256x1xf32>
    %c0_73 = arith.constant 0 : index
    %c0_74 = arith.constant 0 : index
    %99 = vector.load %arg23[%c0_73, %c0_74] : memref<256x1xf32, #tpu.memory_space<vmem>>, vector<256x1xf32>
    %c0_75 = arith.constant 0 : index
    %c0_76 = arith.constant 0 : index
    %100 = vector.load %arg24[%c0_75, %c0_76] : memref<2x2xf32, #tpu.memory_space<vmem>>, vector<2x2xf32>
    %cst_77 = arith.constant dense<0.000000e+00> : vector<256x2xf32>
    %101 = tpu.matmul %97, %96, %cst_77 {dimension_numbers = #tpu.dot_dimension_numbers<[1], [0], [0], [1], [0, 0, 1, 1], [], []>} : vector<256x3xf32>, vector<3x2xf32>, vector<256x2xf32> -> vector<256x2xf32>
    %102 = vector.broadcast %98 : vector<256x1xf32> to vector<256x2xf32>
    %103 = arith.addf %101, %102 : vector<256x2xf32>
    %cst_78 = arith.constant 0.000000e+00 : f32
    %104 = vector.broadcast %cst_78 : f32 to vector<256x2xf32>
    %105 = arith.maximumf %103, %104 : vector<256x2xf32>
    %106 = arith.mulf %105, %105 : vector<256x2xf32>
    %cst_79 = arith.constant dense<0.000000e+00> : vector<2xf32>
    %107 = vector.multi_reduction <add>, %106, %cst_79 [0] : vector<256x2xf32> to vector<2xf32>
    %108 = vector.shape_cast %107 : vector<2xf32> to vector<1x2xf32>
    %109 = math.sqrt %108 : vector<1x2xf32>
    %cst_80 = arith.constant 1.000000e-10 : f32
    %110 = vector.broadcast %cst_80 : f32 to vector<1x2xf32>
    %111 = arith.addf %109, %110 : vector<1x2xf32>
    %112 = tpu.reciprocal %111 {approx = true} : vector<1x2xf32> -> vector<1x2xf32>
    %113 = vector.broadcast %112 : vector<1x2xf32> to vector<256x2xf32>
    %114 = arith.mulf %105, %113 : vector<256x2xf32>
    %cst_81 = arith.constant dense<0.000000e+00> : vector<256x2xf32>
    %115 = tpu.matmul %114, %100, %cst_81 {dimension_numbers = #tpu.dot_dimension_numbers<[1], [0], [0], [1], [0, 0, 1, 1], [], []>} : vector<256x2xf32>, vector<2x2xf32>, vector<256x2xf32> -> vector<256x2xf32>
    %116 = vector.broadcast %99 : vector<256x1xf32> to vector<256x2xf32>
    %117 = arith.mulf %115, %116 : vector<256x2xf32>
    %c896 = arith.constant 896 : index
    %c0_82 = arith.constant 0 : index
    %118 = vector.load %arg25[%c896, %c0_82] : memref<1152x2xf32, #tpu.memory_space<vmem>>, vector<256x2xf32>
    tpu.vector_store %arg25[%c896, %c0_82], %117 {strides = array<i32>} : memref<1152x2xf32, #tpu.memory_space<vmem>>, vector<256x2xf32>,
    return
  }
}

</mosaic_0001>

<llo_original>
// kernel: tpu_custom_call.1
$region0: #{tpu_custom_call.1}
  #allocation0 [shape = 'u32[]', space=smem, size = 0x4, offset = 0x4, fixed_abs, tag = 'smem constant byte address 0x4 - core index']
  #allocation1 [shape = 'u32[144,128]{1,0:T(1,128)}', space=vmem, size = 0x12000, scoped, tag = 'internal scratch']
  %s0 = inlined_call_operand.vmem [shape: f32[3,512], index: 0, kind: input, shape index: {}]
  %s1 = inlined_call_operand.vmem [shape: f32[64,3], index: 1, kind: input, shape index: {}]
  %s2 = inlined_call_operand.vmem [shape: f32[64,1], index: 2, kind: input, shape index: {}]
  %s3 = inlined_call_operand.vmem [shape: f32[64,1], index: 3, kind: input, shape index: {}]
  %s4 = inlined_call_operand.vmem [shape: f32[512,2], index: 4, kind: input, shape index: {}]
  %s5 = inlined_call_operand.vmem [shape: f32[512,128], index: 5, kind: input, shape index: {}]
  %s6 = inlined_call_operand.vmem [shape: f32[192,3], index: 6, kind: input, shape index: {}]
  %s7 = inlined_call_operand.vmem [shape: f32[192,1], index: 7, kind: input, shape index: {}]
  %s8 = inlined_call_operand.vmem [shape: f32[192,1], index: 8, kind: input, shape index: {}]
  %s9 = inlined_call_operand.vmem [shape: f32[128,2], index: 9, kind: input, shape index: {}]
  %s10 = inlined_call_operand.vmem [shape: f32[128,32], index: 10, kind: input, shape index: {}]
  %s11 = inlined_call_operand.vmem [shape: f32[384,3], index: 11, kind: input, shape index: {}]
  %s12 = inlined_call_operand.vmem [shape: f32[384,1], index: 12, kind: input, shape index: {}]
  %s13 = inlined_call_operand.vmem [shape: f32[384,1], index: 13, kind: input, shape index: {}]
  %s14 = inlined_call_operand.vmem [shape: f32[32,2], index: 14, kind: input, shape index: {}]
  %s15 = inlined_call_operand.vmem [shape: f32[32,8], index: 15, kind: input, shape index: {}]
  %s16 = inlined_call_operand.vmem [shape: f32[256,3], index: 16, kind: input, shape index: {}]
  %s17 = inlined_call_operand.vmem [shape: f32[256,1], index: 17, kind: input, shape index: {}]
  %s18 = inlined_call_operand.vmem [shape: f32[256,1], index: 18, kind: input, shape index: {}]
  %s19 = inlined_call_operand.vmem [shape: f32[8,2], index: 19, kind: input, shape index: {}]
  %s20 = inlined_call_operand.vmem [shape: f32[8,2], index: 20, kind: input, shape index: {}]
  %s21 = inlined_call_operand.vmem [shape: f32[256,3], index: 21, kind: input, shape index: {}]
  %s22 = inlined_call_operand.vmem [shape: f32[256,1], index: 22, kind: input, shape index: {}]
  %s23 = inlined_call_operand.vmem [shape: f32[256,1], index: 23, kind: input, shape index: {}]
  %s24 = inlined_call_operand.vmem [shape: f32[2,2], index: 24, kind: input, shape index: {}]
  %s25 = inlined_call_operand.vmem [shape: f32[1152,2], index: 25, kind: output, shape index: {}]
  %s26 = sld [smem:[#allocation0]]
  $region110: #{tpu_custom_call.1} parent=0
    _
  %s28 = ssub.s32 1, %s26
  %s29 = scalar_select 0, %s28, %s26
  // Predicated region
  $region2: #{tpu_custom_call.1} parent=0 // pred_check
    _
  $region3: #{tpu_custom_call.1} parent=0 // pred_check_branch
    %31 = sbr.rel (0) target = $region5
  $region4: #{tpu_custom_call.1} parent=0 // pred_region
    _
  $region5: #{tpu_custom_call.1} parent=0 // pred_fallthru
    _
  // Predicated region
  $region6: #{tpu_custom_call.1} parent=0 // pred_check
    _
  $region7: #{tpu_custom_call.1} parent=0 // pred_check_branch
    %33 = sbr.rel (0) target = $region9
  $region8: #{tpu_custom_call.1} parent=0 // pred_region
    _
  $region9: #{tpu_custom_call.1} parent=0 // pred_fallthru
    _
  // Predicated region
  $region10: #{tpu_custom_call.1} parent=0 // pred_check
    _
  $region11: #{tpu_custom_call.1} parent=0 // pred_check_branch
    %35 = sbr.rel (0) target = $region13
  $region12: #{tpu_custom_call.1} parent=0 // pred_region
    _
  $region13: #{tpu_custom_call.1} parent=0 // pred_fallthru
    _
  // Predicated region
  $region14: #{tpu_custom_call.1} parent=0 // pred_check
    _
  $region15: #{tpu_custom_call.1} parent=0 // pred_check_branch
    %37 = sbr.rel (0) target = $region17
  $region16: #{tpu_custom_call.1} parent=0 // pred_region
    _
  $region17: #{tpu_custom_call.1} parent=0 // pred_fallthru
    _
  // Predicated region
  $region18: #{tpu_custom_call.1} parent=0 // pred_check
    _
  $region19: #{tpu_custom_call.1} parent=0 // pred_check_branch
    %39 = sbr.rel (0) target = $region21
  $region20: #{tpu_custom_call.1} parent=0 // pred_region
    _
  $region21: #{tpu_custom_call.1} parent=0 // pred_fallthru
    _
  // Predicated region
  $region22: #{tpu_custom_call.1} parent=0 // pred_check
    _
  $region23: #{tpu_custom_call.1} parent=0 // pred_check_branch
    %41 = sbr.rel (0) target = $region25
  $region24: #{tpu_custom_call.1} parent=0 // pred_region
    _
  $region25: #{tpu_custom_call.1} parent=0 // pred_fallthru
    _
  // Predicated region
  $region26: #{tpu_custom_call.1} parent=0 // pred_check
    _
  $region27: #{tpu_custom_call.1} parent=0 // pred_check_branch
    %43 = sbr.rel (0) target = $region29
  $region28: #{tpu_custom_call.1} parent=0 // pred_region
    _
  $region29: #{tpu_custom_call.1} parent=0 // pred_fallthru
    _
  // Predicated region
  $region30: #{tpu_custom_call.1} parent=0 // pred_check
    _
  $region31: #{tpu_custom_call.1} parent=0 // pred_check_branch
    %45 = sbr.rel (0) target = $region33
  $region32: #{tpu_custom_call.1} parent=0 // pred_region
    _
  $region33: #{tpu_custom_call.1} parent=0 // pred_fallthru
    _
  // Predicated region
  $region34: #{tpu_custom_call.1} parent=0 // pred_check
    _
  $region35: #{tpu_custom_call.1} parent=0 // pred_check_branch
    %47 = sbr.rel (0) target = $region37
  $region36: #{tpu_custom_call.1} parent=0 // pred_region
    _
  $region37: #{tpu_custom_call.1} parent=0 // pred_fallthru
    _
  // Predicated region
  $region38: #{tpu_custom_call.1} parent=0 // pred_check
    _
  $region39: #{tpu_custom_call.1} parent=0 // pred_check_branch
    %49 = sbr.rel (0) target = $region41
  $region40: #{tpu_custom_call.1} parent=0 // pred_region
    _
  $region41: #{tpu_custom_call.1} parent=0 // pred_fallthru
    _
  // Predicated region
  $region42: #{tpu_custom_call.1} parent=0 // pred_check
    _
  $region43: #{tpu_custom_call.1} parent=0 // pred_check_branch
    %51 = sbr.rel (0) target = $region45
  $region44: #{tpu_custom_call.1} parent=0 // pred_region
    _
  $region45: #{tpu_custom_call.1} parent=0 // pred_fallthru
    _
  // Predicated region
  $region46: #{tpu_custom_call.1} parent=0 // pred_check
    _
  $region47: #{tpu_custom_call.1} parent=0 // pred_check_branch
    %53 = sbr.rel (0) target = $region49
  $region48: #{tpu_custom_call.1} parent=0 // pred_region
    _
  $region49: #{tpu_custom_call.1} parent=0 // pred_fallthru
    _
  // Predicated region
  $region50: #{tpu_custom_call.1} parent=0 // pred_check
    _
  $region51: #{tpu_custom_call.1} parent=0 // pred_check_branch
    %55 = sbr.rel (0) target = $region53
  $region52: #{tpu_custom_call.1} parent=0 // pred_region
    _
  $region53: #{tpu_custom_call.1} parent=0 // pred_fallthru
    _
  // Predicated region
  $region54: #{tpu_custom_call.1} parent=0 // pred_check
    _
  $region55: #{tpu_custom_call.1} parent=0 // pred_check_branch
    %57 = sbr.rel (0) target = $region57
  $region56: #{tpu_custom_call.1} parent=0 // pred_region
    _
  $region57: #{tpu_custom_call.1} parent=0 // pred_fallthru
    _
  // Predicated region
  $region58: #{tpu_custom_call.1} parent=0 // pred_check
    _
  $region59: #{tpu_custom_call.1} parent=0 // pred_check_branch
    %59 = sbr.rel (0) target = $region61
  $region60: #{tpu_custom_call.1} parent=0 // pred_region
    _
  $region61: #{tpu_custom_call.1} parent=0 // pred_fallthru
    _
  // Predicated region
  $region62: #{tpu_custom_call.1} parent=0 // pred_check
    _
  $region63: #{tpu_custom_call.1} parent=0 // pred_check_branch
    %61 = sbr.rel (0) target = $region65
  $region64: #{tpu_custom_call.1} parent=0 // pred_region
    _
  $region65: #{tpu_custom_call.1} parent=0 // pred_fallthru
    _
  // Predicated region
  $region66: #{tpu_custom_call.1} parent=0 // pred_check
    _
  $region67: #{tpu_custom_call.1} parent=0 // pred_check_branch
    %63 = sbr.rel (0) target = $region69
  $region68: #{tpu_custom_call.1} parent=0 // pred_region
    _
  $region69: #{tpu_custom_call.1} parent=0 // pred_fallthru
    _
  // Predicated region
  $region70: #{tpu_custom_call.1} parent=0 // pred_check
    _
  $region71: #{tpu_custom_call.1} parent=0 // pred_check_branch
    %65 = sbr.rel (0) target = $region73
  $region72: #{tpu_custom_call.1} parent=0 // pred_region
    _
  $region73: #{tpu_custom_call.1} parent=0 // pred_fallthru
    _
  // Predicated region
  $region74: #{tpu_custom_call.1} parent=0 // pred_check
    _
  $region75: #{tpu_custom_call.1} parent=0 // pred_check_branch
    %67 = sbr.rel (0) target = $region77
  $region76: #{tpu_custom_call.1} parent=0 // pred_region
    _
  $region77: #{tpu_custom_call.1} parent=0 // pred_fallthru
    _
  // Predicated region
  $region78: #{tpu_custom_call.1} parent=0 // pred_check
    _
  $region79: #{tpu_custom_call.1} parent=0 // pred_check_branch
    %69 = sbr.rel (0) target = $region81
  $region80: #{tpu_custom_call.1} parent=0 // pred_region
    _
  $region81: #{tpu_custom_call.1} parent=0 // pred_fallthru
    _
  // Predicated region
  $region82: #{tpu_custom_call.1} parent=0 // pred_check
    _
  $region83: #{tpu_custom_call.1} parent=0 // pred_check_branch
    %71 = sbr.rel (0) target = $region85
  $region84: #{tpu_custom_call.1} parent=0 // pred_region
    _
  $region85: #{tpu_custom_call.1} parent=0 // pred_fallthru
    _
  // Predicated region
  $region86: #{tpu_custom_call.1} parent=0 // pred_check
    _
  $region87: #{tpu_custom_call.1} parent=0 // pred_check_branch
    %73 = sbr.rel (0) target = $region89
  $region88: #{tpu_custom_call.1} parent=0 // pred_region
    _
  $region89: #{tpu_custom_call.1} parent=0 // pred_fallthru
    _
  // Predicated region
  $region90: #{tpu_custom_call.1} parent=0 // pred_check
    _
  $region91: #{tpu_custom_call.1} parent=0 // pred_check_branch
    %75 = sbr.rel (0) target = $region93
  $region92: #{tpu_custom_call.1} parent=0 // pred_region
    _
  $region93: #{tpu_custom_call.1} parent=0 // pred_fallthru
    _
  // Predicated region
  $region94: #{tpu_custom_call.1} parent=0 // pred_check
    _
  $region95: #{tpu_custom_call.1} parent=0 // pred_check_branch
    %77 = sbr.rel (0) target = $region97
  $region96: #{tpu_custom_call.1} parent=0 // pred_region
    _
  $region97: #{tpu_custom_call.1} parent=0 // pred_fallthru
    _
  // Predicated region
  $region98: #{tpu_custom_call.1} parent=0 // pred_check
    _
  $region99: #{tpu_custom_call.1} parent=0 // pred_check_branch
    %79 = sbr.rel (0) target = $region101
  $region100: #{tpu_custom_call.1} parent=0 // pred_region
    _
  $region101: #{tpu_custom_call.1} parent=0 // pred_fallthru
    _
  %v80 = vld [vmem:[%s0] sm:$0x77]
  %v81 = vld [vmem:[%s0 + $0x8] sm:$0x77]
  %v82 = vld [vmem:[%s1] sm:$0xff]
  %v83 = vld [vmem:[%s1 + $0x8] sm:$0xff]
  %v84 = vld [vmem:[%s1 + $0x10] sm:$0xff]
  %v85 = vld [vmem:[%s1 + $0x18] sm:$0xff]
  %v86 = vld [vmem:[%s1 + $0x20] sm:$0xff]
  %v87 = vld [vmem:[%s1 + $0x28] sm:$0xff]
  %v88 = vld [vmem:[%s1 + $0x30] sm:$0xff]
  %v89 = vld [vmem:[%s1 + $0x38] sm:$0xff]
  %v90 = vld [vmem:[%s2] sm:$0xff]
  %v91 = vld [vmem:[%s2 + $0x8] sm:$0xff]
  %v92 = vld [vmem:[%s2 + $0x10] sm:$0xff]
  %v93 = vld [vmem:[%s2 + $0x18] sm:$0xff]
  %v94 = vld [vmem:[%s2 + $0x20] sm:$0xff]
  %v95 = vld [vmem:[%s2 + $0x28] sm:$0xff]
  %v96 = vld [vmem:[%s2 + $0x30] sm:$0xff]
  %v97 = vld [vmem:[%s2 + $0x38] sm:$0xff]
  %v98 = vld [vmem:[%s3] sm:$0xff]
  %v99 = vld [vmem:[%s3 + $0x8] sm:$0xff]
  %v100 = vld [vmem:[%s3 + $0x10] sm:$0xff]
  %v101 = vld [vmem:[%s3 + $0x18] sm:$0xff]
  %v102 = vld [vmem:[%s3 + $0x20] sm:$0xff]
  %v103 = vld [vmem:[%s3 + $0x28] sm:$0xff]
  %v104 = vld [vmem:[%s3 + $0x30] sm:$0xff]
  %v105 = vld [vmem:[%s3 + $0x38] sm:$0xff]
  %v106 = vld [vmem:[%s4] sm:$0xff]
  %v107 = vld [vmem:[%s4 + $0x8] sm:$0xff]
  %v108 = vld [vmem:[%s4 + $0x10] sm:$0xff]
  %v109 = vld [vmem:[%s4 + $0x18] sm:$0xff]
  %v110 = vld [vmem:[%s4 + $0x20] sm:$0xff]
  %v111 = vld [vmem:[%s4 + $0x28] sm:$0xff]
  %v112 = vld [vmem:[%s4 + $0x30] sm:$0xff]
  %v113 = vld [vmem:[%s4 + $0x38] sm:$0xff]
  %v114 = vld [vmem:[%s4 + $0x40] sm:$0xff]
  %v115 = vld [vmem:[%s4 + $0x48] sm:$0xff]
  %v116 = vld [vmem:[%s4 + $0x50] sm:$0xff]
  %v117 = vld [vmem:[%s4 + $0x58] sm:$0xff]
  %v118 = vld [vmem:[%s4 + $0x60] sm:$0xff]
  %v119 = vld [vmem:[%s4 + $0x68] sm:$0xff]
  %v120 = vld [vmem:[%s4 + $0x70] sm:$0xff]
  %v121 = vld [vmem:[%s4 + $0x78] sm:$0xff]
  %v122 = vld [vmem:[%s4 + $0x80] sm:$0xff]
  %v123 = vld [vmem:[%s4 + $0x88] sm:$0xff]
  %v124 = vld [vmem:[%s4 + $0x90] sm:$0xff]
  %v125 = vld [vmem:[%s4 + $0x98] sm:$0xff]
  %v126 = vld [vmem:[%s4 + $0xa0] sm:$0xff]
  %v127 = vld [vmem:[%s4 + $0xa8] sm:$0xff]
  %v128 = vld [vmem:[%s4 + $0xb0] sm:$0xff]
  %v129 = vld [vmem:[%s4 + $0xb8] sm:$0xff]
  %v130 = vld [vmem:[%s4 + $0xc0] sm:$0xff]
  %v131 = vld [vmem:[%s4 + $0xc8] sm:$0xff]
  %v132 = vld [vmem:[%s4 + $0xd0] sm:$0xff]
  %v133 = vld [vmem:[%s4 + $0xd8] sm:$0xff]
  %v134 = vld [vmem:[%s4 + $0xe0] sm:$0xff]
  %v135 = vld [vmem:[%s4 + $0xe8] sm:$0xff]
  %v136 = vld [vmem:[%s4 + $0xf0] sm:$0xff]
  %v137 = vld [vmem:[%s4 + $0xf8] sm:$0xff]
  %v138 = vld [vmem:[%s4 + $0x100] sm:$0xff]
  %v139 = vld [vmem:[%s4 + $0x108] sm:$0xff]
  %v140 = vld [vmem:[%s4 + $0x110] sm:$0xff]
  %v141 = vld [vmem:[%s4 + $0x118] sm:$0xff]
  %v142 = vld [vmem:[%s4 + $0x120] sm:$0xff]
  %v143 = vld [vmem:[%s4 + $0x128] sm:$0xff]
  %v144 = vld [vmem:[%s4 + $0x130] sm:$0xff]
  %v145 = vld [vmem:[%s4 + $0x138] sm:$0xff]
  %v146 = vld [vmem:[%s4 + $0x140] sm:$0xff]
  %v147 = vld [vmem:[%s4 + $0x148] sm:$0xff]
  %v148 = vld [vmem:[%s4 + $0x150] sm:$0xff]
  %v149 = vld [vmem:[%s4 + $0x158] sm:$0xff]
  %v150 = vld [vmem:[%s4 + $0x160] sm:$0xff]
  %v151 = vld [vmem:[%s4 + $0x168] sm:$0xff]
  %v152 = vld [vmem:[%s4 + $0x170] sm:$0xff]
  %v153 = vld [vmem:[%s4 + $0x178] sm:$0xff]
  %v154 = vld [vmem:[%s4 + $0x180] sm:$0xff]
  %v155 = vld [vmem:[%s4 + $0x188] sm:$0xff]
  %v156 = vld [vmem:[%s4 + $0x190] sm:$0xff]
  %v157 = vld [vmem:[%s4 + $0x198] sm:$0xff]
  %v158 = vld [vmem:[%s4 + $0x1a0] sm:$0xff]
  %v159 = vld [vmem:[%s4 + $0x1a8] sm:$0xff]
  %v160 = vld [vmem:[%s4 + $0x1b0] sm:$0xff]
  %v161 = vld [vmem:[%s4 + $0x1b8] sm:$0xff]
  %v162 = vld [vmem:[%s4 + $0x1c0] sm:$0xff]
  %v163 = vld [vmem:[%s4 + $0x1c8] sm:$0xff]
  %v164 = vld [vmem:[%s4 + $0x1d0] sm:$0xff]
  %v165 = vld [vmem:[%s4 + $0x1d8] sm:$0xff]
  %v166 = vld [vmem:[%s4 + $0x1e0] sm:$0xff]
  %v167 = vld [vmem:[%s4 + $0x1e8] sm:$0xff]
  %v168 = vld [vmem:[%s4 + $0x1f0] sm:$0xff]
  %v169 = vld [vmem:[%s4 + $0x1f8] sm:$0xff]
  %171 = vset.pattern.permute.xlu0 0
  %172 = vperm.xlu0 %171, %v90
  %v173 = vpop.permute.xlu0 %172
  %176 = vset.pattern.permute.xlu0 0
  %177 = vperm.xlu0 %176, %v91
  %v178 = vpop.permute.xlu0 %177
  %181 = vset.pattern.permute.xlu0 0
  %182 = vperm.xlu0 %181, %v92
  %v183 = vpop.permute.xlu0 %182
  %186 = vset.pattern.permute.xlu0 0
  %187 = vperm.xlu0 %186, %v93
  %v188 = vpop.permute.xlu0 %187
  %191 = vset.pattern.permute.xlu0 0
  %192 = vperm.xlu0 %191, %v94
  %v193 = vpop.permute.xlu0 %192
  %196 = vset.pattern.permute.xlu0 0
  %197 = vperm.xlu0 %196, %v95
  %v198 = vpop.permute.xlu0 %197
  %201 = vset.pattern.permute.xlu0 0
  %202 = vperm.xlu0 %201, %v96
  %v203 = vpop.permute.xlu0 %202
  %206 = vset.pattern.permute.xlu0 0
  %207 = vperm.xlu0 %206, %v97
  %v208 = vpop.permute.xlu0 %207
  %v212 = vcombine.high %v80, %v80
  %v213 = vcombine.high %v81, %v81
  %vm214 = vcmask 23552
  %v216 = vsel %vm214, %v82, 0
  %v219 = vsel %vm214, %v83, 0
  %v222 = vsel %vm214, %v84, 0
  %v225 = vsel %vm214, %v85, 0
  %v228 = vsel %vm214, %v86, 0
  %v231 = vsel %vm214, %v87, 0
  %v234 = vsel %vm214, %v88, 0
  %v237 = vsel %vm214, %v89, 0
  %vm239 = vcmask 1042432
  %v240 = vsel %vm239, %v80, 0
  %v242 = vsel %vm239, %v212, 0
  %v244 = vsel %vm239, %v81, 0
  %v246 = vsel %vm239, %v213, 0
  %248 = vmatprep.subr.mxu0 %v242
  %249 = vmatpush1.msra.mxu0 %v240
  %250 = vmatprep.subr.mxu0 0.0
  %251 = vmatpush1.msra.mxu0 0.0
  %252 = vmatprep.subr.mxu0 0.0
  %253 = vmatpush1.msra.mxu0 0.0
  %254 = vmatprep.subr.mxu0 0.0
  %255 = vmatpush1.msra.mxu0 0.0
  %256 = vmatprep.subr.mxu0 0.0
  %257 = vmatpush1.msra.mxu0 0.0
  %258 = vmatprep.subr.mxu0 0.0
  %259 = vmatpush1.msra.mxu0 0.0
  %260 = vmatprep.subr.mxu0 0.0
  %261 = vmatpush1.msra.mxu0 0.0
  %262 = vmatprep.subr.mxu0 0.0
  %263 = vmatpush1.msra.mxu0 0.0
  %264 = vmatprep.subr.mxu0 0.0
  %265 = vmatpush1.msra.mxu0 0.0
  %266 = vmatprep.subr.mxu0 0.0
  %267 = vmatpush1.msra.mxu0 0.0
  %268 = vmatprep.subr.mxu0 0.0
  %269 = vmatpush1.msra.mxu0 0.0
  %270 = vmatprep.subr.mxu0 0.0
  %271 = vmatpush1.msra.mxu0 0.0
  %272 = vmatprep.subr.mxu0 0.0
  %273 = vmatpush1.msra.mxu0 0.0
  %274 = vmatprep.subr.mxu0 0.0
  %275 = vmatpush1.msra.mxu0 0.0
  %276 = vmatprep.subr.mxu0 0.0
  %277 = vmatpush1.msra.mxu0 0.0
  %278 = vmatprep.subr.mxu0 0.0
  %279 = vmatpush1.msra.mxu0 0.0
  %280 = vmatprep.subr.mxu0 0.0
  %281 = vmatpush1.msra.mxu0 0.0
  %282 = vmatprep.subr.mxu0 0.0
  %283 = vmatpush1.msra.mxu0 0.0
  %284 = vmatprep.subr.mxu0 0.0
  %285 = vmatpush1.msra.mxu0 0.0
  %286 = vmatprep.subr.mxu0 0.0
  %287 = vmatpush1.msra.mxu0 0.0
  %288 = vmatprep.subr.mxu0 0.0
  %289 = vmatpush1.msra.mxu0 0.0
  %290 = vmatprep.subr.mxu0 0.0
  %291 = vmatpush1.msra.mxu0 0.0
  %292 = vmatprep.subr.mxu0 0.0
  %293 = vmatpush1.msra.mxu0 0.0
  %294 = vmatprep.subr.mxu0 0.0
  %295 = vmatpush1.msra.mxu0 0.0
  %296 = vmatprep.subr.mxu0 0.0
  %297 = vmatpush1.msra.mxu0 0.0
  %298 = vmatprep.subr.mxu0 0.0
  %299 = vmatpush1.msra.mxu0 0.0
  %300 = vmatprep.subr.mxu0 0.0
  %301 = vmatpush1.msra.mxu0 0.0
  %302 = vmatprep.subr.mxu0 0.0
  %303 = vmatpush1.msra.mxu0 0.0
  %304 = vmatprep.subr.mxu0 0.0
  %305 = vmatpush1.msra.mxu0 0.0
  %306 = vmatprep.subr.mxu0 0.0
  %307 = vmatpush1.msra.mxu0 0.0
  %308 = vmatprep.subr.mxu0 0.0
  %309 = vmatpush1.msra.mxu0 0.0
  %310 = vmatprep.subr.mxu0 0.0
  %311 = vmatpush1.msra.mxu0 0.0
  %312 = vmatprep.mubr.f32.mxu0 0.0
  %313 = vmatmul.mubr.f32.gmra.mrb[0].mxu0 %v216
  %v314 = vpop.f32.mrb[0].mxu0
  %v315 = vadd.f32 %v173, %v314
  %v316 = vpop.f32.mrb[0].mxu0
  %v317 = vadd.f32 %v173, %v316
  %318 = vmatprep.mubr.f32.mxu0 0.0
  %319 = vmatmul.mubr.f32.gmra.mrb[0].mxu0 %v219
  %v320 = vpop.f32.mrb[0].mxu0
  %v321 = vadd.f32 %v178, %v320
  %v322 = vpop.f32.mrb[0].mxu0
  %v323 = vadd.f32 %v178, %v322
  %324 = vmatprep.mubr.f32.mxu0 0.0
  %325 = vmatmul.mubr.f32.gmra.mrb[0].mxu0 %v222
  %v326 = vpop.f32.mrb[0].mxu0
  %v327 = vadd.f32 %v183, %v326
  %v328 = vpop.f32.mrb[0].mxu0
  %v329 = vadd.f32 %v183, %v328
  %330 = vmatprep.mubr.f32.mxu0 0.0
  %331 = vmatmul.mubr.f32.gmra.mrb[0].mxu0 %v225
  %v332 = vpop.f32.mrb[0].mxu0
  %v333 = vadd.f32 %v188, %v332
  %v334 = vpop.f32.mrb[0].mxu0
  %v335 = vadd.f32 %v188, %v334
  %336 = vmatprep.mubr.f32.mxu0 0.0
  %337 = vmatmul.mubr.f32.gmra.mrb[0].mxu0 %v228
  %v338 = vpop.f32.mrb[0].mxu0
  %v339 = vadd.f32 %v193, %v338
  %v340 = vpop.f32.mrb[0].mxu0
  %v341 = vadd.f32 %v193, %v340
  %342 = vmatprep.mubr.f32.mxu0 0.0
  %343 = vmatmul.mubr.f32.gmra.mrb[0].mxu0 %v231
  %v344 = vpop.f32.mrb[0].mxu0
  %v345 = vadd.f32 %v198, %v344
  %v346 = vpop.f32.mrb[0].mxu0
  %v347 = vadd.f32 %v198, %v346
  %348 = vmatprep.mubr.f32.mxu0 0.0
  %349 = vmatmul.mubr.f32.gmra.mrb[0].mxu0 %v234
  %v350 = vpop.f32.mrb[0].mxu0
  %v351 = vadd.f32 %v203, %v350
  %v352 = vpop.f32.mrb[0].mxu0
  %v353 = vadd.f32 %v203, %v352
  %354 = vmatprep.mubr.f32.mxu0 0.0
  %355 = vmatmul.mubr.f32.gmra.mrb[0].mxu0 %v237
  %v356 = vpop.f32.mrb[0].mxu0
  %v357 = vadd.f32 %v208, %v356
  %v358 = vpop.f32.mrb[0].mxu0
  %v359 = vadd.f32 %v208, %v358
  %360 = vdwg.mxu0
  %361 = vmatprep.subr.mxu0 %v246
  %362 = vmatpush1.msra.mxu0 %v244
  %363 = vmatprep.subr.mxu0 0.0
  %364 = vmatpush1.msra.mxu0 0.0
  %365 = vmatprep.subr.mxu0 0.0
  %366 = vmatpush1.msra.mxu0 0.0
  %367 = vmatprep.subr.mxu0 0.0
  %368 = vmatpush1.msra.mxu0 0.0
  %369 = vmatprep.subr.mxu0 0.0
  %370 = vmatpush1.msra.mxu0 0.0
  %371 = vmatprep.subr.mxu0 0.0
  %372 = vmatpush1.msra.mxu0 0.0
  %373 = vmatprep.subr.mxu0 0.0
  %374 = vmatpush1.msra.mxu0 0.0
  %375 = vmatprep.subr.mxu0 0.0
  %376 = vmatpush1.msra.mxu0 0.0
  %377 = vmatprep.subr.mxu0 0.0
  %378 = vmatpush1.msra.mxu0 0.0
  %379 = vmatprep.subr.mxu0 0.0
  %380 = vmatpush1.msra.mxu0 0.0
  %381 = vmatprep.subr.mxu0 0.0
  %382 = vmatpush1.msra.mxu0 0.0
  %383 = vmatprep.subr.mxu0 0.0
  %384 = vmatpush1.msra.mxu0 0.0
  %385 = vmatprep.subr.mxu0 0.0
  %386 = vmatpush1.msra.mxu0 0.0
  %387 = vmatprep.subr.mxu0 0.0
  %388 = vmatpush1.msra.mxu0 0.0
  %389 = vmatprep.subr.mxu0 0.0
  %390 = vmatpush1.msra.mxu0 0.0
  %391 = vmatprep.subr.mxu0 0.0
  %392 = vmatpush1.msra.mxu0 0.0
  %393 = vmatprep.subr.mxu0 0.0
  %394 = vmatpush1.msra.mxu0 0.0
  %395 = vmatprep.subr.mxu0 0.0
  %396 = vmatpush1.msra.mxu0 0.0
  %397 = vmatprep.subr.mxu0 0.0
  %398 = vmatpush1.msra.mxu0 0.0
  %399 = vmatprep.subr.mxu0 0.0
  %400 = vmatpush1.msra.mxu0 0.0
  %401 = vmatprep.subr.mxu0 0.0
  %402 = vmatpush1.msra.mxu0 0.0
  %403 = vmatprep.subr.mxu0 0.0
  %404 = vmatpush1.msra.mxu0 0.0
  %405 = vmatprep.subr.mxu0 0.0
  %406 = vmatpush1.msra.mxu0 0.0
  %407 = vmatprep.subr.mxu0 0.0
  %408 = vmatpush1.msra.mxu0 0.0
  %409 = vmatprep.subr.mxu0 0.0
  %410 = vmatpush1.msra.mxu0 0.0
  %411 = vmatprep.subr.mxu0 0.0
  %412 = vmatpush1.msra.mxu0 0.0
  %413 = vmatprep.subr.mxu0 0.0
  %414 = vmatpush1.msra.mxu0 0.0
  %415 = vmatprep.subr.mxu0 0.0
  %416 = vmatpush1.msra.mxu0 0.0
  %417 = vmatprep.subr.mxu0 0.0
  %418 = vmatpush1.msra.mxu0 0.0
  %419 = vmatprep.subr.mxu0 0.0
  %420 = vmatpush1.msra.mxu0 0.0
  %421 = vmatprep.subr.mxu0 0.0
  %422 = vmatpush1.msra.mxu0 0.0
  %423 = vmatprep.subr.mxu0 0.0
  %424 = vmatpush1.msra.mxu0 0.0
  %425 = vmatprep.mubr.f32.mxu0 0.0
  %426 = vmatmul.mubr.f32.gmra.mrb[0].mxu0 %v216
  %v427 = vpop.f32.mrb[0].mxu0
  %v428 = vadd.f32 %v173, %v427
  %v429 = vpop.f32.mrb[0].mxu0
  %v430 = vadd.f32 %v173, %v429
  %431 = vmatprep.mubr.f32.mxu0 0.0
  %432 = vmatmul.mubr.f32.gmra.mrb[0].mxu0 %v219
  %v433 = vpop.f32.mrb[0].mxu0
  %v434 = vadd.f32 %v178, %v433
  %v435 = vpop.f32.mrb[0].mxu0
  %v436 = vadd.f32 %v178, %v435
  %437 = vmatprep.mubr.f32.mxu0 0.0
  %438 = vmatmul.mubr.f32.gmra.mrb[0].mxu0 %v222
  %v439 = vpop.f32.mrb[0].mxu0
  %v440 = vadd.f32 %v183, %v439
  %v441 = vpop.f32.mrb[0].mxu0
  %v442 = vadd.f32 %v183, %v441
  %443 = vmatprep.mubr.f32.mxu0 0.0
  %444 = vmatmul.mubr.f32.gmra.mrb[0].mxu0 %v225
  %v445 = vpop.f32.mrb[0].mxu0
  %v446 = vadd.f32 %v188, %v445
  %v447 = vpop.f32.mrb[0].mxu0
  %v448 = vadd.f32 %v188, %v447
  %449 = vmatprep.mubr.f32.mxu0 0.0
  %450 = vmatmul.mubr.f32.gmra.mrb[0].mxu0 %v228
  %v451 = vpop.f32.mrb[0].mxu0
  %v452 = vadd.f32 %v193, %v451
  %v453 = vpop.f32.mrb[0].mxu0
  %v454 = vadd.f32 %v193, %v453
  %455 = vmatprep.mubr.f32.mxu0 0.0
  %456 = vmatmul.mubr.f32.gmra.mrb[0].mxu0 %v231
  %v457 = vpop.f32.mrb[0].mxu0
  %v458 = vadd.f32 %v198, %v457
  %v459 = vpop.f32.mrb[0].mxu0
  %v460 = vadd.f32 %v198, %v459
  %461 = vmatprep.mubr.f32.mxu0 0.0
  %462 = vmatmul.mubr.f32.gmra.mrb[0].mxu0 %v234
  %v463 = vpop.f32.mrb[0].mxu0
  %v464 = vadd.f32 %v203, %v463
  %v465 = vpop.f32.mrb[0].mxu0
  %v466 = vadd.f32 %v203, %v465
  %467 = vmatprep.mubr.f32.mxu0 0.0
  %468 = vmatmul.mubr.f32.gmra.mrb[0].mxu0 %v237
  %v469 = vpop.f32.mrb[0].mxu0
  %v470 = vadd.f32 %v208, %v469
  %v471 = vpop.f32.mrb[0].mxu0
  %v472 = vadd.f32 %v208, %v471
  %473 = vdwg.mxu0
  %v474 = vmax.f32 %v315, 0.0
  %v475 = vmax.f32 %v317, 0.0
  %v476 = vmax.f32 %v428, 0.0
  %v477 = vmax.f32 %v430, 0.0
  %v478 = vmax.f32 %v321, 0.0
  %v479 = vmax.f32 %v323, 0.0
  %v480 = vmax.f32 %v434, 0.0
  %v481 = vmax.f32 %v436, 0.0
  %v482 = vmax.f32 %v327, 0.0
  %v483 = vmax.f32 %v329, 0.0
  %v484 = vmax.f32 %v440, 0.0
  %v485 = vmax.f32 %v442, 0.0
  %v486 = vmax.f32 %v333, 0.0
  %v487 = vmax.f32 %v335, 0.0
  %v488 = vmax.f32 %v446, 0.0
  %v489 = vmax.f32 %v448, 0.0
  %v490 = vmax.f32 %v339, 0.0
  %v491 = vmax.f32 %v341, 0.0
  %v492 = vmax.f32 %v452, 0.0
  %v493 = vmax.f32 %v454, 0.0
  %v494 = vmax.f32 %v345, 0.0
  %v495 = vmax.f32 %v347, 0.0
  %v496 = vmax.f32 %v458, 0.0
  %v497 = vmax.f32 %v460, 0.0
  %v498 = vmax.f32 %v351, 0.0
  %v499 = vmax.f32 %v353, 0.0
  %v500 = vmax.f32 %v464, 0.0
  %v501 = vmax.f32 %v466, 0.0
  %v502 = vmax.f32 %v357, 0.0
  %v503 = vmax.f32 %v359, 0.0
  %v504 = vmax.f32 %v470, 0.0
  %v505 = vmax.f32 %v472, 0.0
  %v506 = vmul.f32 %v474, %v474
  %v507 = vmul.f32 %v475, %v475
  %v508 = vmul.f32 %v476, %v476
  %v509 = vmul.f32 %v477, %v477
  %v510 = vmul.f32 %v478, %v478
  %v511 = vmul.f32 %v479, %v479
  %v512 = vmul.f32 %v480, %v480
  %v513 = vmul.f32 %v481, %v481
  %v514 = vmul.f32 %v482, %v482
  %v515 = vmul.f32 %v483, %v483
  %v516 = vmul.f32 %v484, %v484
  %v517 = vmul.f32 %v485, %v485
  %v518 = vmul.f32 %v486, %v486
  %v519 = vmul.f32 %v487, %v487
  %v520 = vmul.f32 %v488, %v488
  %v521 = vmul.f32 %v489, %v489
  %v522 = vmul.f32 %v490, %v490
  %v523 = vmul.f32 %v491, %v491
  %v524 = vmul.f32 %v492, %v492
  %v525 = vmul.f32 %v493, %v493
  %v526 = vmul.f32 %v494, %v494
  %v527 = vmul.f32 %v495, %v495
  %v528 = vmul.f32 %v496, %v496
  %v529 = vmul.f32 %v497, %v497
  %v530 = vmul.f32 %v498, %v498
  %v531 = vmul.f32 %v499, %v499
  %v532 = vmul.f32 %v500, %v500
  %v533 = vmul.f32 %v501, %v501
  %v534 = vmul.f32 %v502, %v502
  %v535 = vmul.f32 %v503, %v503
  %v536 = vmul.f32 %v504, %v504
  %v537 = vmul.f32 %v505, %v505
  %v538 = vadd.f32 %v506, %v510
  %v539 = vadd.f32 %v538, %v514
  %v540 = vadd.f32 %v539, %v518
  %v541 = vadd.f32 %v540, %v522
  %v542 = vadd.f32 %v541, %v526
  %v543 = vadd.f32 %v542, %v530
  %v544 = vadd.f32 %v543, %v534
  %v545 = vrot.slane %v544, 4
  %v546 = vadd.f32 %v544, %v545
  %v547 = vrot.slane %v546, 2
  %v548 = vadd.f32 %v546, %v547
  %v549 = vrot.slane %v548, 1
  %v550 = vadd.f32 %v548, %v549
  %v551 = vadd.f32 %v507, %v511
  %v552 = vadd.f32 %v551, %v515
  %v553 = vadd.f32 %v552, %v519
  %v554 = vadd.f32 %v553, %v523
  %v555 = vadd.f32 %v554, %v527
  %v556 = vadd.f32 %v555, %v531
  %v557 = vadd.f32 %v556, %v535
  %v558 = vrot.slane %v557, 4
  %v559 = vadd.f32 %v557, %v558
  %v560 = vrot.slane %v559, 2
  %v561 = vadd.f32 %v559, %v560
  %v562 = vrot.slane %v561, 1
  %v563 = vadd.f32 %v561, %v562
  %v564 = vadd.f32 %v508, %v512
  %v565 = vadd.f32 %v564, %v516
  %v566 = vadd.f32 %v565, %v520
  %v567 = vadd.f32 %v566, %v524
  %v568 = vadd.f32 %v567, %v528
  %v569 = vadd.f32 %v568, %v532
  %v570 = vadd.f32 %v569, %v536
  %v571 = vrot.slane %v570, 4
  %v572 = vadd.f32 %v570, %v571
  %v573 = vrot.slane %v572, 2
  %v574 = vadd.f32 %v572, %v573
  %v575 = vrot.slane %v574, 1
  %v576 = vadd.f32 %v574, %v575
  %v577 = vadd.f32 %v509, %v513
  %v578 = vadd.f32 %v577, %v517
  %v579 = vadd.f32 %v578, %v521
  %v580 = vadd.f32 %v579, %v525
  %v581 = vadd.f32 %v580, %v529
  %v582 = vadd.f32 %v581, %v533
  %v583 = vadd.f32 %v582, %v537
  %v584 = vrot.slane %v583, 4
  %v585 = vadd.f32 %v583, %v584
  %v586 = vrot.slane %v585, 2
  %v587 = vadd.f32 %v585, %v586
  %v588 = vrot.slane %v587, 1
  %v589 = vadd.f32 %v587, %v588
  %v590 = vrsqrt.pop %v550
  %v591 = vmul.f32 %v550, %v590
  %vm592 = vcmp.eq.f32.partialorder %v550, inf
  %v593 = vsel %vm592, %v550, %v591
  %vm594 = vcmp.eq.f32.partialorder %v550, 0.0
  %v595 = vand.u32 %v550, 2147483648
  %v596 = vsel %vm594, %v595, %v593
  %v597 = vrsqrt.pop %v563
  %v598 = vmul.f32 %v563, %v597
  %vm599 = vcmp.eq.f32.partialorder %v563, inf
  %v600 = vsel %vm599, %v563, %v598
  %vm601 = vcmp.eq.f32.partialorder %v563, 0.0
  %v602 = vand.u32 %v563, 2147483648
  %v603 = vsel %vm601, %v602, %v600
  %v604 = vrsqrt.pop %v576
  %v605 = vmul.f32 %v576, %v604
  %vm606 = vcmp.eq.f32.partialorder %v576, inf
  %v607 = vsel %vm606, %v576, %v605
  %vm608 = vcmp.eq.f32.partialorder %v576, 0.0
  %v609 = vand.u32 %v576, 2147483648
  %v610 = vsel %vm608, %v609, %v607
  %v611 = vrsqrt.pop %v589
  %v612 = vmul.f32 %v589, %v611
  %vm613 = vcmp.eq.f32.partialorder %v589, inf
  %v614 = vsel %vm613, %v589, %v612
  %vm615 = vcmp.eq.f32.partialorder %v589, 0.0
  %v616 = vand.u32 %v589, 2147483648
  %v617 = vsel %vm615, %v616, %v614
  %v618 = vadd.f32 %v596, 1e-10
  %v619 = vadd.f32 %v603, 1e-10
  %v620 = vadd.f32 %v610, 1e-10
  %v621 = vadd.f32 %v617, 1e-10
  %v622 = vrcp.pop %v618
  %v623 = vrcp.pop %v619
  %v624 = vrcp.pop %v620
  %v625 = vrcp.pop %v621
  %v626 = vmul.f32 %v474, %v622
  %v627 = vmul.f32 %v475, %v623
  %v628 = vmul.f32 %v476, %v624
  %v629 = vmul.f32 %v477, %v625
  %v630 = vmul.f32 %v478, %v622
  %v631 = vmul.f32 %v479, %v623
  %v632 = vmul.f32 %v480, %v624
  %v633 = vmul.f32 %v481, %v625
  %v634 = vmul.f32 %v482, %v622
  %v635 = vmul.f32 %v483, %v623
  %v636 = vmul.f32 %v484, %v624
  %v637 = vmul.f32 %v485, %v625
  %v638 = vmul.f32 %v486, %v622
  %v639 = vmul.f32 %v487, %v623
  %v640 = vmul.f32 %v488, %v624
  %v641 = vmul.f32 %v489, %v625
  %v642 = vmul.f32 %v490, %v622
  %v643 = vmul.f32 %v491, %v623
  %v644 = vmul.f32 %v492, %v624
  %v645 = vmul.f32 %v493, %v625
  %v646 = vmul.f32 %v494, %v622
  %v647 = vmul.f32 %v495, %v623
  %v648 = vmul.f32 %v496, %v624
  %v649 = vmul.f32 %v497, %v625
  %v650 = vmul.f32 %v498, %v622
  %v651 = vmul.f32 %v499, %v623
  %v652 = vmul.f32 %v500, %v624
  %v653 = vmul.f32 %v501, %v625
  %v654 = vmul.f32 %v502, %v622
  %v655 = vmul.f32 %v503, %v623
  %v656 = vmul.f32 %v504, %v624
  %v657 = vmul.f32 %v505, %v625
  %658 = vmatprep.subr.mxu0 0.0
  %659 = vmatpush1.msra.mxu0 %v106
  %660 = vmatprep.subr.mxu0 0.0
  %661 = vmatpush1.msra.mxu0 %v107
  %662 = vmatprep.subr.mxu0 0.0
  %663 = vmatpush1.msra.mxu0 %v108
  %664 = vmatprep.subr.mxu0 0.0
  %665 = vmatpush1.msra.mxu0 %v109
  %666 = vmatprep.subr.mxu0 0.0
  %667 = vmatpush1.msra.mxu0 %v110
  %668 = vmatprep.subr.mxu0 0.0
  %669 = vmatpush1.msra.mxu0 %v111
  %670 = vmatprep.subr.mxu0 0.0
  %671 = vmatpush1.msra.mxu0 %v112
  %672 = vmatprep.subr.mxu0 0.0
  %673 = vmatpush1.msra.mxu0 %v113
  %674 = vmatprep.subr.mxu0 0.0
  %675 = vmatpush1.msra.mxu0 %v114
  %676 = vmatprep.subr.mxu0 0.0
  %677 = vmatpush1.msra.mxu0 %v115
  %678 = vmatprep.subr.mxu0 0.0
  %679 = vmatpush1.msra.mxu0 %v116
  %680 = vmatprep.subr.mxu0 0.0
  %681 = vmatpush1.msra.mxu0 %v117
  %682 = vmatprep.subr.mxu0 0.0
  %683 = vmatpush1.msra.mxu0 %v118
  %684 = vmatprep.subr.mxu0 0.0
  %685 = vmatpush1.msra.mxu0 %v119
  %686 = vmatprep.subr.mxu0 0.0
  %687 = vmatpush1.msra.mxu0 %v120
  %688 = vmatprep.subr.mxu0 0.0
  %689 = vmatpush1.msra.mxu0 %v121
  %690 = vmatprep.subr.mxu0 0.0
  %691 = vmatpush1.msra.mxu0 %v122
  %692 = vmatprep.subr.mxu0 0.0
  %693 = vmatpush1.msra.mxu0 %v123
  %694 = vmatprep.subr.mxu0 0.0
  %695 = vmatpush1.msra.mxu0 %v124
  %696 = vmatprep.subr.mxu0 0.0
  %697 = vmatpush1.msra.mxu0 %v125
  %698 = vmatprep.subr.mxu0 0.0
  %699 = vmatpush1.msra.mxu0 %v126
  %700 = vmatprep.subr.mxu0 0.0
  %701 = vmatpush1.msra.mxu0 %v127
  %702 = vmatprep.subr.mxu0 0.0
  %703 = vmatpush1.msra.mxu0 %v128
  %704 = vmatprep.subr.mxu0 0.0
  %705 = vmatpush1.msra.mxu0 %v129
  %706 = vmatprep.subr.mxu0 0.0
  %707 = vmatpush1.msra.mxu0 %v130
  %708 = vmatprep.subr.mxu0 0.0
  %709 = vmatpush1.msra.mxu0 %v131
  %710 = vmatprep.subr.mxu0 0.0
  %711 = vmatpush1.msra.mxu0 %v132
  %712 = vmatprep.subr.mxu0 0.0
  %713 = vmatpush1.msra.mxu0 %v133
  %714 = vmatprep.subr.mxu0 0.0
  %715 = vmatpush1.msra.mxu0 %v134
  %716 = vmatprep.subr.mxu0 0.0
  %717 = vmatpush1.msra.mxu0 %v135
  %718 = vmatprep.subr.mxu0 0.0
  %719 = vmatpush1.msra.mxu0 %v136
  %720 = vmatprep.subr.mxu0 0.0
  %721 = vmatpush1.msra.mxu0 %v137
  %722 = vmatprep.mubr.f32.mxu0 %v627
  %723 = vmatmul.mubr.f32.gmra.mrb[0].mxu0 %v626
  %v724 = vpop.f32.mrb[0].mxu0
  %v725 = vadd.f32 0.0, %v724
  %v726 = vpop.f32.mrb[0].mxu0
  %727 = vmatprep.mubr.f32.mxu0 %v631
  %728 = vmatmul.mubr.f32.gmra.mrb[0].mxu0 %v630
  %v729 = vpop.f32.mrb[0].mxu0
  %v730 = vadd.f32 0.0, %v729
  %v731 = vpop.f32.mrb[0].mxu0
  %732 = vmatprep.mubr.f32.mxu0 %v635
  %733 = vmatmul.mubr.f32.gmra.mrb[0].mxu0 %v634
  %v734 = vpop.f32.mrb[0].mxu0
  %v735 = vadd.f32 0.0, %v734
  %v736 = vpop.f32.mrb[0].mxu0
  %737 = vmatprep.mubr.f32.mxu0 %v639
  %738 = vmatmul.mubr.f32.gmra.mrb[0].mxu0 %v638
  %v739 = vpop.f32.mrb[0].mxu0
  %v740 = vadd.f32 0.0, %v739
  %v741 = vpop.f32.mrb[0].mxu0
  %742 = vmatprep.mubr.f32.mxu0 %v643
  %743 = vmatmul.mubr.f32.gmra.mrb[0].mxu0 %v642
  %v744 = vpop.f32.mrb[0].mxu0
  %v745 = vadd.f32 0.0, %v744
  %v746 = vpop.f32.mrb[0].mxu0
  %747 = vmatprep.mubr.f32.mxu0 %v647
  %748 = vmatmul.mubr.f32.gmra.mrb[0].mxu0 %v646
  %v749 = vpop.f32.mrb[0].mxu0
  %v750 = vadd.f32 0.0, %v749
  %v751 = vpop.f32.mrb[0].mxu0
  %752 = vmatprep.mubr.f32.mxu0 %v651
  %753 = vmatmul.mubr.f32.gmra.mrb[0].mxu0 %v650
  %v754 = vpop.f32.mrb[0].mxu0
  %v755 = vadd.f32 0.0, %v754
  %v756 = vpop.f32.mrb[0].mxu0
  %757 = vmatprep.mubr.f32.mxu0 %v655
  %758 = vmatmul.mubr.f32.gmra.mrb[0].mxu0 %v654
  %v759 = vpop.f32.mrb[0].mxu0
  %v760 = vadd.f32 0.0, %v759
  %v761 = vpop.f32.mrb[0].mxu0
  %762 = vdwg.mxu0
  %763 = vmatprep.subr.mxu0 0.0
  %764 = vmatpush1.msra.mxu0 %v138
  %765 = vmatprep.subr.mxu0 0.0
  %766 = vmatpush1.msra.mxu0 %v139
  %767 = vmatprep.subr.mxu0 0.0
  %768 = vmatpush1.msra.mxu0 %v140
  %769 = vmatprep.subr.mxu0 0.0
  %770 = vmatpush1.msra.mxu0 %v141
  %771 = vmatprep.subr.mxu0 0.0
  %772 = vmatpush1.msra.mxu0 %v142
  %773 = vmatprep.subr.mxu0 0.0
  %774 = vmatpush1.msra.mxu0 %v143
  %775 = vmatprep.subr.mxu0 0.0
  %776 = vmatpush1.msra.mxu0 %v144
  %777 = vmatprep.subr.mxu0 0.0
  %778 = vmatpush1.msra.mxu0 %v145
  %779 = vmatprep.subr.mxu0 0.0
  %780 = vmatpush1.msra.mxu0 %v146
  %781 = vmatprep.subr.mxu0 0.0
  %782 = vmatpush1.msra.mxu0 %v147
  %783 = vmatprep.subr.mxu0 0.0
  %784 = vmatpush1.msra.mxu0 %v148
  %785 = vmatprep.subr.mxu0 0.0
  %786 = vmatpush1.msra.mxu0 %v149
  %787 = vmatprep.subr.mxu0 0.0
  %788 = vmatpush1.msra.mxu0 %v150
  %789 = vmatprep.subr.mxu0 0.0
  %790 = vmatpush1.msra.mxu0 %v151
  %791 = vmatprep.subr.mxu0 0.0
  %792 = vmatpush1.msra.mxu0 %v152
  %793 = vmatprep.subr.mxu0 0.0
  %794 = vmatpush1.msra.mxu0 %v153
  %795 = vmatprep.subr.mxu0 0.0
  %796 = vmatpush1.msra.mxu0 %v154
  %797 = vmatprep.subr.mxu0 0.0
  %798 = vmatpush1.msra.mxu0 %v155
  %799 = vmatprep.subr.mxu0 0.0
  %800 = vmatpush1.msra.mxu0 %v156
  %801 = vmatprep.subr.mxu0 0.0
  %802 = vmatpush1.msra.mxu0 %v157
  %803 = vmatprep.subr.mxu0 0.0
  %804 = vmatpush1.msra.mxu0 %v158
  %805 = vmatprep.subr.mxu0 0.0
  %806 = vmatpush1.msra.mxu0 %v159
  %807 = vmatprep.subr.mxu0 0.0
  %808 = vmatpush1.msra.mxu0 %v160
  %809 = vmatprep.subr.mxu0 0.0
  %810 = vmatpush1.msra.mxu0 %v161
  %811 = vmatprep.subr.mxu0 0.0
  %812 = vmatpush1.msra.mxu0 %v162
  %813 = vmatprep.subr.mxu0 0.0
  %814 = vmatpush1.msra.mxu0 %v163
  %815 = vmatprep.subr.mxu0 0.0
  %816 = vmatpush1.msra.mxu0 %v164
  %817 = vmatprep.subr.mxu0 0.0
  %818 = vmatpush1.msra.mxu0 %v165
  %819 = vmatprep.subr.mxu0 0.0
  %820 = vmatpush1.msra.mxu0 %v166
  %821 = vmatprep.subr.mxu0 0.0
  %822 = vmatpush1.msra.mxu0 %v167
  %823 = vmatprep.subr.mxu0 0.0
  %824 = vmatpush1.msra.mxu0 %v168
  %825 = vmatprep.subr.mxu0 0.0
  %826 = vmatpush1.msra.mxu0 %v169
  %827 = vmatprep.mubr.f32.mxu0 %v629
  %828 = vmatmul.mubr.f32.gmra.mrb[0].mxu0 %v628
  %v829 = vpop.f32.mrb[0].mxu0
  %v830 = vadd.f32 %v725, %v829
  %v831 = vpop.f32.mrb[0].mxu0
  %832 = vmatprep.mubr.f32.mxu0 %v633
  %833 = vmatmul.mubr.f32.gmra.mrb[0].mxu0 %v632
  %v834 = vpop.f32.mrb[0].mxu0
  %v835 = vadd.f32 %v730, %v834
  %v836 = vpop.f32.mrb[0].mxu0
  %837 = vmatprep.mubr.f32.mxu0 %v637
  %838 = vmatmul.mubr.f32.gmra.mrb[0].mxu0 %v636
  %v839 = vpop.f32.mrb[0].mxu0
  %v840 = vadd.f32 %v735, %v839
  %v841 = vpop.f32.mrb[0].mxu0
  %842 = vmatprep.mubr.f32.mxu0 %v641
  %843 = vmatmul.mubr.f32.gmra.mrb[0].mxu0 %v640
  %v844 = vpop.f32.mrb[0].mxu0
  %v845 = vadd.f32 %v740, %v844
  %v846 = vpop.f32.mrb[0].mxu0
  %847 = vmatprep.mubr.f32.mxu0 %v645
  %848 = vmatmul.mubr.f32.gmra.mrb[0].mxu0 %v644
  %v849 = vpop.f32.mrb[0].mxu0
  %v850 = vadd.f32 %v745, %v849
  %v851 = vpop.f32.mrb[0].mxu0
  %852 = vmatprep.mubr.f32.mxu0 %v649
  %853 = vmatmul.mubr.f32.gmra.mrb[0].mxu0 %v648
  %v854 = vpop.f32.mrb[0].mxu0
  %v855 = vadd.f32 %v750, %v854
  %v856 = vpop.f32.mrb[0].mxu0
  %857 = vmatprep.mubr.f32.mxu0 %v653
  %858 = vmatmul.mubr.f32.gmra.mrb[0].mxu0 %v652
  %v859 = vpop.f32.mrb[0].mxu0
  %v860 = vadd.f32 %v755, %v859
  %v861 = vpop.f32.mrb[0].mxu0
  %862 = vmatprep.mubr.f32.mxu0 %v657
  %863 = vmatmul.mubr.f32.gmra.mrb[0].mxu0 %v656
  %v864 = vpop.f32.mrb[0].mxu0
  %v865 = vadd.f32 %v760, %v864
  %v866 = vpop.f32.mrb[0].mxu0
  %867 = vdwg.mxu0
  %869 = vset.pattern.permute.xlu0 0
  %870 = vperm.xlu0 %869, %v98
  %v871 = vpop.permute.xlu0 %870
  %874 = vset.pattern.permute.xlu0 0
  %875 = vperm.xlu0 %874, %v99
  %v876 = vpop.permute.xlu0 %875
  %879 = vset.pattern.permute.xlu0 0
  %880 = vperm.xlu0 %879, %v100
  %v881 = vpop.permute.xlu0 %880
  %884 = vset.pattern.permute.xlu0 0
  %885 = vperm.xlu0 %884, %v101
  %v886 = vpop.permute.xlu0 %885
  %889 = vset.pattern.permute.xlu0 0
  %890 = vperm.xlu0 %889, %v102
  %v891 = vpop.permute.xlu0 %890
  %894 = vset.pattern.permute.xlu0 0
  %895 = vperm.xlu0 %894, %v103
  %v896 = vpop.permute.xlu0 %895
  %899 = vset.pattern.permute.xlu0 0
  %900 = vperm.xlu0 %899, %v104
  %v901 = vpop.permute.xlu0 %900
  %904 = vset.pattern.permute.xlu0 0
  %905 = vperm.xlu0 %904, %v105
  %v906 = vpop.permute.xlu0 %905
  %v908 = vmul.f32 %v830, %v871
  %v909 = vmul.f32 %v835, %v876
  %v910 = vmul.f32 %v840, %v881
  %v911 = vmul.f32 %v845, %v886
  %v912 = vmul.f32 %v850, %v891
  %v913 = vmul.f32 %v855, %v896
  %v914 = vmul.f32 %v860, %v901
  %v915 = vmul.f32 %v865, %v906
  %vm916 = vcmask 15360
  %917 = vst.msk [vmem:[%s25] sm:$0xff] %vm916, %v908
  %918 = vst.msk [vmem:[%s25 + $0x8] sm:$0xff] %vm916, %v909
  %919 = vst.msk [vmem:[%s25 + $0x10] sm:$0xff] %vm916, %v910
  %920 = vst.msk [vmem:[%s25 + $0x18] sm:$0xff] %vm916, %v911
  %921 = vst.msk [vmem:[%s25 + $0x20] sm:$0xff] %vm916, %v912
  %922 = vst.msk [vmem:[%s25 + $0x28] sm:$0xff] %vm916, %v913
  %923 = vst.msk [vmem:[%s25 + $0x30] sm:$0xff] %vm916, %v914
  %924 = vst.msk [vmem:[%s25 + $0x38] sm:$0xff] %vm916, %v915
  %v925 = vld [vmem:[%s5] sm:$0xff]
  %v926 = vld [vmem:[%s5 + $0x8] sm:$0xff]
  %v927 = vld [vmem:[%s5 + $0x10] sm:$0xff]
  %v928 = vld [vmem:[%s5 + $0x18] sm:$0xff]
  %v929 = vld [vmem:[%s5 + $0x20] sm:$0xff]
  %v930 = vld [vmem:[%s5 + $0x28] sm:$0xff]
  %v931 = vld [vmem:[%s5 + $0x30] sm:$0xff]
  %v932 = vld [vmem:[%s5 + $0x38] sm:$0xff]
  %v933 = vld [vmem:[%s5 + $0x40] sm:$0xff]
  %v934 = vld [vmem:[%s5 + $0x48] sm:$0xff]
  %v935 = vld [vmem:[%s5 + $0x50] sm:$0xff]
  %v936 = vld [vmem:[%s5 + $0x58] sm:$0xff]
  %v937 = vld [vmem:[%s5 + $0x60] sm:$0xff]
  %v938 = vld [vmem:[%s5 + $0x68] sm:$0xff]
  %v939 = vld [vmem:[%s5 + $0x70] sm:$0xff]
  %v940 = vld [vmem:[%s5 + $0x78] sm:$0xff]
  %v941 = vld [vmem:[%s5 + $0x80] sm:$0xff]
  %v942 = vld [vmem:[%s5 + $0x88] sm:$0xff]
  %v943 = vld [vmem:[%s5 + $0x90] sm:$0xff]
  %v944 = vld [vmem:[%s5 + $0x98] sm:$0xff]
  %v945 = vld [vmem:[%s5 + $0xa0] sm:$0xff]
  %v946 = vld [vmem:[%s5 + $0xa8] sm:$0xff]
  %v947 = vld [vmem:[%s5 + $0xb0] sm:$0xff]
  %v948 = vld [vmem:[%s5 + $0xb8] sm:$0xff]
  %v949 = vld [vmem:[%s5 + $0xc0] sm:$0xff]
  %v950 = vld [vmem:[%s5 + $0xc8] sm:$0xff]
  %v951 = vld [vmem:[%s5 + $0xd0] sm:$0xff]
  %v952 = vld [vmem:[%s5 + $0xd8] sm:$0xff]
  %v953 = vld [vmem:[%s5 + $0xe0] sm:$0xff]
  %v954 = vld [vmem:[%s5 + $0xe8] sm:$0xff]
  %v955 = vld [vmem:[%s5 + $0xf0] sm:$0xff]
  %v956 = vld [vmem:[%s5 + $0xf8] sm:$0xff]
  %v957 = vld [vmem:[%s5 + $0x100] sm:$0xff]
  %v958 = vld [vmem:[%s5 + $0x108] sm:$0xff]
  %v959 = vld [vmem:[%s5 + $0x110] sm:$0xff]
  %v960 = vld [vmem:[%s5 + $0x118] sm:$0xff]
  %v961 = vld [vmem:[%s5 + $0x120] sm:$0xff]
  %v962 = vld [vmem:[%s5 + $0x128] sm:$0xff]
  %v963 = vld [vmem:[%s5 + $0x130] sm:$0xff]
  %v964 = vld [vmem:[%s5 + $0x138] sm:$0xff]
  %v965 = vld [vmem:[%s5 + $0x140] sm:$0xff]
  %v966 = vld [vmem:[%s5 + $0x148] sm:$0xff]
  %v967 = vld [vmem:[%s5 + $0x150] sm:$0xff]
  %v968 = vld [vmem:[%s5 + $0x158] sm:$0xff]
  %v969 = vld [vmem:[%s5 + $0x160] sm:$0xff]
  %v970 = vld [vmem:[%s5 + $0x168] sm:$0xff]
  %v971 = vld [vmem:[%s5 + $0x170] sm:$0xff]
  %v972 = vld [vmem:[%s5 + $0x178] sm:$0xff]
  %v973 = vld [vmem:[%s5 + $0x180] sm:$0xff]
  %v974 = vld [vmem:[%s5 + $0x188] sm:$0xff]
  %v975 = vld [vmem:[%s5 + $0x190] sm:$0xff]
  %v976 = vld [vmem:[%s5 + $0x198] sm:$0xff]
  %v977 = vld [vmem:[%s5 + $0x1a0] sm:$0xff]
  %v978 = vld [vmem:[%s5 + $0x1a8] sm:$0xff]
  %v979 = vld [vmem:[%s5 + $0x1b0] sm:$0xff]
  %v980 = vld [vmem:[%s5 + $0x1b8] sm:$0xff]
  %v981 = vld [vmem:[%s5 + $0x1c0] sm:$0xff]
  %v982 = vld [vmem:[%s5 + $0x1c8] sm:$0xff]
  %v983 = vld [vmem:[%s5 + $0x1d0] sm:$0xff]
  %v984 = vld [vmem:[%s5 + $0x1d8] sm:$0xff]
  %v985 = vld [vmem:[%s5 + $0x1e0] sm:$0xff]
  %v986 = vld [vmem:[%s5 + $0x1e8] sm:$0xff]
  %v987 = vld [vmem:[%s5 + $0x1f0] sm:$0xff]
  %v988 = vld [vmem:[%s5 + $0x1f8] sm:$0xff]
  %991 = vmatprep.subr.mxu0 0.0
  %992 = vmatpush1.msra.mxu0 %v925
  %993 = vmatprep.subr.mxu0 0.0
  %994 = vmatpush1.msra.mxu0 %v926
  %995 = vmatprep.subr.mxu0 0.0
  %996 = vmatpush1.msra.mxu0 %v927
  %997 = vmatprep.subr.mxu0 0.0
  %998 = vmatpush1.msra.mxu0 %v928
  %999 = vmatprep.subr.mxu0 0.0
  %1000 = vmatpush1.msra.mxu0 %v929
  %1001 = vmatprep.subr.mxu0 0.0
  %1002 = vmatpush1.msra.mxu0 %v930
  %1003 = vmatprep.subr.mxu0 0.0
  %1004 = vmatpush1.msra.mxu0 %v931
  %1005 = vmatprep.subr.mxu0 0.0
  %1006 = vmatpush1.msra.mxu0 %v932
  %1007 = vmatprep.subr.mxu0 0.0
  %1008 = vmatpush1.msra.mxu0 %v933
  %1009 = vmatprep.subr.mxu0 0.0
  %1010 = vmatpush1.msra.mxu0 %v934
  %1011 = vmatprep.subr.mxu0 0.0
  %1012 = vmatpush1.msra.mxu0 %v935
  %1013 = vmatprep.subr.mxu0 0.0
  %1014 = vmatpush1.msra.mxu0 %v936
  %1015 = vmatprep.subr.mxu0 0.0
  %1016 = vmatpush1.msra.mxu0 %v937
  %1017 = vmatprep.subr.mxu0 0.0
  %1018 = vmatpush1.msra.mxu0 %v938
  %1019 = vmatprep.subr.mxu0 0.0
  %1020 = vmatpush1.msra.mxu0 %v939
  %1021 = vmatprep.subr.mxu0 0.0
  %1022 = vmatpush1.msra.mxu0 %v940
  %1023 = vmatprep.subr.mxu0 0.0
  %1024 = vmatpush1.msra.mxu0 %v941
  %1025 = vmatprep.subr.mxu0 0.0
  %1026 = vmatpush1.msra.mxu0 %v942
  %1027 = vmatprep.subr.mxu0 0.0
  %1028 = vmatpush1.msra.mxu0 %v943
  %1029 = vmatprep.subr.mxu0 0.0
  %1030 = vmatpush1.msra.mxu0 %v944
  %1031 = vmatprep.subr.mxu0 0.0
  %1032 = vmatpush1.msra.mxu0 %v945
  %1033 = vmatprep.subr.mxu0 0.0
  %1034 = vmatpush1.msra.mxu0 %v946
  %1035 = vmatprep.subr.mxu0 0.0
  %1036 = vmatpush1.msra.mxu0 %v947
  %1037 = vmatprep.subr.mxu0 0.0
  %1038 = vmatpush1.msra.mxu0 %v948
  %1039 = vmatprep.subr.mxu0 0.0
  %1040 = vmatpush1.msra.mxu0 %v949
  %1041 = vmatprep.subr.mxu0 0.0
  %1042 = vmatpush1.msra.mxu0 %v950
  %1043 = vmatprep.subr.mxu0 0.0
  %1044 = vmatpush1.msra.mxu0 %v951
  %1045 = vmatprep.subr.mxu0 0.0
  %1046 = vmatpush1.msra.mxu0 %v952
  %1047 = vmatprep.subr.mxu0 0.0
  %1048 = vmatpush1.msra.mxu0 %v953
  %1049 = vmatprep.subr.mxu0 0.0
  %1050 = vmatpush1.msra.mxu0 %v954
  %1051 = vmatprep.subr.mxu0 0.0
  %1052 = vmatpush1.msra.mxu0 %v955
  %1053 = vmatprep.subr.mxu0 0.0
  %1054 = vmatpush1.msra.mxu0 %v956
  %1055 = vmatprep.mubr.f32.mxu0 %v212
  %1056 = vmatmul.mubr.f32.gmra.mrb[0].mxu0 %v80
  %v1057 = vpop.f32.mrb[0].mxu0
  %v1058 = vadd.f32 0.0, %v1057
  %v1059 = vpop.f32.mrb[0].mxu0
  %1060 = vdwg.mxu0
  %1061 = vmatprep.subr.mxu0 0.0
  %1062 = vmatpush1.msra.mxu0 %v957
  %1063 = vmatprep.subr.mxu0 0.0
  %1064 = vmatpush1.msra.mxu0 %v958
  %1065 = vmatprep.subr.mxu0 0.0
  %1066 = vmatpush1.msra.mxu0 %v959
  %1067 = vmatprep.subr.mxu0 0.0
  %1068 = vmatpush1.msra.mxu0 %v960
  %1069 = vmatprep.subr.mxu0 0.0
  %1070 = vmatpush1.msra.mxu0 %v961
  %1071 = vmatprep.subr.mxu0 0.0
  %1072 = vmatpush1.msra.mxu0 %v962
  %1073 = vmatprep.subr.mxu0 0.0
  %1074 = vmatpush1.msra.mxu0 %v963
  %1075 = vmatprep.subr.mxu0 0.0
  %1076 = vmatpush1.msra.mxu0 %v964
  %1077 = vmatprep.subr.mxu0 0.0
  %1078 = vmatpush1.msra.mxu0 %v965
  %1079 = vmatprep.subr.mxu0 0.0
  %1080 = vmatpush1.msra.mxu0 %v966
  %1081 = vmatprep.subr.mxu0 0.0
  %1082 = vmatpush1.msra.mxu0 %v967
  %1083 = vmatprep.subr.mxu0 0.0
  %1084 = vmatpush1.msra.mxu0 %v968
  %1085 = vmatprep.subr.mxu0 0.0
  %1086 = vmatpush1.msra.mxu0 %v969
  %1087 = vmatprep.subr.mxu0 0.0
  %1088 = vmatpush1.msra.mxu0 %v970
  %1089 = vmatprep.subr.mxu0 0.0
  %1090 = vmatpush1.msra.mxu0 %v971
  %1091 = vmatprep.subr.mxu0 0.0
  %1092 = vmatpush1.msra.mxu0 %v972
  %1093 = vmatprep.subr.mxu0 0.0
  %1094 = vmatpush1.msra.mxu0 %v973
  %1095 = vmatprep.subr.mxu0 0.0
  %1096 = vmatpush1.msra.mxu0 %v974
  %1097 = vmatprep.subr.mxu0 0.0
  %1098 = vmatpush1.msra.mxu0 %v975
  %1099 = vmatprep.subr.mxu0 0.0
  %1100 = vmatpush1.msra.mxu0 %v976
  %1101 = vmatprep.subr.mxu0 0.0
  %1102 = vmatpush1.msra.mxu0 %v977
  %1103 = vmatprep.subr.mxu0 0.0
  %1104 = vmatpush1.msra.mxu0 %v978
  %1105 = vmatprep.subr.mxu0 0.0
  %1106 = vmatpush1.msra.mxu0 %v979
  %1107 = vmatprep.subr.mxu0 0.0
  %1108 = vmatpush1.msra.mxu0 %v980
  %1109 = vmatprep.subr.mxu0 0.0
  %1110 = vmatpush1.msra.mxu0 %v981
  %1111 = vmatprep.subr.mxu0 0.0
  %1112 = vmatpush1.msra.mxu0 %v982
  %1113 = vmatprep.subr.mxu0 0.0
  %1114 = vmatpush1.msra.mxu0 %v983
  %1115 = vmatprep.subr.mxu0 0.0
  %1116 = vmatpush1.msra.mxu0 %v984
  %1117 = vmatprep.subr.mxu0 0.0
  %1118 = vmatpush1.msra.mxu0 %v985
  %1119 = vmatprep.subr.mxu0 0.0
  %1120 = vmatpush1.msra.mxu0 %v986
  %1121 = vmatprep.subr.mxu0 0.0
  %1122 = vmatpush1.msra.mxu0 %v987
  %1123 = vmatprep.subr.mxu0 0.0
  %1124 = vmatpush1.msra.mxu0 %v988
  %1125 = vmatprep.mubr.f32.mxu0 %v213
  %1126 = vmatmul.mubr.f32.gmra.mrb[0].mxu0 %v81
  %v1127 = vpop.f32.mrb[0].mxu0
  %v1128 = vadd.f32 %v1058, %v1127
  %v1129 = vpop.f32.mrb[0].mxu0
  %1130 = vdwg.mxu0
  %v1131 = vld [vmem:[%s6] sm:$0xff]
  %v1132 = vld [vmem:[%s6 + $0x8] sm:$0xff]
  %v1133 = vld [vmem:[%s6 + $0x10] sm:$0xff]
  %v1134 = vld [vmem:[%s6 + $0x18] sm:$0xff]
  %v1135 = vld [vmem:[%s6 + $0x20] sm:$0xff]
  %v1136 = vld [vmem:[%s6 + $0x28] sm:$0xff]
  %v1137 = vld [vmem:[%s6 + $0x30] sm:$0xff]
  %v1138 = vld [vmem:[%s6 + $0x38] sm:$0xff]
  %v1139 = vld [vmem:[%s6 + $0x40] sm:$0xff]
  %v1140 = vld [vmem:[%s6 + $0x48] sm:$0xff]
  %v1141 = vld [vmem:[%s6 + $0x50] sm:$0xff]
  %v1142 = vld [vmem:[%s6 + $0x58] sm:$0xff]
  %v1143 = vld [vmem:[%s6 + $0x60] sm:$0xff]
  %v1144 = vld [vmem:[%s6 + $0x68] sm:$0xff]
  %v1145 = vld [vmem:[%s6 + $0x70] sm:$0xff]
  %v1146 = vld [vmem:[%s6 + $0x78] sm:$0xff]
  %v1147 = vld [vmem:[%s6 + $0x80] sm:$0xff]
  %v1148 = vld [vmem:[%s6 + $0x88] sm:$0xff]
  %v1149 = vld [vmem:[%s6 + $0x90] sm:$0xff]
  %v1150 = vld [vmem:[%s6 + $0x98] sm:$0xff]
  %v1151 = vld [vmem:[%s6 + $0xa0] sm:$0xff]
  %v1152 = vld [vmem:[%s6 + $0xa8] sm:$0xff]
  %v1153 = vld [vmem:[%s6 + $0xb0] sm:$0xff]
  %v1154 = vld [vmem:[%s6 + $0xb8] sm:$0xff]
  %v1155 = vld [vmem:[%s7] sm:$0xff]
  %v1156 = vld [vmem:[%s7 + $0x8] sm:$0xff]
  %v1157 = vld [vmem:[%s7 + $0x10] sm:$0xff]
  %v1158 = vld [vmem:[%s7 + $0x18] sm:$0xff]
  %v1159 = vld [vmem:[%s7 + $0x20] sm:$0xff]
  %v1160 = vld [vmem:[%s7 + $0x28] sm:$0xff]
  %v1161 = vld [vmem:[%s7 + $0x30] sm:$0xff]
  %v1162 = vld [vmem:[%s7 + $0x38] sm:$0xff]
  %v1163 = vld [vmem:[%s7 + $0x40] sm:$0xff]
  %v1164 = vld [vmem:[%s7 + $0x48] sm:$0xff]
  %v1165 = vld [vmem:[%s7 + $0x50] sm:$0xff]
  %v1166 = vld [vmem:[%s7 + $0x58] sm:$0xff]
  %v1167 = vld [vmem:[%s7 + $0x60] sm:$0xff]
  %v1168 = vld [vmem:[%s7 + $0x68] sm:$0xff]
  %v1169 = vld [vmem:[%s7 + $0x70] sm:$0xff]
  %v1170 = vld [vmem:[%s7 + $0x78] sm:$0xff]
  %v1171 = vld [vmem:[%s7 + $0x80] sm:$0xff]
  %v1172 = vld [vmem:[%s7 + $0x88] sm:$0xff]
  %v1173 = vld [vmem:[%s7 + $0x90] sm:$0xff]
  %v1174 = vld [vmem:[%s7 + $0x98] sm:$0xff]
  %v1175 = vld [vmem:[%s7 + $0xa0] sm:$0xff]
  %v1176 = vld [vmem:[%s7 + $0xa8] sm:$0xff]
  %v1177 = vld [vmem:[%s7 + $0xb0] sm:$0xff]
  %v1178 = vld [vmem:[%s7 + $0xb8] sm:$0xff]
  %v1179 = vld [vmem:[%s8] sm:$0xff]
  %v1180 = vld [vmem:[%s8 + $0x8] sm:$0xff]
  %v1181 = vld [vmem:[%s8 + $0x10] sm:$0xff]
  %v1182 = vld [vmem:[%s8 + $0x18] sm:$0xff]
  %v1183 = vld [vmem:[%s8 + $0x20] sm:$0xff]
  %v1184 = vld [vmem:[%s8 + $0x28] sm:$0xff]
  %v1185 = vld [vmem:[%s8 + $0x30] sm:$0xff]
  %v1186 = vld [vmem:[%s8 + $0x38] sm:$0xff]
  %v1187 = vld [vmem:[%s8 + $0x40] sm:$0xff]
  %v1188 = vld [vmem:[%s8 + $0x48] sm:$0xff]
  %v1189 = vld [vmem:[%s8 + $0x50] sm:$0xff]
  %v1190 = vld [vmem:[%s8 + $0x58] sm:$0xff]
  %v1191 = vld [vmem:[%s8 + $0x60] sm:$0xff]
  %v1192 = vld [vmem:[%s8 + $0x68] sm:$0xff]
  %v1193 = vld [vmem:[%s8 + $0x70] sm:$0xff]
  %v1194 = vld [vmem:[%s8 + $0x78] sm:$0xff]
  %v1195 = vld [vmem:[%s8 + $0x80] sm:$0xff]
  %v1196 = vld [vmem:[%s8 + $0x88] sm:$0xff]
  %v1197 = vld [vmem:[%s8 + $0x90] sm:$0xff]
  %v1198 = vld [vmem:[%s8 + $0x98] sm:$0xff]
  %v1199 = vld [vmem:[%s8 + $0xa0] sm:$0xff]
  %v1200 = vld [vmem:[%s8 + $0xa8] sm:$0xff]
  %v1201 = vld [vmem:[%s8 + $0xb0] sm:$0xff]
  %v1202 = vld [vmem:[%s8 + $0xb8] sm:$0xff]
  %v1203 = vld [vmem:[%s9] sm:$0xff]
  %v1204 = vld [vmem:[%s9 + $0x8] sm:$0xff]
  %v1205 = vld [vmem:[%s9 + $0x10] sm:$0xff]
  %v1206 = vld [vmem:[%s9 + $0x18] sm:$0xff]
  %v1207 = vld [vmem:[%s9 + $0x20] sm:$0xff]
  %v1208 = vld [vmem:[%s9 + $0x28] sm:$0xff]
  %v1209 = vld [vmem:[%s9 + $0x30] sm:$0xff]
  %v1210 = vld [vmem:[%s9 + $0x38] sm:$0xff]
  %v1211 = vld [vmem:[%s9 + $0x40] sm:$0xff]
  %v1212 = vld [vmem:[%s9 + $0x48] sm:$0xff]
  %v1213 = vld [vmem:[%s9 + $0x50] sm:$0xff]
  %v1214 = vld [vmem:[%s9 + $0x58] sm:$0xff]
  %v1215 = vld [vmem:[%s9 + $0x60] sm:$0xff]
  %v1216 = vld [vmem:[%s9 + $0x68] sm:$0xff]
  %v1217 = vld [vmem:[%s9 + $0x70] sm:$0xff]
  %v1218 = vld [vmem:[%s9 + $0x78] sm:$0xff]
  %1220 = vset.pattern.permute.xlu0 0
  %1221 = vperm.xlu0 %1220, %v1155
  %v1222 = vpop.permute.xlu0 %1221
  %1225 = vset.pattern.permute.xlu0 0
  %1226 = vperm.xlu0 %1225, %v1156
  %v1227 = vpop.permute.xlu0 %1226
  %1230 = vset.pattern.permute.xlu0 0
  %1231 = vperm.xlu0 %1230, %v1157
  %v1232 = vpop.permute.xlu0 %1231
  %1235 = vset.pattern.permute.xlu0 0
  %1236 = vperm.xlu0 %1235, %v1158
  %v1237 = vpop.permute.xlu0 %1236
  %1240 = vset.pattern.permute.xlu0 0
  %1241 = vperm.xlu0 %1240, %v1159
  %v1242 = vpop.permute.xlu0 %1241
  %1245 = vset.pattern.permute.xlu0 0
  %1246 = vperm.xlu0 %1245, %v1160
  %v1247 = vpop.permute.xlu0 %1246
  %1250 = vset.pattern.permute.xlu0 0
  %1251 = vperm.xlu0 %1250, %v1161
  %v1252 = vpop.permute.xlu0 %1251
  %1255 = vset.pattern.permute.xlu0 0
  %1256 = vperm.xlu0 %1255, %v1162
  %v1257 = vpop.permute.xlu0 %1256
  %1260 = vset.pattern.permute.xlu0 0
  %1261 = vperm.xlu0 %1260, %v1163
  %v1262 = vpop.permute.xlu0 %1261
  %1265 = vset.pattern.permute.xlu0 0
  %1266 = vperm.xlu0 %1265, %v1164
  %v1267 = vpop.permute.xlu0 %1266
  %1270 = vset.pattern.permute.xlu0 0
  %1271 = vperm.xlu0 %1270, %v1165
  %v1272 = vpop.permute.xlu0 %1271
  %1275 = vset.pattern.permute.xlu0 0
  %1276 = vperm.xlu0 %1275, %v1166
  %v1277 = vpop.permute.xlu0 %1276
  %1280 = vset.pattern.permute.xlu0 0
  %1281 = vperm.xlu0 %1280, %v1167
  %v1282 = vpop.permute.xlu0 %1281
  %1285 = vset.pattern.permute.xlu0 0
  %1286 = vperm.xlu0 %1285, %v1168
  %v1287 = vpop.permute.xlu0 %1286
  %1290 = vset.pattern.permute.xlu0 0
  %1291 = vperm.xlu0 %1290, %v1169
  %v1292 = vpop.permute.xlu0 %1291
  %1295 = vset.pattern.permute.xlu0 0
  %1296 = vperm.xlu0 %1295, %v1170
  %v1297 = vpop.permute.xlu0 %1296
  %1300 = vset.pattern.permute.xlu0 0
  %1301 = vperm.xlu0 %1300, %v1171
  %v1302 = vpop.permute.xlu0 %1301
  %1305 = vset.pattern.permute.xlu0 0
  %1306 = vperm.xlu0 %1305, %v1172
  %v1307 = vpop.permute.xlu0 %1306
  %1310 = vset.pattern.permute.xlu0 0
  %1311 = vperm.xlu0 %1310, %v1173
  %v1312 = vpop.permute.xlu0 %1311
  %1315 = vset.pattern.permute.xlu0 0
  %1316 = vperm.xlu0 %1315, %v1174
  %v1317 = vpop.permute.xlu0 %1316
  %1320 = vset.pattern.permute.xlu0 0
  %1321 = vperm.xlu0 %1320, %v1175
  %v1322 = vpop.permute.xlu0 %1321
  %1325 = vset.pattern.permute.xlu0 0
  %1326 = vperm.xlu0 %1325, %v1176
  %v1327 = vpop.permute.xlu0 %1326
  %1330 = vset.pattern.permute.xlu0 0
  %1331 = vperm.xlu0 %1330, %v1177
  %v1332 = vpop.permute.xlu0 %1331
  %1335 = vset.pattern.permute.xlu0 0
  %1336 = vperm.xlu0 %1335, %v1178
  %v1337 = vpop.permute.xlu0 %1336
  %v1340 = vsel %vm214, %v1131, 0
  %v1343 = vsel %vm214, %v1132, 0
  %v1346 = vsel %vm214, %v1133, 0
  %v1349 = vsel %vm214, %v1134, 0
  %v1352 = vsel %vm214, %v1135, 0
  %v1355 = vsel %vm214, %v1136, 0
  %v1358 = vsel %vm214, %v1137, 0
  %v1361 = vsel %vm214, %v1138, 0
  %v1364 = vsel %vm214, %v1139, 0
  %v1367 = vsel %vm214, %v1140, 0
  %v1370 = vsel %vm214, %v1141, 0
  %v1373 = vsel %vm214, %v1142, 0
  %v1376 = vsel %vm214, %v1143, 0
  %v1379 = vsel %vm214, %v1144, 0
  %v1382 = vsel %vm214, %v1145, 0
  %v1385 = vsel %vm214, %v1146, 0
  %v1388 = vsel %vm214, %v1147, 0
  %v1391 = vsel %vm214, %v1148, 0
  %v1394 = vsel %vm214, %v1149, 0
  %v1397 = vsel %vm214, %v1150, 0
  %v1400 = vsel %vm214, %v1151, 0
  %v1403 = vsel %vm214, %v1152, 0
  %v1406 = vsel %vm214, %v1153, 0
  %v1409 = vsel %vm214, %v1154, 0
  %v1412 = vsel %vm239, %v1128, 0
  %1414 = vmatprep.subr.mxu0 0.0
  %1415 = vmatpush1.msra.mxu0 %v1412
  %1416 = vmatprep.subr.mxu0 0.0
  %1417 = vmatpush1.msra.mxu0 0.0
  %1418 = vmatprep.subr.mxu0 0.0
  %1419 = vmatpush1.msra.mxu0 0.0
  %1420 = vmatprep.subr.mxu0 0.0
  %1421 = vmatpush1.msra.mxu0 0.0
  %1422 = vmatprep.subr.mxu0 0.0
  %1423 = vmatpush1.msra.mxu0 0.0
  %1424 = vmatprep.subr.mxu0 0.0
  %1425 = vmatpush1.msra.mxu0 0.0
  %1426 = vmatprep.subr.mxu0 0.0
  %1427 = vmatpush1.msra.mxu0 0.0
  %1428 = vmatprep.subr.mxu0 0.0
  %1429 = vmatpush1.msra.mxu0 0.0
  %1430 = vmatprep.subr.mxu0 0.0
  %1431 = vmatpush1.msra.mxu0 0.0
  %1432 = vmatprep.subr.mxu0 0.0
  %1433 = vmatpush1.msra.mxu0 0.0
  %1434 = vmatprep.subr.mxu0 0.0
  %1435 = vmatpush1.msra.mxu0 0.0
  %1436 = vmatprep.subr.mxu0 0.0
  %1437 = vmatpush1.msra.mxu0 0.0
  %1438 = vmatprep.subr.mxu0 0.0
  %1439 = vmatpush1.msra.mxu0 0.0
  %1440 = vmatprep.subr.mxu0 0.0
  %1441 = vmatpush1.msra.mxu0 0.0
  %1442 = vmatprep.subr.mxu0 0.0
  %1443 = vmatpush1.msra.mxu0 0.0
  %1444 = vmatprep.subr.mxu0 0.0
  %1445 = vmatpush1.msra.mxu0 0.0
  %1446 = vmatprep.subr.mxu0 0.0
  %1447 = vmatpush1.msra.mxu0 0.0
  %1448 = vmatprep.subr.mxu0 0.0
  %1449 = vmatpush1.msra.mxu0 0.0
  %1450 = vmatprep.subr.mxu0 0.0
  %1451 = vmatpush1.msra.mxu0 0.0
  %1452 = vmatprep.subr.mxu0 0.0
  %1453 = vmatpush1.msra.mxu0 0.0
  %1454 = vmatprep.subr.mxu0 0.0
  %1455 = vmatpush1.msra.mxu0 0.0
  %1456 = vmatprep.subr.mxu0 0.0
  %1457 = vmatpush1.msra.mxu0 0.0
  %1458 = vmatprep.subr.mxu0 0.0
  %1459 = vmatpush1.msra.mxu0 0.0
  %1460 = vmatprep.subr.mxu0 0.0
  %1461 = vmatpush1.msra.mxu0 0.0
  %1462 = vmatprep.subr.mxu0 0.0
  %1463 = vmatpush1.msra.mxu0 0.0
  %1464 = vmatprep.subr.mxu0 0.0
  %1465 = vmatpush1.msra.mxu0 0.0
  %1466 = vmatprep.subr.mxu0 0.0
  %1467 = vmatpush1.msra.mxu0 0.0
  %1468 = vmatprep.subr.mxu0 0.0
  %1469 = vmatpush1.msra.mxu0 0.0
  %1470 = vmatprep.subr.mxu0 0.0
  %1471 = vmatpush1.msra.mxu0 0.0
  %1472 = vmatprep.subr.mxu0 0.0
  %1473 = vmatpush1.msra.mxu0 0.0
  %1474 = vmatprep.subr.mxu0 0.0
  %1475 = vmatpush1.msra.mxu0 0.0
  %1476 = vmatprep.subr.mxu0 0.0
  %1477 = vmatpush1.msra.mxu0 0.0
  %1478 = vmatprep.mubr.f32.mxu0 0.0
  %1479 = vmatmul.mubr.f32.gmra.mrb[0].mxu0 %v1340
  %v1480 = vpop.f32.mrb[0].mxu0
  %v1481 = vadd.f32 %v1222, %v1480
  %v1482 = vpop.f32.mrb[0].mxu0
  %1483 = vmatprep.mubr.f32.mxu0 0.0
  %1484 = vmatmul.mubr.f32.gmra.mrb[0].mxu0 %v1343
  %v1485 = vpop.f32.mrb[0].mxu0
  %v1486 = vadd.f32 %v1227, %v1485
  %v1487 = vpop.f32.mrb[0].mxu0
  %1488 = vmatprep.mubr.f32.mxu0 0.0
  %1489 = vmatmul.mubr.f32.gmra.mrb[0].mxu0 %v1346
  %v1490 = vpop.f32.mrb[0].mxu0
  %v1491 = vadd.f32 %v1232, %v1490
  %v1492 = vpop.f32.mrb[0].mxu0
  %1493 = vmatprep.mubr.f32.mxu0 0.0
  %1494 = vmatmul.mubr.f32.gmra.mrb[0].mxu0 %v1349
  %v1495 = vpop.f32.mrb[0].mxu0
  %v1496 = vadd.f32 %v1237, %v1495
  %v1497 = vpop.f32.mrb[0].mxu0
  %1498 = vmatprep.mubr.f32.mxu0 0.0
  %1499 = vmatmul.mubr.f32.gmra.mrb[0].mxu0 %v1352
  %v1500 = vpop.f32.mrb[0].mxu0
  %v1501 = vadd.f32 %v1242, %v1500
  %v1502 = vpop.f32.mrb[0].mxu0
  %1503 = vmatprep.mubr.f32.mxu0 0.0
  %1504 = vmatmul.mubr.f32.gmra.mrb[0].mxu0 %v1355
  %v1505 = vpop.f32.mrb[0].mxu0
  %v1506 = vadd.f32 %v1247, %v1505
  %v1507 = vpop.f32.mrb[0].mxu0
  %1508 = vmatprep.mubr.f32.mxu0 0.0
  %1509 = vmatmul.mubr.f32.gmra.mrb[0].mxu0 %v1358
  %v1510 = vpop.f32.mrb[0].mxu0
  %v1511 = vadd.f32 %v1252, %v1510
  %v1512 = vpop.f32.mrb[0].mxu0
  %1513 = vmatprep.mubr.f32.mxu0 0.0
  %1514 = vmatmul.mubr.f32.gmra.mrb[0].mxu0 %v1361
  %v1515 = vpop.f32.mrb[0].mxu0
  %v1516 = vadd.f32 %v1257, %v1515
  %v1517 = vpop.f32.mrb[0].mxu0
  %1518 = vmatprep.mubr.f32.mxu0 0.0
  %1519 = vmatmul.mubr.f32.gmra.mrb[0].mxu0 %v1364
  %v1520 = vpop.f32.mrb[0].mxu0
  %v1521 = vadd.f32 %v1262, %v1520
  %v1522 = vpop.f32.mrb[0].mxu0
  %1523 = vmatprep.mubr.f32.mxu0 0.0
  %1524 = vmatmul.mubr.f32.gmra.mrb[0].mxu0 %v1367
  %v1525 = vpop.f32.mrb[0].mxu0
  %v1526 = vadd.f32 %v1267, %v1525
  %v1527 = vpop.f32.mrb[0].mxu0
  %1528 = vmatprep.mubr.f32.mxu0 0.0
  %1529 = vmatmul.mubr.f32.gmra.mrb[0].mxu0 %v1370
  %v1530 = vpop.f32.mrb[0].mxu0
  %v1531 = vadd.f32 %v1272, %v1530
  %v1532 = vpop.f32.mrb[0].mxu0
  %1533 = vmatprep.mubr.f32.mxu0 0.0
  %1534 = vmatmul.mubr.f32.gmra.mrb[0].mxu0 %v1373
  %v1535 = vpop.f32.mrb[0].mxu0
  %v1536 = vadd.f32 %v1277, %v1535
  %v1537 = vpop.f32.mrb[0].mxu0
  %1538 = vmatprep.mubr.f32.mxu0 0.0
  %1539 = vmatmul.mubr.f32.gmra.mrb[0].mxu0 %v1376
  %v1540 = vpop.f32.mrb[0].mxu0
  %v1541 = vadd.f32 %v1282, %v1540
  %v1542 = vpop.f32.mrb[0].mxu0
  %1543 = vmatprep.mubr.f32.mxu0 0.0
  %1544 = vmatmul.mubr.f32.gmra.mrb[0].mxu0 %v1379
  %v1545 = vpop.f32.mrb[0].mxu0
  %v1546 = vadd.f32 %v1287, %v1545
  %v1547 = vpop.f32.mrb[0].mxu0
  %1548 = vmatprep.mubr.f32.mxu0 0.0
  %1549 = vmatmul.mubr.f32.gmra.mrb[0].mxu0 %v1382
  %v1550 = vpop.f32.mrb[0].mxu0
  %v1551 = vadd.f32 %v1292, %v1550
  %v1552 = vpop.f32.mrb[0].mxu0
  %1553 = vmatprep.mubr.f32.mxu0 0.0
  %1554 = vmatmul.mubr.f32.gmra.mrb[0].mxu0 %v1385
  %v1555 = vpop.f32.mrb[0].mxu0
  %v1556 = vadd.f32 %v1297, %v1555
  %v1557 = vpop.f32.mrb[0].mxu0
  %1558 = vmatprep.mubr.f32.mxu0 0.0
  %1559 = vmatmul.mubr.f32.gmra.mrb[0].mxu0 %v1388
  %v1560 = vpop.f32.mrb[0].mxu0
  %v1561 = vadd.f32 %v1302, %v1560
  %v1562 = vpop.f32.mrb[0].mxu0
  %1563 = vmatprep.mubr.f32.mxu0 0.0
  %1564 = vmatmul.mubr.f32.gmra.mrb[0].mxu0 %v1391
  %v1565 = vpop.f32.mrb[0].mxu0
  %v1566 = vadd.f32 %v1307, %v1565
  %v1567 = vpop.f32.mrb[0].mxu0
  %1568 = vmatprep.mubr.f32.mxu0 0.0
  %1569 = vmatmul.mubr.f32.gmra.mrb[0].mxu0 %v1394
  %v1570 = vpop.f32.mrb[0].mxu0
  %v1571 = vadd.f32 %v1312, %v1570
  %v1572 = vpop.f32.mrb[0].mxu0
  %1573 = vmatprep.mubr.f32.mxu0 0.0
  %1574 = vmatmul.mubr.f32.gmra.mrb[0].mxu0 %v1397
  %v1575 = vpop.f32.mrb[0].mxu0
  %v1576 = vadd.f32 %v1317, %v1575
  %v1577 = vpop.f32.mrb[0].mxu0
  %1578 = vmatprep.mubr.f32.mxu0 0.0
  %1579 = vmatmul.mubr.f32.gmra.mrb[0].mxu0 %v1400
  %v1580 = vpop.f32.mrb[0].mxu0
  %v1581 = vadd.f32 %v1322, %v1580
  %v1582 = vpop.f32.mrb[0].mxu0
  %1583 = vmatprep.mubr.f32.mxu0 0.0
  %1584 = vmatmul.mubr.f32.gmra.mrb[0].mxu0 %v1403
  %v1585 = vpop.f32.mrb[0].mxu0
  %v1586 = vadd.f32 %v1327, %v1585
  %v1587 = vpop.f32.mrb[0].mxu0
  %1588 = vmatprep.mubr.f32.mxu0 0.0
  %1589 = vmatmul.mubr.f32.gmra.mrb[0].mxu0 %v1406
  %v1590 = vpop.f32.mrb[0].mxu0
  %v1591 = vadd.f32 %v1332, %v1590
  %v1592 = vpop.f32.mrb[0].mxu0
  %1593 = vmatprep.mubr.f32.mxu0 0.0
  %1594 = vmatmul.mubr.f32.gmra.mrb[0].mxu0 %v1409
  %v1595 = vpop.f32.mrb[0].mxu0
  %v1596 = vadd.f32 %v1337, %v1595
  %v1597 = vpop.f32.mrb[0].mxu0
  %1598 = vdwg.mxu0
  %v1599 = vmax.f32 %v1481, 0.0
  %v1600 = vmax.f32 %v1486, 0.0
  %v1601 = vmax.f32 %v1491, 0.0
  %v1602 = vmax.f32 %v1496, 0.0
  %v1603 = vmax.f32 %v1501, 0.0
  %v1604 = vmax.f32 %v1506, 0.0
  %v1605 = vmax.f32 %v1511, 0.0
  %v1606 = vmax.f32 %v1516, 0.0
  %v1607 = vmax.f32 %v1521, 0.0
  %v1608 = vmax.f32 %v1526, 0.0
  %v1609 = vmax.f32 %v1531, 0.0
  %v1610 = vmax.f32 %v1536, 0.0
  %v1611 = vmax.f32 %v1541, 0.0
  %v1612 = vmax.f32 %v1546, 0.0
  %v1613 = vmax.f32 %v1551, 0.0
  %v1614 = vmax.f32 %v1556, 0.0
  %v1615 = vmax.f32 %v1561, 0.0
  %v1616 = vmax.f32 %v1566, 0.0
  %v1617 = vmax.f32 %v1571, 0.0
  %v1618 = vmax.f32 %v1576, 0.0
  %v1619 = vmax.f32 %v1581, 0.0
  %v1620 = vmax.f32 %v1586, 0.0
  %v1621 = vmax.f32 %v1591, 0.0
  %v1622 = vmax.f32 %v1596, 0.0
  %v1623 = vmul.f32 %v1599, %v1599
  %v1624 = vmul.f32 %v1600, %v1600
  %v1625 = vmul.f32 %v1601, %v1601
  %v1626 = vmul.f32 %v1602, %v1602
  %v1627 = vmul.f32 %v1603, %v1603
  %v1628 = vmul.f32 %v1604, %v1604
  %v1629 = vmul.f32 %v1605, %v1605
  %v1630 = vmul.f32 %v1606, %v1606
  %v1631 = vmul.f32 %v1607, %v1607
  %v1632 = vmul.f32 %v1608, %v1608
  %v1633 = vmul.f32 %v1609, %v1609
  %v1634 = vmul.f32 %v1610, %v1610
  %v1635 = vmul.f32 %v1611, %v1611
  %v1636 = vmul.f32 %v1612, %v1612
  %v1637 = vmul.f32 %v1613, %v1613
  %v1638 = vmul.f32 %v1614, %v1614
  %v1639 = vmul.f32 %v1615, %v1615
  %v1640 = vmul.f32 %v1616, %v1616
  %v1641 = vmul.f32 %v1617, %v1617
  %v1642 = vmul.f32 %v1618, %v1618
  %v1643 = vmul.f32 %v1619, %v1619
  %v1644 = vmul.f32 %v1620, %v1620
  %v1645 = vmul.f32 %v1621, %v1621
  %v1646 = vmul.f32 %v1622, %v1622
  %v1647 = vadd.f32 %v1623, %v1624
  %v1648 = vadd.f32 %v1647, %v1625
  %v1649 = vadd.f32 %v1648, %v1626
  %v1650 = vadd.f32 %v1649, %v1627
  %v1651 = vadd.f32 %v1650, %v1628
  %v1652 = vadd.f32 %v1651, %v1629
  %v1653 = vadd.f32 %v1652, %v1630
  %v1654 = vadd.f32 %v1653, %v1631
  %v1655 = vadd.f32 %v1654, %v1632
  %v1656 = vadd.f32 %v1655, %v1633
  %v1657 = vadd.f32 %v1656, %v1634
  %v1658 = vadd.f32 %v1657, %v1635
  %v1659 = vadd.f32 %v1658, %v1636
  %v1660 = vadd.f32 %v1659, %v1637
  %v1661 = vadd.f32 %v1660, %v1638
  %v1662 = vadd.f32 %v1661, %v1639
  %v1663 = vadd.f32 %v1662, %v1640
  %v1664 = vadd.f32 %v1663, %v1641
  %v1665 = vadd.f32 %v1664, %v1642
  %v1666 = vadd.f32 %v1665, %v1643
  %v1667 = vadd.f32 %v1666, %v1644
  %v1668 = vadd.f32 %v1667, %v1645
  %v1669 = vadd.f32 %v1668, %v1646
  %v1670 = vrot.slane %v1669, 4
  %v1671 = vadd.f32 %v1669, %v1670
  %v1672 = vrot.slane %v1671, 2
  %v1673 = vadd.f32 %v1671, %v1672
  %v1674 = vrot.slane %v1673, 1
  %v1675 = vadd.f32 %v1673, %v1674
  %v1676 = vrsqrt.pop %v1675
  %v1677 = vmul.f32 %v1675, %v1676
  %vm1678 = vcmp.eq.f32.partialorder %v1675, inf
  %v1679 = vsel %vm1678, %v1675, %v1677
  %vm1680 = vcmp.eq.f32.partialorder %v1675, 0.0
  %v1681 = vand.u32 %v1675, 2147483648
  %v1682 = vsel %vm1680, %v1681, %v1679
  %v1683 = vadd.f32 %v1682, 1e-10
  %v1684 = vrcp.pop %v1683
  %v1685 = vmul.f32 %v1599, %v1684
  %v1686 = vmul.f32 %v1600, %v1684
  %v1687 = vmul.f32 %v1601, %v1684
  %v1688 = vmul.f32 %v1602, %v1684
  %v1689 = vmul.f32 %v1603, %v1684
  %v1690 = vmul.f32 %v1604, %v1684
  %v1691 = vmul.f32 %v1605, %v1684
  %v1692 = vmul.f32 %v1606, %v1684
  %v1693 = vmul.f32 %v1607, %v1684
  %v1694 = vmul.f32 %v1608, %v1684
  %v1695 = vmul.f32 %v1609, %v1684
  %v1696 = vmul.f32 %v1610, %v1684
  %v1697 = vmul.f32 %v1611, %v1684
  %v1698 = vmul.f32 %v1612, %v1684
  %v1699 = vmul.f32 %v1613, %v1684
  %v1700 = vmul.f32 %v1614, %v1684
  %v1701 = vmul.f32 %v1615, %v1684
  %v1702 = vmul.f32 %v1616, %v1684
  %v1703 = vmul.f32 %v1617, %v1684
  %v1704 = vmul.f32 %v1618, %v1684
  %v1705 = vmul.f32 %v1619, %v1684
  %v1706 = vmul.f32 %v1620, %v1684
  %v1707 = vmul.f32 %v1621, %v1684
  %v1708 = vmul.f32 %v1622, %v1684
  %1709 = vmatprep.subr.mxu0 0.0
  %1710 = vmatpush1.msra.mxu0 %v1203
  %1711 = vmatprep.subr.mxu0 0.0
  %1712 = vmatpush1.msra.mxu0 %v1204
  %1713 = vmatprep.subr.mxu0 0.0
  %1714 = vmatpush1.msra.mxu0 %v1205
  %1715 = vmatprep.subr.mxu0 0.0
  %1716 = vmatpush1.msra.mxu0 %v1206
  %1717 = vmatprep.subr.mxu0 0.0
  %1718 = vmatpush1.msra.mxu0 %v1207
  %1719 = vmatprep.subr.mxu0 0.0
  %1720 = vmatpush1.msra.mxu0 %v1208
  %1721 = vmatprep.subr.mxu0 0.0
  %1722 = vmatpush1.msra.mxu0 %v1209
  %1723 = vmatprep.subr.mxu0 0.0
  %1724 = vmatpush1.msra.mxu0 %v1210
  %1725 = vmatprep.subr.mxu0 0.0
  %1726 = vmatpush1.msra.mxu0 %v1211
  %1727 = vmatprep.subr.mxu0 0.0
  %1728 = vmatpush1.msra.mxu0 %v1212
  %1729 = vmatprep.subr.mxu0 0.0
  %1730 = vmatpush1.msra.mxu0 %v1213
  %1731 = vmatprep.subr.mxu0 0.0
  %1732 = vmatpush1.msra.mxu0 %v1214
  %1733 = vmatprep.subr.mxu0 0.0
  %1734 = vmatpush1.msra.mxu0 %v1215
  %1735 = vmatprep.subr.mxu0 0.0
  %1736 = vmatpush1.msra.mxu0 %v1216
  %1737 = vmatprep.subr.mxu0 0.0
  %1738 = vmatpush1.msra.mxu0 %v1217
  %1739 = vmatprep.subr.mxu0 0.0
  %1740 = vmatpush1.msra.mxu0 %v1218
  %1741 = vmatprep.subr.mxu0 0.0
  %1742 = vmatpush1.msra.mxu0 0.0
  %1743 = vmatprep.subr.mxu0 0.0
  %1744 = vmatpush1.msra.mxu0 0.0
  %1745 = vmatprep.subr.mxu0 0.0
  %1746 = vmatpush1.msra.mxu0 0.0
  %1747 = vmatprep.subr.mxu0 0.0
  %1748 = vmatpush1.msra.mxu0 0.0
  %1749 = vmatprep.subr.mxu0 0.0
  %1750 = vmatpush1.msra.mxu0 0.0
  %1751 = vmatprep.subr.mxu0 0.0
  %1752 = vmatpush1.msra.mxu0 0.0
  %1753 = vmatprep.subr.mxu0 0.0
  %1754 = vmatpush1.msra.mxu0 0.0
  %1755 = vmatprep.subr.mxu0 0.0
  %1756 = vmatpush1.msra.mxu0 0.0
  %1757 = vmatprep.subr.mxu0 0.0
  %1758 = vmatpush1.msra.mxu0 0.0
  %1759 = vmatprep.subr.mxu0 0.0
  %1760 = vmatpush1.msra.mxu0 0.0
  %1761 = vmatprep.subr.mxu0 0.0
  %1762 = vmatpush1.msra.mxu0 0.0
  %1763 = vmatprep.subr.mxu0 0.0
  %1764 = vmatpush1.msra.mxu0 0.0
  %1765 = vmatprep.subr.mxu0 0.0
  %1766 = vmatpush1.msra.mxu0 0.0
  %1767 = vmatprep.subr.mxu0 0.0
  %1768 = vmatpush1.msra.mxu0 0.0
  %1769 = vmatprep.subr.mxu0 0.0
  %1770 = vmatpush1.msra.mxu0 0.0
  %1771 = vmatprep.subr.mxu0 0.0
  %1772 = vmatpush1.msra.mxu0 0.0
  %1773 = vmatprep.mubr.f32.mxu0 0.0
  %1774 = vmatmul.mubr.f32.gmra.mrb[0].mxu0 %v1685
  %v1775 = vpop.f32.mrb[0].mxu0
  %v1776 = vadd.f32 0.0, %v1775
  %v1777 = vpop.f32.mrb[0].mxu0
  %1778 = vmatprep.mubr.f32.mxu0 0.0
  %1779 = vmatmul.mubr.f32.gmra.mrb[0].mxu0 %v1686
  %v1780 = vpop.f32.mrb[0].mxu0
  %v1781 = vadd.f32 0.0, %v1780
  %v1782 = vpop.f32.mrb[0].mxu0
  %1783 = vmatprep.mubr.f32.mxu0 0.0
  %1784 = vmatmul.mubr.f32.gmra.mrb[0].mxu0 %v1687
  %v1785 = vpop.f32.mrb[0].mxu0
  %v1786 = vadd.f32 0.0, %v1785
  %v1787 = vpop.f32.mrb[0].mxu0
  %1788 = vmatprep.mubr.f32.mxu0 0.0
  %1789 = vmatmul.mubr.f32.gmra.mrb[0].mxu0 %v1688
  %v1790 = vpop.f32.mrb[0].mxu0
  %v1791 = vadd.f32 0.0, %v1790
  %v1792 = vpop.f32.mrb[0].mxu0
  %1793 = vmatprep.mubr.f32.mxu0 0.0
  %1794 = vmatmul.mubr.f32.gmra.mrb[0].mxu0 %v1689
  %v1795 = vpop.f32.mrb[0].mxu0
  %v1796 = vadd.f32 0.0, %v1795
  %v1797 = vpop.f32.mrb[0].mxu0
  %1798 = vmatprep.mubr.f32.mxu0 0.0
  %1799 = vmatmul.mubr.f32.gmra.mrb[0].mxu0 %v1690
  %v1800 = vpop.f32.mrb[0].mxu0
  %v1801 = vadd.f32 0.0, %v1800
  %v1802 = vpop.f32.mrb[0].mxu0
  %1803 = vmatprep.mubr.f32.mxu0 0.0
  %1804 = vmatmul.mubr.f32.gmra.mrb[0].mxu0 %v1691
  %v1805 = vpop.f32.mrb[0].mxu0
  %v1806 = vadd.f32 0.0, %v1805
  %v1807 = vpop.f32.mrb[0].mxu0
  %1808 = vmatprep.mubr.f32.mxu0 0.0
  %1809 = vmatmul.mubr.f32.gmra.mrb[0].mxu0 %v1692
  %v1810 = vpop.f32.mrb[0].mxu0
  %v1811 = vadd.f32 0.0, %v1810
  %v1812 = vpop.f32.mrb[0].mxu0
  %1813 = vmatprep.mubr.f32.mxu0 0.0
  %1814 = vmatmul.mubr.f32.gmra.mrb[0].mxu0 %v1693
  %v1815 = vpop.f32.mrb[0].mxu0
  %v1816 = vadd.f32 0.0, %v1815
  %v1817 = vpop.f32.mrb[0].mxu0
  %1818 = vmatprep.mubr.f32.mxu0 0.0
  %1819 = vmatmul.mubr.f32.gmra.mrb[0].mxu0 %v1694
  %v1820 = vpop.f32.mrb[0].mxu0
  %v1821 = vadd.f32 0.0, %v1820
  %v1822 = vpop.f32.mrb[0].mxu0
  %1823 = vmatprep.mubr.f32.mxu0 0.0
  %1824 = vmatmul.mubr.f32.gmra.mrb[0].mxu0 %v1695
  %v1825 = vpop.f32.mrb[0].mxu0
  %v1826 = vadd.f32 0.0, %v1825
  %v1827 = vpop.f32.mrb[0].mxu0
  %1828 = vmatprep.mubr.f32.mxu0 0.0
  %1829 = vmatmul.mubr.f32.gmra.mrb[0].mxu0 %v1696
  %v1830 = vpop.f32.mrb[0].mxu0
  %v1831 = vadd.f32 0.0, %v1830
  %v1832 = vpop.f32.mrb[0].mxu0
  %1833 = vmatprep.mubr.f32.mxu0 0.0
  %1834 = vmatmul.mubr.f32.gmra.mrb[0].mxu0 %v1697
  %v1835 = vpop.f32.mrb[0].mxu0
  %v1836 = vadd.f32 0.0, %v1835
  %v1837 = vpop.f32.mrb[0].mxu0
  %1838 = vmatprep.mubr.f32.mxu0 0.0
  %1839 = vmatmul.mubr.f32.gmra.mrb[0].mxu0 %v1698
  %v1840 = vpop.f32.mrb[0].mxu0
  %v1841 = vadd.f32 0.0, %v1840
  %v1842 = vpop.f32.mrb[0].mxu0
  %1843 = vmatprep.mubr.f32.mxu0 0.0
  %1844 = vmatmul.mubr.f32.gmra.mrb[0].mxu0 %v1699
  %v1845 = vpop.f32.mrb[0].mxu0
  %v1846 = vadd.f32 0.0, %v1845
  %v1847 = vpop.f32.mrb[0].mxu0
  %1848 = vmatprep.mubr.f32.mxu0 0.0
  %1849 = vmatmul.mubr.f32.gmra.mrb[0].mxu0 %v1700
  %v1850 = vpop.f32.mrb[0].mxu0
  %v1851 = vadd.f32 0.0, %v1850
  %v1852 = vpop.f32.mrb[0].mxu0
  %1853 = vmatprep.mubr.f32.mxu0 0.0
  %1854 = vmatmul.mubr.f32.gmra.mrb[0].mxu0 %v1701
  %v1855 = vpop.f32.mrb[0].mxu0
  %v1856 = vadd.f32 0.0, %v1855
  %v1857 = vpop.f32.mrb[0].mxu0
  %1858 = vmatprep.mubr.f32.mxu0 0.0
  %1859 = vmatmul.mubr.f32.gmra.mrb[0].mxu0 %v1702
  %v1860 = vpop.f32.mrb[0].mxu0
  %v1861 = vadd.f32 0.0, %v1860
  %v1862 = vpop.f32.mrb[0].mxu0
  %1863 = vmatprep.mubr.f32.mxu0 0.0
  %1864 = vmatmul.mubr.f32.gmra.mrb[0].mxu0 %v1703
  %v1865 = vpop.f32.mrb[0].mxu0
  %v1866 = vadd.f32 0.0, %v1865
  %v1867 = vpop.f32.mrb[0].mxu0
  %1868 = vmatprep.mubr.f32.mxu0 0.0
  %1869 = vmatmul.mubr.f32.gmra.mrb[0].mxu0 %v1704
  %v1870 = vpop.f32.mrb[0].mxu0
  %v1871 = vadd.f32 0.0, %v1870
  %v1872 = vpop.f32.mrb[0].mxu0
  %1873 = vmatprep.mubr.f32.mxu0 0.0
  %1874 = vmatmul.mubr.f32.gmra.mrb[0].mxu0 %v1705
  %v1875 = vpop.f32.mrb[0].mxu0
  %v1876 = vadd.f32 0.0, %v1875
  %v1877 = vpop.f32.mrb[0].mxu0
  %1878 = vmatprep.mubr.f32.mxu0 0.0
  %1879 = vmatmul.mubr.f32.gmra.mrb[0].mxu0 %v1706
  %v1880 = vpop.f32.mrb[0].mxu0
  %v1881 = vadd.f32 0.0, %v1880
  %v1882 = vpop.f32.mrb[0].mxu0
  %1883 = vmatprep.mubr.f32.mxu0 0.0
  %1884 = vmatmul.mubr.f32.gmra.mrb[0].mxu0 %v1707
  %v1885 = vpop.f32.mrb[0].mxu0
  %v1886 = vadd.f32 0.0, %v1885
  %v1887 = vpop.f32.mrb[0].mxu0
  %1888 = vmatprep.mubr.f32.mxu0 0.0
  %1889 = vmatmul.mubr.f32.gmra.mrb[0].mxu0 %v1708
  %v1890 = vpop.f32.mrb[0].mxu0
  %v1891 = vadd.f32 0.0, %v1890
  %v1892 = vpop.f32.mrb[0].mxu0
  %1893 = vdwg.mxu0
  %1895 = vset.pattern.permute.xlu0 0
  %1896 = vperm.xlu0 %1895, %v1179
  %v1897 = vpop.permute.xlu0 %1896
  %1900 = vset.pattern.permute.xlu0 0
  %1901 = vperm.xlu0 %1900, %v1180
  %v1902 = vpop.permute.xlu0 %1901
  %1905 = vset.pattern.permute.xlu0 0
  %1906 = vperm.xlu0 %1905, %v1181
  %v1907 = vpop.permute.xlu0 %1906
  %1910 = vset.pattern.permute.xlu0 0
  %1911 = vperm.xlu0 %1910, %v1182
  %v1912 = vpop.permute.xlu0 %1911
  %1915 = vset.pattern.permute.xlu0 0
  %1916 = vperm.xlu0 %1915, %v1183
  %v1917 = vpop.permute.xlu0 %1916
  %1920 = vset.pattern.permute.xlu0 0
  %1921 = vperm.xlu0 %1920, %v1184
  %v1922 = vpop.permute.xlu0 %1921
  %1925 = vset.pattern.permute.xlu0 0
  %1926 = vperm.xlu0 %1925, %v1185
  %v1927 = vpop.permute.xlu0 %1926
  %1930 = vset.pattern.permute.xlu0 0
  %1931 = vperm.xlu0 %1930, %v1186
  %v1932 = vpop.permute.xlu0 %1931
  %1935 = vset.pattern.permute.xlu0 0
  %1936 = vperm.xlu0 %1935, %v1187
  %v1937 = vpop.permute.xlu0 %1936
  %1940 = vset.pattern.permute.xlu0 0
  %1941 = vperm.xlu0 %1940, %v1188
  %v1942 = vpop.permute.xlu0 %1941
  %1945 = vset.pattern.permute.xlu0 0
  %1946 = vperm.xlu0 %1945, %v1189
  %v1947 = vpop.permute.xlu0 %1946
  %1950 = vset.pattern.permute.xlu0 0
  %1951 = vperm.xlu0 %1950, %v1190
  %v1952 = vpop.permute.xlu0 %1951
  %1955 = vset.pattern.permute.xlu0 0
  %1956 = vperm.xlu0 %1955, %v1191
  %v1957 = vpop.permute.xlu0 %1956
  %1960 = vset.pattern.permute.xlu0 0
  %1961 = vperm.xlu0 %1960, %v1192
  %v1962 = vpop.permute.xlu0 %1961
  %1965 = vset.pattern.permute.xlu0 0
  %1966 = vperm.xlu0 %1965, %v1193
  %v1967 = vpop.permute.xlu0 %1966
  %1970 = vset.pattern.permute.xlu0 0
  %1971 = vperm.xlu0 %1970, %v1194
  %v1972 = vpop.permute.xlu0 %1971
  %1975 = vset.pattern.permute.xlu0 0
  %1976 = vperm.xlu0 %1975, %v1195
  %v1977 = vpop.permute.xlu0 %1976
  %1980 = vset.pattern.permute.xlu0 0
  %1981 = vperm.xlu0 %1980, %v1196
  %v1982 = vpop.permute.xlu0 %1981
  %1985 = vset.pattern.permute.xlu0 0
  %1986 = vperm.xlu0 %1985, %v1197
  %v1987 = vpop.permute.xlu0 %1986
  %1990 = vset.pattern.permute.xlu0 0
  %1991 = vperm.xlu0 %1990, %v1198
  %v1992 = vpop.permute.xlu0 %1991
  %1995 = vset.pattern.permute.xlu0 0
  %1996 = vperm.xlu0 %1995, %v1199
  %v1997 = vpop.permute.xlu0 %1996
  %2000 = vset.pattern.permute.xlu0 0
  %2001 = vperm.xlu0 %2000, %v1200
  %v2002 = vpop.permute.xlu0 %2001
  %2005 = vset.pattern.permute.xlu0 0
  %2006 = vperm.xlu0 %2005, %v1201
  %v2007 = vpop.permute.xlu0 %2006
  %2010 = vset.pattern.permute.xlu0 0
  %2011 = vperm.xlu0 %2010, %v1202
  %v2012 = vpop.permute.xlu0 %2011
  %v2014 = vmul.f32 %v1776, %v1897
  %v2015 = vmul.f32 %v1781, %v1902
  %v2016 = vmul.f32 %v1786, %v1907
  %v2017 = vmul.f32 %v1791, %v1912
  %v2018 = vmul.f32 %v1796, %v1917
  %v2019 = vmul.f32 %v1801, %v1922
  %v2020 = vmul.f32 %v1806, %v1927
  %v2021 = vmul.f32 %v1811, %v1932
  %v2022 = vmul.f32 %v1816, %v1937
  %v2023 = vmul.f32 %v1821, %v1942
  %v2024 = vmul.f32 %v1826, %v1947
  %v2025 = vmul.f32 %v1831, %v1952
  %v2026 = vmul.f32 %v1836, %v1957
  %v2027 = vmul.f32 %v1841, %v1962
  %v2028 = vmul.f32 %v1846, %v1967
  %v2029 = vmul.f32 %v1851, %v1972
  %v2030 = vmul.f32 %v1856, %v1977
  %v2031 = vmul.f32 %v1861, %v1982
  %v2032 = vmul.f32 %v1866, %v1987
  %v2033 = vmul.f32 %v1871, %v1992
  %v2034 = vmul.f32 %v1876, %v1997
  %v2035 = vmul.f32 %v1881, %v2002
  %v2036 = vmul.f32 %v1886, %v2007
  %v2037 = vmul.f32 %v1891, %v2012
  %2038 = vst.msk [vmem:[%s25 + $0x40] sm:$0xff] %vm916, %v2014
  %2039 = vst.msk [vmem:[%s25 + $0x48] sm:$0xff] %vm916, %v2015
  %2040 = vst.msk [vmem:[%s25 + $0x50] sm:$0xff] %vm916, %v2016
  %2041 = vst.msk [vmem:[%s25 + $0x58] sm:$0xff] %vm916, %v2017
  %2042 = vst.msk [vmem:[%s25 + $0x60] sm:$0xff] %vm916, %v2018
  %2043 = vst.msk [vmem:[%s25 + $0x68] sm:$0xff] %vm916, %v2019
  %2044 = vst.msk [vmem:[%s25 + $0x70] sm:$0xff] %vm916, %v2020
  %2045 = vst.msk [vmem:[%s25 + $0x78] sm:$0xff] %vm916, %v2021
  %2046 = vst.msk [vmem:[%s25 + $0x80] sm:$0xff] %vm916, %v2022
  %2047 = vst.msk [vmem:[%s25 + $0x88] sm:$0xff] %vm916, %v2023
  %2048 = vst.msk [vmem:[%s25 + $0x90] sm:$0xff] %vm916, %v2024
  %2049 = vst.msk [vmem:[%s25 + $0x98] sm:$0xff] %vm916, %v2025
  %2050 = vst.msk [vmem:[%s25 + $0xa0] sm:$0xff] %vm916, %v2026
  %2051 = vst.msk [vmem:[%s25 + $0xa8] sm:$0xff] %vm916, %v2027
  %2052 = vst.msk [vmem:[%s25 + $0xb0] sm:$0xff] %vm916, %v2028
  %2053 = vst.msk [vmem:[%s25 + $0xb8] sm:$0xff] %vm916, %v2029
  %2054 = vst.msk [vmem:[%s25 + $0xc0] sm:$0xff] %vm916, %v2030
  %2055 = vst.msk [vmem:[%s25 + $0xc8] sm:$0xff] %vm916, %v2031
  %2056 = vst.msk [vmem:[%s25 + $0xd0] sm:$0xff] %vm916, %v2032
  %2057 = vst.msk [vmem:[%s25 + $0xd8] sm:$0xff] %vm916, %v2033
  %2058 = vst.msk [vmem:[%s25 + $0xe0] sm:$0xff] %vm916, %v2034
  %2059 = vst.msk [vmem:[%s25 + $0xe8] sm:$0xff] %vm916, %v2035
  %2060 = vst.msk [vmem:[%s25 + $0xf0] sm:$0xff] %vm916, %v2036
  %2061 = vst.msk [vmem:[%s25 + $0xf8] sm:$0xff] %vm916, %v2037
  %v2062 = vld [vmem:[%s10] sm:$0xff]
  %v2063 = vld [vmem:[%s10 + $0x8] sm:$0xff]
  %v2064 = vld [vmem:[%s10 + $0x10] sm:$0xff]
  %v2065 = vld [vmem:[%s10 + $0x18] sm:$0xff]
  %v2066 = vld [vmem:[%s10 + $0x20] sm:$0xff]
  %v2067 = vld [vmem:[%s10 + $0x28] sm:$0xff]
  %v2068 = vld [vmem:[%s10 + $0x30] sm:$0xff]
  %v2069 = vld [vmem:[%s10 + $0x38] sm:$0xff]
  %v2070 = vld [vmem:[%s10 + $0x40] sm:$0xff]
  %v2071 = vld [vmem:[%s10 + $0x48] sm:$0xff]
  %v2072 = vld [vmem:[%s10 + $0x50] sm:$0xff]
  %v2073 = vld [vmem:[%s10 + $0x58] sm:$0xff]
  %v2074 = vld [vmem:[%s10 + $0x60] sm:$0xff]
  %v2075 = vld [vmem:[%s10 + $0x68] sm:$0xff]
  %v2076 = vld [vmem:[%s10 + $0x70] sm:$0xff]
  %v2077 = vld [vmem:[%s10 + $0x78] sm:$0xff]
  %2078 = vmatprep.subr.mxu0 0.0
  %2079 = vmatpush1.msra.mxu0 %v2062
  %2080 = vmatprep.subr.mxu0 0.0
  %2081 = vmatpush1.msra.mxu0 %v2063
  %2082 = vmatprep.subr.mxu0 0.0
  %2083 = vmatpush1.msra.mxu0 %v2064
  %2084 = vmatprep.subr.mxu0 0.0
  %2085 = vmatpush1.msra.mxu0 %v2065
  %2086 = vmatprep.subr.mxu0 0.0
  %2087 = vmatpush1.msra.mxu0 %v2066
  %2088 = vmatprep.subr.mxu0 0.0
  %2089 = vmatpush1.msra.mxu0 %v2067
  %2090 = vmatprep.subr.mxu0 0.0
  %2091 = vmatpush1.msra.mxu0 %v2068
  %2092 = vmatprep.subr.mxu0 0.0
  %2093 = vmatpush1.msra.mxu0 %v2069
  %2094 = vmatprep.subr.mxu0 0.0
  %2095 = vmatpush1.msra.mxu0 %v2070
  %2096 = vmatprep.subr.mxu0 0.0
  %2097 = vmatpush1.msra.mxu0 %v2071
  %2098 = vmatprep.subr.mxu0 0.0
  %2099 = vmatpush1.msra.mxu0 %v2072
  %2100 = vmatprep.subr.mxu0 0.0
  %2101 = vmatpush1.msra.mxu0 %v2073
  %2102 = vmatprep.subr.mxu0 0.0
  %2103 = vmatpush1.msra.mxu0 %v2074
  %2104 = vmatprep.subr.mxu0 0.0
  %2105 = vmatpush1.msra.mxu0 %v2075
  %2106 = vmatprep.subr.mxu0 0.0
  %2107 = vmatpush1.msra.mxu0 %v2076
  %2108 = vmatprep.subr.mxu0 0.0
  %2109 = vmatpush1.msra.mxu0 %v2077
  %2110 = vmatprep.subr.mxu0 0.0
  %2111 = vmatpush1.msra.mxu0 0.0
  %2112 = vmatprep.subr.mxu0 0.0
  %2113 = vmatpush1.msra.mxu0 0.0
  %2114 = vmatprep.subr.mxu0 0.0
  %2115 = vmatpush1.msra.mxu0 0.0
  %2116 = vmatprep.subr.mxu0 0.0
  %2117 = vmatpush1.msra.mxu0 0.0
  %2118 = vmatprep.subr.mxu0 0.0
  %2119 = vmatpush1.msra.mxu0 0.0
  %2120 = vmatprep.subr.mxu0 0.0
  %2121 = vmatpush1.msra.mxu0 0.0
  %2122 = vmatprep.subr.mxu0 0.0
  %2123 = vmatpush1.msra.mxu0 0.0
  %2124 = vmatprep.subr.mxu0 0.0
  %2125 = vmatpush1.msra.mxu0 0.0
  %2126 = vmatprep.subr.mxu0 0.0
  %2127 = vmatpush1.msra.mxu0 0.0
  %2128 = vmatprep.subr.mxu0 0.0
  %2129 = vmatpush1.msra.mxu0 0.0
  %2130 = vmatprep.subr.mxu0 0.0
  %2131 = vmatpush1.msra.mxu0 0.0
  %2132 = vmatprep.subr.mxu0 0.0
  %2133 = vmatpush1.msra.mxu0 0.0
  %2134 = vmatprep.subr.mxu0 0.0
  %2135 = vmatpush1.msra.mxu0 0.0
  %2136 = vmatprep.subr.mxu0 0.0
  %2137 = vmatpush1.msra.mxu0 0.0
  %2138 = vmatprep.subr.mxu0 0.0
  %2139 = vmatpush1.msra.mxu0 0.0
  %2140 = vmatprep.subr.mxu0 0.0
  %2141 = vmatpush1.msra.mxu0 0.0
  %2142 = vmatprep.mubr.f32.mxu0 0.0
  %2143 = vmatmul.mubr.f32.gmra.mrb[0].mxu0 %v1128
  %v2144 = vpop.f32.mrb[0].mxu0
  %v2145 = vadd.f32 0.0, %v2144
  %v2146 = vpop.f32.mrb[0].mxu0
  %2147 = vdwg.mxu0
  %v2148 = vld [vmem:[%s11] sm:$0xff]
  %v2149 = vld [vmem:[%s11 + $0x8] sm:$0xff]
  %v2150 = vld [vmem:[%s11 + $0x10] sm:$0xff]
  %v2151 = vld [vmem:[%s11 + $0x18] sm:$0xff]
  %v2152 = vld [vmem:[%s11 + $0x20] sm:$0xff]
  %v2153 = vld [vmem:[%s11 + $0x28] sm:$0xff]
  %v2154 = vld [vmem:[%s11 + $0x30] sm:$0xff]
  %v2155 = vld [vmem:[%s11 + $0x38] sm:$0xff]
  %v2156 = vld [vmem:[%s11 + $0x40] sm:$0xff]
  %v2157 = vld [vmem:[%s11 + $0x48] sm:$0xff]
  %v2158 = vld [vmem:[%s11 + $0x50] sm:$0xff]
  %v2159 = vld [vmem:[%s11 + $0x58] sm:$0xff]
  %v2160 = vld [vmem:[%s11 + $0x60] sm:$0xff]
  %v2161 = vld [vmem:[%s11 + $0x68] sm:$0xff]
  %v2162 = vld [vmem:[%s11 + $0x70] sm:$0xff]
  %v2163 = vld [vmem:[%s11 + $0x78] sm:$0xff]
  %v2164 = vld [vmem:[%s11 + $0x80] sm:$0xff]
  %v2165 = vld [vmem:[%s11 + $0x88] sm:$0xff]
  %v2166 = vld [vmem:[%s11 + $0x90] sm:$0xff]
  %v2167 = vld [vmem:[%s11 + $0x98] sm:$0xff]
  %v2168 = vld [vmem:[%s11 + $0xa0] sm:$0xff]
  %v2169 = vld [vmem:[%s11 + $0xa8] sm:$0xff]
  %v2170 = vld [vmem:[%s11 + $0xb0] sm:$0xff]
  %v2171 = vld [vmem:[%s11 + $0xb8] sm:$0xff]
  %v2172 = vld [vmem:[%s11 + $0xc0] sm:$0xff]
  %v2173 = vld [vmem:[%s11 + $0xc8] sm:$0xff]
  %v2174 = vld [vmem:[%s11 + $0xd0] sm:$0xff]
  %v2175 = vld [vmem:[%s11 + $0xd8] sm:$0xff]
  %v2176 = vld [vmem:[%s11 + $0xe0] sm:$0xff]
  %v2177 = vld [vmem:[%s11 + $0xe8] sm:$0xff]
  %v2178 = vld [vmem:[%s11 + $0xf0] sm:$0xff]
  %v2179 = vld [vmem:[%s11 + $0xf8] sm:$0xff]
  %v2180 = vld [vmem:[%s11 + $0x100] sm:$0xff]
  %v2181 = vld [vmem:[%s11 + $0x108] sm:$0xff]
  %v2182 = vld [vmem:[%s11 + $0x110] sm:$0xff]
  %v2183 = vld [vmem:[%s11 + $0x118] sm:$0xff]
  %v2184 = vld [vmem:[%s11 + $0x120] sm:$0xff]
  %v2185 = vld [vmem:[%s11 + $0x128] sm:$0xff]
  %v2186 = vld [vmem:[%s11 + $0x130] sm:$0xff]
  %v2187 = vld [vmem:[%s11 + $0x138] sm:$0xff]
  %v2188 = vld [vmem:[%s11 + $0x140] sm:$0xff]
  %v2189 = vld [vmem:[%s11 + $0x148] sm:$0xff]
  %v2190 = vld [vmem:[%s11 + $0x150] sm:$0xff]
  %v2191 = vld [vmem:[%s11 + $0x158] sm:$0xff]
  %v2192 = vld [vmem:[%s11 + $0x160] sm:$0xff]
  %v2193 = vld [vmem:[%s11 + $0x168] sm:$0xff]
  %v2194 = vld [vmem:[%s11 + $0x170] sm:$0xff]
  %v2195 = vld [vmem:[%s11 + $0x178] sm:$0xff]
  %v2196 = vld [vmem:[%s12] sm:$0xff]
  %v2197 = vld [vmem:[%s12 + $0x8] sm:$0xff]
  %v2198 = vld [vmem:[%s12 + $0x10] sm:$0xff]
  %v2199 = vld [vmem:[%s12 + $0x18] sm:$0xff]
  %v2200 = vld [vmem:[%s12 + $0x20] sm:$0xff]
  %v2201 = vld [vmem:[%s12 + $0x28] sm:$0xff]
  %v2202 = vld [vmem:[%s12 + $0x30] sm:$0xff]
  %v2203 = vld [vmem:[%s12 + $0x38] sm:$0xff]
  %v2204 = vld [vmem:[%s12 + $0x40] sm:$0xff]
  %v2205 = vld [vmem:[%s12 + $0x48] sm:$0xff]
  %v2206 = vld [vmem:[%s12 + $0x50] sm:$0xff]
  %v2207 = vld [vmem:[%s12 + $0x58] sm:$0xff]
  %v2208 = vld [vmem:[%s12 + $0x60] sm:$0xff]
  %v2209 = vld [vmem:[%s12 + $0x68] sm:$0xff]
  %v2210 = vld [vmem:[%s12 + $0x70] sm:$0xff]
  %v2211 = vld [vmem:[%s12 + $0x78] sm:$0xff]
  %v2212 = vld [vmem:[%s12 + $0x80] sm:$0xff]
  %v2213 = vld [vmem:[%s12 + $0x88] sm:$0xff]
  %v2214 = vld [vmem:[%s12 + $0x90] sm:$0xff]
  %v2215 = vld [vmem:[%s12 + $0x98] sm:$0xff]
  %v2216 = vld [vmem:[%s12 + $0xa0] sm:$0xff]
  %v2217 = vld [vmem:[%s12 + $0xa8] sm:$0xff]
  %v2218 = vld [vmem:[%s12 + $0xb0] sm:$0xff]
  %v2219 = vld [vmem:[%s12 + $0xb8] sm:$0xff]
  %v2220 = vld [vmem:[%s12 + $0xc0] sm:$0xff]
  %v2221 = vld [vmem:[%s12 + $0xc8] sm:$0xff]
  %v2222 = vld [vmem:[%s12 + $0xd0] sm:$0xff]
  %v2223 = vld [vmem:[%s12 + $0xd8] sm:$0xff]
  %v2224 = vld [vmem:[%s12 + $0xe0] sm:$0xff]
  %v2225 = vld [vmem:[%s12 + $0xe8] sm:$0xff]
  %v2226 = vld [vmem:[%s12 + $0xf0] sm:$0xff]
  %v2227 = vld [vmem:[%s12 + $0xf8] sm:$0xff]
  %v2228 = vld [vmem:[%s12 + $0x100] sm:$0xff]
  %v2229 = vld [vmem:[%s12 + $0x108] sm:$0xff]
  %v2230 = vld [vmem:[%s12 + $0x110] sm:$0xff]
  %v2231 = vld [vmem:[%s12 + $0x118] sm:$0xff]
  %v2232 = vld [vmem:[%s12 + $0x120] sm:$0xff]
  %v2233 = vld [vmem:[%s12 + $0x128] sm:$0xff]
  %v2234 = vld [vmem:[%s12 + $0x130] sm:$0xff]
  %v2235 = vld [vmem:[%s12 + $0x138] sm:$0xff]
  %v2236 = vld [vmem:[%s12 + $0x140] sm:$0xff]
  %v2237 = vld [vmem:[%s12 + $0x148] sm:$0xff]
  %v2238 = vld [vmem:[%s12 + $0x150] sm:$0xff]
  %v2239 = vld [vmem:[%s12 + $0x158] sm:$0xff]
  %v2240 = vld [vmem:[%s12 + $0x160] sm:$0xff]
  %v2241 = vld [vmem:[%s12 + $0x168] sm:$0xff]
  %v2242 = vld [vmem:[%s12 + $0x170] sm:$0xff]
  %v2243 = vld [vmem:[%s12 + $0x178] sm:$0xff]
  %v2244 = vld [vmem:[%s13] sm:$0xff]
  %v2245 = vld [vmem:[%s13 + $0x8] sm:$0xff]
  %v2246 = vld [vmem:[%s13 + $0x10] sm:$0xff]
  %v2247 = vld [vmem:[%s13 + $0x18] sm:$0xff]
  %v2248 = vld [vmem:[%s13 + $0x20] sm:$0xff]
  %v2249 = vld [vmem:[%s13 + $0x28] sm:$0xff]
  %v2250 = vld [vmem:[%s13 + $0x30] sm:$0xff]
  %v2251 = vld [vmem:[%s13 + $0x38] sm:$0xff]
  %v2252 = vld [vmem:[%s13 + $0x40] sm:$0xff]
  %v2253 = vld [vmem:[%s13 + $0x48] sm:$0xff]
  %v2254 = vld [vmem:[%s13 + $0x50] sm:$0xff]
  %v2255 = vld [vmem:[%s13 + $0x58] sm:$0xff]
  %v2256 = vld [vmem:[%s13 + $0x60] sm:$0xff]
  %v2257 = vld [vmem:[%s13 + $0x68] sm:$0xff]
  %v2258 = vld [vmem:[%s13 + $0x70] sm:$0xff]
  %v2259 = vld [vmem:[%s13 + $0x78] sm:$0xff]
  %v2260 = vld [vmem:[%s13 + $0x80] sm:$0xff]
  %v2261 = vld [vmem:[%s13 + $0x88] sm:$0xff]
  %v2262 = vld [vmem:[%s13 + $0x90] sm:$0xff]
  %v2263 = vld [vmem:[%s13 + $0x98] sm:$0xff]
  %v2264 = vld [vmem:[%s13 + $0xa0] sm:$0xff]
  %v2265 = vld [vmem:[%s13 + $0xa8] sm:$0xff]
  %v2266 = vld [vmem:[%s13 + $0xb0] sm:$0xff]
  %v2267 = vld [vmem:[%s13 + $0xb8] sm:$0xff]
  %v2268 = vld [vmem:[%s13 + $0xc0] sm:$0xff]
  %v2269 = vld [vmem:[%s13 + $0xc8] sm:$0xff]
  %v2270 = vld [vmem:[%s13 + $0xd0] sm:$0xff]
  %v2271 = vld [vmem:[%s13 + $0xd8] sm:$0xff]
  %v2272 = vld [vmem:[%s13 + $0xe0] sm:$0xff]
  %v2273 = vld [vmem:[%s13 + $0xe8] sm:$0xff]
  %v2274 = vld [vmem:[%s13 + $0xf0] sm:$0xff]
  %v2275 = vld [vmem:[%s13 + $0xf8] sm:$0xff]
  %v2276 = vld [vmem:[%s13 + $0x100] sm:$0xff]
  %v2277 = vld [vmem:[%s13 + $0x108] sm:$0xff]
  %v2278 = vld [vmem:[%s13 + $0x110] sm:$0xff]
  %v2279 = vld [vmem:[%s13 + $0x118] sm:$0xff]
  %v2280 = vld [vmem:[%s13 + $0x120] sm:$0xff]
  %v2281 = vld [vmem:[%s13 + $0x128] sm:$0xff]
  %v2282 = vld [vmem:[%s13 + $0x130] sm:$0xff]
  %v2283 = vld [vmem:[%s13 + $0x138] sm:$0xff]
  %v2284 = vld [vmem:[%s13 + $0x140] sm:$0xff]
  %v2285 = vld [vmem:[%s13 + $0x148] sm:$0xff]
  %v2286 = vld [vmem:[%s13 + $0x150] sm:$0xff]
  %v2287 = vld [vmem:[%s13 + $0x158] sm:$0xff]
  %v2288 = vld [vmem:[%s13 + $0x160] sm:$0xff]
  %v2289 = vld [vmem:[%s13 + $0x168] sm:$0xff]
  %v2290 = vld [vmem:[%s13 + $0x170] sm:$0xff]
  %v2291 = vld [vmem:[%s13 + $0x178] sm:$0xff]
  %v2292 = vld [vmem:[%s14] sm:$0xff]
  %v2293 = vld [vmem:[%s14 + $0x8] sm:$0xff]
  %v2294 = vld [vmem:[%s14 + $0x10] sm:$0xff]
  %v2295 = vld [vmem:[%s14 + $0x18] sm:$0xff]
  %2297 = vset.pattern.permute.xlu0 0
  %2298 = vperm.xlu0 %2297, %v2196
  %v2299 = vpop.permute.xlu0 %2298
  %2302 = vset.pattern.permute.xlu0 0
  %2303 = vperm.xlu0 %2302, %v2197
  %v2304 = vpop.permute.xlu0 %2303
  %2307 = vset.pattern.permute.xlu0 0
  %2308 = vperm.xlu0 %2307, %v2198
  %v2309 = vpop.permute.xlu0 %2308
  %2312 = vset.pattern.permute.xlu0 0
  %2313 = vperm.xlu0 %2312, %v2199
  %v2314 = vpop.permute.xlu0 %2313
  %2317 = vset.pattern.permute.xlu0 0
  %2318 = vperm.xlu0 %2317, %v2200
  %v2319 = vpop.permute.xlu0 %2318
  %2322 = vset.pattern.permute.xlu0 0
  %2323 = vperm.xlu0 %2322, %v2201
  %v2324 = vpop.permute.xlu0 %2323
  %2327 = vset.pattern.permute.xlu0 0
  %2328 = vperm.xlu0 %2327, %v2202
  %v2329 = vpop.permute.xlu0 %2328
  %2332 = vset.pattern.permute.xlu0 0
  %2333 = vperm.xlu0 %2332, %v2203
  %v2334 = vpop.permute.xlu0 %2333
  %2337 = vset.pattern.permute.xlu0 0
  %2338 = vperm.xlu0 %2337, %v2204
  %v2339 = vpop.permute.xlu0 %2338
  %2342 = vset.pattern.permute.xlu0 0
  %2343 = vperm.xlu0 %2342, %v2205
  %v2344 = vpop.permute.xlu0 %2343
  %2347 = vset.pattern.permute.xlu0 0
  %2348 = vperm.xlu0 %2347, %v2206
  %v2349 = vpop.permute.xlu0 %2348
  %2352 = vset.pattern.permute.xlu0 0
  %2353 = vperm.xlu0 %2352, %v2207
  %v2354 = vpop.permute.xlu0 %2353
  %2357 = vset.pattern.permute.xlu0 0
  %2358 = vperm.xlu0 %2357, %v2208
  %v2359 = vpop.permute.xlu0 %2358
  %2362 = vset.pattern.permute.xlu0 0
  %2363 = vperm.xlu0 %2362, %v2209
  %v2364 = vpop.permute.xlu0 %2363
  %2367 = vset.pattern.permute.xlu0 0
  %2368 = vperm.xlu0 %2367, %v2210
  %v2369 = vpop.permute.xlu0 %2368
  %2372 = vset.pattern.permute.xlu0 0
  %2373 = vperm.xlu0 %2372, %v2211
  %v2374 = vpop.permute.xlu0 %2373
  %2377 = vset.pattern.permute.xlu0 0
  %2378 = vperm.xlu0 %2377, %v2212
  %v2379 = vpop.permute.xlu0 %2378
  %2382 = vset.pattern.permute.xlu0 0
  %2383 = vperm.xlu0 %2382, %v2213
  %v2384 = vpop.permute.xlu0 %2383
  %2387 = vset.pattern.permute.xlu0 0
  %2388 = vperm.xlu0 %2387, %v2214
  %v2389 = vpop.permute.xlu0 %2388
  %2392 = vset.pattern.permute.xlu0 0
  %2393 = vperm.xlu0 %2392, %v2215
  %v2394 = vpop.permute.xlu0 %2393
  %2397 = vset.pattern.permute.xlu0 0
  %2398 = vperm.xlu0 %2397, %v2216
  %v2399 = vpop.permute.xlu0 %2398
  %2402 = vset.pattern.permute.xlu0 0
  %2403 = vperm.xlu0 %2402, %v2217
  %v2404 = vpop.permute.xlu0 %2403
  %2407 = vset.pattern.permute.xlu0 0
  %2408 = vperm.xlu0 %2407, %v2218
  %v2409 = vpop.permute.xlu0 %2408
  %2412 = vset.pattern.permute.xlu0 0
  %2413 = vperm.xlu0 %2412, %v2219
  %v2414 = vpop.permute.xlu0 %2413
  %2417 = vset.pattern.permute.xlu0 0
  %2418 = vperm.xlu0 %2417, %v2220
  %v2419 = vpop.permute.xlu0 %2418
  %2422 = vset.pattern.permute.xlu0 0
  %2423 = vperm.xlu0 %2422, %v2221
  %v2424 = vpop.permute.xlu0 %2423
  %2427 = vset.pattern.permute.xlu0 0
  %2428 = vperm.xlu0 %2427, %v2222
  %v2429 = vpop.permute.xlu0 %2428
  %2432 = vset.pattern.permute.xlu0 0
  %2433 = vperm.xlu0 %2432, %v2223
  %v2434 = vpop.permute.xlu0 %2433
  %2437 = vset.pattern.permute.xlu0 0
  %2438 = vperm.xlu0 %2437, %v2224
  %v2439 = vpop.permute.xlu0 %2438
  %2442 = vset.pattern.permute.xlu0 0
  %2443 = vperm.xlu0 %2442, %v2225
  %v2444 = vpop.permute.xlu0 %2443
  %2447 = vset.pattern.permute.xlu0 0
  %2448 = vperm.xlu0 %2447, %v2226
  %v2449 = vpop.permute.xlu0 %2448
  %2452 = vset.pattern.permute.xlu0 0
  %2453 = vperm.xlu0 %2452, %v2227
  %v2454 = vpop.permute.xlu0 %2453
  %2457 = vset.pattern.permute.xlu0 0
  %2458 = vperm.xlu0 %2457, %v2228
  %v2459 = vpop.permute.xlu0 %2458
  %2462 = vset.pattern.permute.xlu0 0
  %2463 = vperm.xlu0 %2462, %v2229
  %v2464 = vpop.permute.xlu0 %2463
  %2467 = vset.pattern.permute.xlu0 0
  %2468 = vperm.xlu0 %2467, %v2230
  %v2469 = vpop.permute.xlu0 %2468
  %2472 = vset.pattern.permute.xlu0 0
  %2473 = vperm.xlu0 %2472, %v2231
  %v2474 = vpop.permute.xlu0 %2473
  %2477 = vset.pattern.permute.xlu0 0
  %2478 = vperm.xlu0 %2477, %v2232
  %v2479 = vpop.permute.xlu0 %2478
  %2482 = vset.pattern.permute.xlu0 0
  %2483 = vperm.xlu0 %2482, %v2233
  %v2484 = vpop.permute.xlu0 %2483
  %2487 = vset.pattern.permute.xlu0 0
  %2488 = vperm.xlu0 %2487, %v2234
  %v2489 = vpop.permute.xlu0 %2488
  %2492 = vset.pattern.permute.xlu0 0
  %2493 = vperm.xlu0 %2492, %v2235
  %v2494 = vpop.permute.xlu0 %2493
  %2497 = vset.pattern.permute.xlu0 0
  %2498 = vperm.xlu0 %2497, %v2236
  %v2499 = vpop.permute.xlu0 %2498
  %2502 = vset.pattern.permute.xlu0 0
  %2503 = vperm.xlu0 %2502, %v2237
  %v2504 = vpop.permute.xlu0 %2503
  %2507 = vset.pattern.permute.xlu0 0
  %2508 = vperm.xlu0 %2507, %v2238
  %v2509 = vpop.permute.xlu0 %2508
  %2512 = vset.pattern.permute.xlu0 0
  %2513 = vperm.xlu0 %2512, %v2239
  %v2514 = vpop.permute.xlu0 %2513
  %2517 = vset.pattern.permute.xlu0 0
  %2518 = vperm.xlu0 %2517, %v2240
  %v2519 = vpop.permute.xlu0 %2518
  %2522 = vset.pattern.permute.xlu0 0
  %2523 = vperm.xlu0 %2522, %v2241
  %v2524 = vpop.permute.xlu0 %2523
  %2527 = vset.pattern.permute.xlu0 0
  %2528 = vperm.xlu0 %2527, %v2242
  %v2529 = vpop.permute.xlu0 %2528
  %2532 = vset.pattern.permute.xlu0 0
  %2533 = vperm.xlu0 %2532, %v2243
  %v2534 = vpop.permute.xlu0 %2533
  %v2537 = vsel %vm214, %v2148, 0
  %v2540 = vsel %vm214, %v2149, 0
  %v2543 = vsel %vm214, %v2150, 0
  %v2546 = vsel %vm214, %v2151, 0
  %v2549 = vsel %vm214, %v2152, 0
  %v2552 = vsel %vm214, %v2153, 0
  %v2555 = vsel %vm214, %v2154, 0
  %v2558 = vsel %vm214, %v2155, 0
  %v2561 = vsel %vm214, %v2156, 0
  %v2564 = vsel %vm214, %v2157, 0
  %v2567 = vsel %vm214, %v2158, 0
  %v2570 = vsel %vm214, %v2159, 0
  %v2573 = vsel %vm214, %v2160, 0
  %v2576 = vsel %vm214, %v2161, 0
  %v2579 = vsel %vm214, %v2162, 0
  %v2582 = vsel %vm214, %v2163, 0
  %v2585 = vsel %vm214, %v2164, 0
  %v2588 = vsel %vm214, %v2165, 0
  %v2591 = vsel %vm214, %v2166, 0
  %v2594 = vsel %vm214, %v2167, 0
  %v2597 = vsel %vm214, %v2168, 0
  %v2600 = vsel %vm214, %v2169, 0
  %v2603 = vsel %vm214, %v2170, 0
  %v2606 = vsel %vm214, %v2171, 0
  %v2609 = vsel %vm214, %v2172, 0
  %v2612 = vsel %vm214, %v2173, 0
  %v2615 = vsel %vm214, %v2174, 0
  %v2618 = vsel %vm214, %v2175, 0
  %v2621 = vsel %vm214, %v2176, 0
  %v2624 = vsel %vm214, %v2177, 0
  %v2627 = vsel %vm214, %v2178, 0
  %v2630 = vsel %vm214, %v2179, 0
  %v2633 = vsel %vm214, %v2180, 0
  %v2636 = vsel %vm214, %v2181, 0
  %v2639 = vsel %vm214, %v2182, 0
  %v2642 = vsel %vm214, %v2183, 0
  %v2645 = vsel %vm214, %v2184, 0
  %v2648 = vsel %vm214, %v2185, 0
  %v2651 = vsel %vm214, %v2186, 0
  %v2654 = vsel %vm214, %v2187, 0
  %v2657 = vsel %vm214, %v2188, 0
  %v2660 = vsel %vm214, %v2189, 0
  %v2663 = vsel %vm214, %v2190, 0
  %v2666 = vsel %vm214, %v2191, 0
  %v2669 = vsel %vm214, %v2192, 0
  %v2672 = vsel %vm214, %v2193, 0
  %v2675 = vsel %vm214, %v2194, 0
  %v2678 = vsel %vm214, %v2195, 0
  %v2681 = vsel %vm239, %v2145, 0
  %2683 = vmatprep.subr.mxu0 0.0
  %2684 = vmatpush1.msra.mxu0 %v2681
  %2685 = vmatprep.subr.mxu0 0.0
  %2686 = vmatpush1.msra.mxu0 0.0
  %2687 = vmatprep.subr.mxu0 0.0
  %2688 = vmatpush1.msra.mxu0 0.0
  %2689 = vmatprep.subr.mxu0 0.0
  %2690 = vmatpush1.msra.mxu0 0.0
  %2691 = vmatprep.subr.mxu0 0.0
  %2692 = vmatpush1.msra.mxu0 0.0
  %2693 = vmatprep.subr.mxu0 0.0
  %2694 = vmatpush1.msra.mxu0 0.0
  %2695 = vmatprep.subr.mxu0 0.0
  %2696 = vmatpush1.msra.mxu0 0.0
  %2697 = vmatprep.subr.mxu0 0.0
  %2698 = vmatpush1.msra.mxu0 0.0
  %2699 = vmatprep.subr.mxu0 0.0
  %2700 = vmatpush1.msra.mxu0 0.0
  %2701 = vmatprep.subr.mxu0 0.0
  %2702 = vmatpush1.msra.mxu0 0.0
  %2703 = vmatprep.subr.mxu0 0.0
  %2704 = vmatpush1.msra.mxu0 0.0
  %2705 = vmatprep.subr.mxu0 0.0
  %2706 = vmatpush1.msra.mxu0 0.0
  %2707 = vmatprep.subr.mxu0 0.0
  %2708 = vmatpush1.msra.mxu0 0.0
  %2709 = vmatprep.subr.mxu0 0.0
  %2710 = vmatpush1.msra.mxu0 0.0
  %2711 = vmatprep.subr.mxu0 0.0
  %2712 = vmatpush1.msra.mxu0 0.0
  %2713 = vmatprep.subr.mxu0 0.0
  %2714 = vmatpush1.msra.mxu0 0.0
  %2715 = vmatprep.subr.mxu0 0.0
  %2716 = vmatpush1.msra.mxu0 0.0
  %2717 = vmatprep.subr.mxu0 0.0
  %2718 = vmatpush1.msra.mxu0 0.0
  %2719 = vmatprep.subr.mxu0 0.0
  %2720 = vmatpush1.msra.mxu0 0.0
  %2721 = vmatprep.subr.mxu0 0.0
  %2722 = vmatpush1.msra.mxu0 0.0
  %2723 = vmatprep.subr.mxu0 0.0
  %2724 = vmatpush1.msra.mxu0 0.0
  %2725 = vmatprep.subr.mxu0 0.0
  %2726 = vmatpush1.msra.mxu0 0.0
  %2727 = vmatprep.subr.mxu0 0.0
  %2728 = vmatpush1.msra.mxu0 0.0
  %2729 = vmatprep.subr.mxu0 0.0
  %2730 = vmatpush1.msra.mxu0 0.0
  %2731 = vmatprep.subr.mxu0 0.0
  %2732 = vmatpush1.msra.mxu0 0.0
  %2733 = vmatprep.subr.mxu0 0.0
  %2734 = vmatpush1.msra.mxu0 0.0
  %2735 = vmatprep.subr.mxu0 0.0
  %2736 = vmatpush1.msra.mxu0 0.0
  %2737 = vmatprep.subr.mxu0 0.0
  %2738 = vmatpush1.msra.mxu0 0.0
  %2739 = vmatprep.subr.mxu0 0.0
  %2740 = vmatpush1.msra.mxu0 0.0
  %2741 = vmatprep.subr.mxu0 0.0
  %2742 = vmatpush1.msra.mxu0 0.0
  %2743 = vmatprep.subr.mxu0 0.0
  %2744 = vmatpush1.msra.mxu0 0.0
  %2745 = vmatprep.subr.mxu0 0.0
  %2746 = vmatpush1.msra.mxu0 0.0
  %2747 = vmatprep.mubr.f32.mxu0 0.0
  %2748 = vmatmul.mubr.f32.gmra.mrb[0].mxu0 %v2537
  %v2749 = vpop.f32.mrb[0].mxu0
  %v2750 = vadd.f32 %v2299, %v2749
  %v2751 = vpop.f32.mrb[0].mxu0
  %2752 = vmatprep.mubr.f32.mxu0 0.0
  %2753 = vmatmul.mubr.f32.gmra.mrb[0].mxu0 %v2540
  %v2754 = vpop.f32.mrb[0].mxu0
  %v2755 = vadd.f32 %v2304, %v2754
  %v2756 = vpop.f32.mrb[0].mxu0
  %2757 = vmatprep.mubr.f32.mxu0 0.0
  %2758 = vmatmul.mubr.f32.gmra.mrb[0].mxu0 %v2543
  %v2759 = vpop.f32.mrb[0].mxu0
  %v2760 = vadd.f32 %v2309, %v2759
  %v2761 = vpop.f32.mrb[0].mxu0
  %2762 = vmatprep.mubr.f32.mxu0 0.0
  %2763 = vmatmul.mubr.f32.gmra.mrb[0].mxu0 %v2546
  %v2764 = vpop.f32.mrb[0].mxu0
  %v2765 = vadd.f32 %v2314, %v2764
  %v2766 = vpop.f32.mrb[0].mxu0
  %2767 = vmatprep.mubr.f32.mxu0 0.0
  %2768 = vmatmul.mubr.f32.gmra.mrb[0].mxu0 %v2549
  %v2769 = vpop.f32.mrb[0].mxu0
  %v2770 = vadd.f32 %v2319, %v2769
  %v2771 = vpop.f32.mrb[0].mxu0
  %2772 = vmatprep.mubr.f32.mxu0 0.0
  %2773 = vmatmul.mubr.f32.gmra.mrb[0].mxu0 %v2552
  %v2774 = vpop.f32.mrb[0].mxu0
  %v2775 = vadd.f32 %v2324, %v2774
  %v2776 = vpop.f32.mrb[0].mxu0
  %2777 = vmatprep.mubr.f32.mxu0 0.0
  %2778 = vmatmul.mubr.f32.gmra.mrb[0].mxu0 %v2555
  %v2779 = vpop.f32.mrb[0].mxu0
  %v2780 = vadd.f32 %v2329, %v2779
  %v2781 = vpop.f32.mrb[0].mxu0
  %2782 = vmatprep.mubr.f32.mxu0 0.0
  %2783 = vmatmul.mubr.f32.gmra.mrb[0].mxu0 %v2558
  %v2784 = vpop.f32.mrb[0].mxu0
  %v2785 = vadd.f32 %v2334, %v2784
  %v2786 = vpop.f32.mrb[0].mxu0
  %2787 = vmatprep.mubr.f32.mxu0 0.0
  %2788 = vmatmul.mubr.f32.gmra.mrb[0].mxu0 %v2561
  %v2789 = vpop.f32.mrb[0].mxu0
  %v2790 = vadd.f32 %v2339, %v2789
  %v2791 = vpop.f32.mrb[0].mxu0
  %2792 = vmatprep.mubr.f32.mxu0 0.0
  %2793 = vmatmul.mubr.f32.gmra.mrb[0].mxu0 %v2564
  %v2794 = vpop.f32.mrb[0].mxu0
  %v2795 = vadd.f32 %v2344, %v2794
  %v2796 = vpop.f32.mrb[0].mxu0
  %2797 = vmatprep.mubr.f32.mxu0 0.0
  %2798 = vmatmul.mubr.f32.gmra.mrb[0].mxu0 %v2567
  %v2799 = vpop.f32.mrb[0].mxu0
  %v2800 = vadd.f32 %v2349, %v2799
  %v2801 = vpop.f32.mrb[0].mxu0
  %2802 = vmatprep.mubr.f32.mxu0 0.0
  %2803 = vmatmul.mubr.f32.gmra.mrb[0].mxu0 %v2570
  %v2804 = vpop.f32.mrb[0].mxu0
  %v2805 = vadd.f32 %v2354, %v2804
  %v2806 = vpop.f32.mrb[0].mxu0
  %2807 = vmatprep.mubr.f32.mxu0 0.0
  %2808 = vmatmul.mubr.f32.gmra.mrb[0].mxu0 %v2573
  %v2809 = vpop.f32.mrb[0].mxu0
  %v2810 = vadd.f32 %v2359, %v2809
  %v2811 = vpop.f32.mrb[0].mxu0
  %2812 = vmatprep.mubr.f32.mxu0 0.0
  %2813 = vmatmul.mubr.f32.gmra.mrb[0].mxu0 %v2576
  %v2814 = vpop.f32.mrb[0].mxu0
  %v2815 = vadd.f32 %v2364, %v2814
  %v2816 = vpop.f32.mrb[0].mxu0
  %2817 = vmatprep.mubr.f32.mxu0 0.0
  %2818 = vmatmul.mubr.f32.gmra.mrb[0].mxu0 %v2579
  %v2819 = vpop.f32.mrb[0].mxu0
  %v2820 = vadd.f32 %v2369, %v2819
  %v2821 = vpop.f32.mrb[0].mxu0
  %2822 = vmatprep.mubr.f32.mxu0 0.0
  %2823 = vmatmul.mubr.f32.gmra.mrb[0].mxu0 %v2582
  %v2824 = vpop.f32.mrb[0].mxu0
  %v2825 = vadd.f32 %v2374, %v2824
  %v2826 = vpop.f32.mrb[0].mxu0
  %2827 = vmatprep.mubr.f32.mxu0 0.0
  %2828 = vmatmul.mubr.f32.gmra.mrb[0].mxu0 %v2585
  %v2829 = vpop.f32.mrb[0].mxu0
  %v2830 = vadd.f32 %v2379, %v2829
  %v2831 = vpop.f32.mrb[0].mxu0
  %2832 = vmatprep.mubr.f32.mxu0 0.0
  %2833 = vmatmul.mubr.f32.gmra.mrb[0].mxu0 %v2588
  %v2834 = vpop.f32.mrb[0].mxu0
  %v2835 = vadd.f32 %v2384, %v2834
  %v2836 = vpop.f32.mrb[0].mxu0
  %2837 = vmatprep.mubr.f32.mxu0 0.0
  %2838 = vmatmul.mubr.f32.gmra.mrb[0].mxu0 %v2591
  %v2839 = vpop.f32.mrb[0].mxu0
  %v2840 = vadd.f32 %v2389, %v2839
  %v2841 = vpop.f32.mrb[0].mxu0
  %2842 = vmatprep.mubr.f32.mxu0 0.0
  %2843 = vmatmul.mubr.f32.gmra.mrb[0].mxu0 %v2594
  %v2844 = vpop.f32.mrb[0].mxu0
  %v2845 = vadd.f32 %v2394, %v2844
  %v2846 = vpop.f32.mrb[0].mxu0
  %2847 = vmatprep.mubr.f32.mxu0 0.0
  %2848 = vmatmul.mubr.f32.gmra.mrb[0].mxu0 %v2597
  %v2849 = vpop.f32.mrb[0].mxu0
  %v2850 = vadd.f32 %v2399, %v2849
  %v2851 = vpop.f32.mrb[0].mxu0
  %2852 = vmatprep.mubr.f32.mxu0 0.0
  %2853 = vmatmul.mubr.f32.gmra.mrb[0].mxu0 %v2600
  %v2854 = vpop.f32.mrb[0].mxu0
  %v2855 = vadd.f32 %v2404, %v2854
  %v2856 = vpop.f32.mrb[0].mxu0
  %2857 = vmatprep.mubr.f32.mxu0 0.0
  %2858 = vmatmul.mubr.f32.gmra.mrb[0].mxu0 %v2603
  %v2859 = vpop.f32.mrb[0].mxu0
  %v2860 = vadd.f32 %v2409, %v2859
  %v2861 = vpop.f32.mrb[0].mxu0
  %2862 = vmatprep.mubr.f32.mxu0 0.0
  %2863 = vmatmul.mubr.f32.gmra.mrb[0].mxu0 %v2606
  %v2864 = vpop.f32.mrb[0].mxu0
  %v2865 = vadd.f32 %v2414, %v2864
  %v2866 = vpop.f32.mrb[0].mxu0
  %2867 = vmatprep.mubr.f32.mxu0 0.0
  %2868 = vmatmul.mubr.f32.gmra.mrb[0].mxu0 %v2609
  %v2869 = vpop.f32.mrb[0].mxu0
  %v2870 = vadd.f32 %v2419, %v2869
  %v2871 = vpop.f32.mrb[0].mxu0
  %2872 = vmatprep.mubr.f32.mxu0 0.0
  %2873 = vmatmul.mubr.f32.gmra.mrb[0].mxu0 %v2612
  %v2874 = vpop.f32.mrb[0].mxu0
  %v2875 = vadd.f32 %v2424, %v2874
  %v2876 = vpop.f32.mrb[0].mxu0
  %2877 = vmatprep.mubr.f32.mxu0 0.0
  %2878 = vmatmul.mubr.f32.gmra.mrb[0].mxu0 %v2615
  %v2879 = vpop.f32.mrb[0].mxu0
  %v2880 = vadd.f32 %v2429, %v2879
  %v2881 = vpop.f32.mrb[0].mxu0
  %2882 = vmatprep.mubr.f32.mxu0 0.0
  %2883 = vmatmul.mubr.f32.gmra.mrb[0].mxu0 %v2618
  %v2884 = vpop.f32.mrb[0].mxu0
  %v2885 = vadd.f32 %v2434, %v2884
  %v2886 = vpop.f32.mrb[0].mxu0
  %2887 = vmatprep.mubr.f32.mxu0 0.0
  %2888 = vmatmul.mubr.f32.gmra.mrb[0].mxu0 %v2621
  %v2889 = vpop.f32.mrb[0].mxu0
  %v2890 = vadd.f32 %v2439, %v2889
  %v2891 = vpop.f32.mrb[0].mxu0
  %2892 = vmatprep.mubr.f32.mxu0 0.0
  %2893 = vmatmul.mubr.f32.gmra.mrb[0].mxu0 %v2624
  %v2894 = vpop.f32.mrb[0].mxu0
  %v2895 = vadd.f32 %v2444, %v2894
  %v2896 = vpop.f32.mrb[0].mxu0
  %2897 = vmatprep.mubr.f32.mxu0 0.0
  %2898 = vmatmul.mubr.f32.gmra.mrb[0].mxu0 %v2627
  %v2899 = vpop.f32.mrb[0].mxu0
  %v2900 = vadd.f32 %v2449, %v2899
  %v2901 = vpop.f32.mrb[0].mxu0
  %2902 = vmatprep.mubr.f32.mxu0 0.0
  %2903 = vmatmul.mubr.f32.gmra.mrb[0].mxu0 %v2630
  %v2904 = vpop.f32.mrb[0].mxu0
  %v2905 = vadd.f32 %v2454, %v2904
  %v2906 = vpop.f32.mrb[0].mxu0
  %2907 = vmatprep.mubr.f32.mxu0 0.0
  %2908 = vmatmul.mubr.f32.gmra.mrb[0].mxu0 %v2633
  %v2909 = vpop.f32.mrb[0].mxu0
  %v2910 = vadd.f32 %v2459, %v2909
  %v2911 = vpop.f32.mrb[0].mxu0
  %2912 = vmatprep.mubr.f32.mxu0 0.0
  %2913 = vmatmul.mubr.f32.gmra.mrb[0].mxu0 %v2636
  %v2914 = vpop.f32.mrb[0].mxu0
  %v2915 = vadd.f32 %v2464, %v2914
  %v2916 = vpop.f32.mrb[0].mxu0
  %2917 = vmatprep.mubr.f32.mxu0 0.0
  %2918 = vmatmul.mubr.f32.gmra.mrb[0].mxu0 %v2639
  %v2919 = vpop.f32.mrb[0].mxu0
  %v2920 = vadd.f32 %v2469, %v2919
  %v2921 = vpop.f32.mrb[0].mxu0
  %2922 = vmatprep.mubr.f32.mxu0 0.0
  %2923 = vmatmul.mubr.f32.gmra.mrb[0].mxu0 %v2642
  %v2924 = vpop.f32.mrb[0].mxu0
  %v2925 = vadd.f32 %v2474, %v2924
  %v2926 = vpop.f32.mrb[0].mxu0
  %2927 = vmatprep.mubr.f32.mxu0 0.0
  %2928 = vmatmul.mubr.f32.gmra.mrb[0].mxu0 %v2645
  %v2929 = vpop.f32.mrb[0].mxu0
  %v2930 = vadd.f32 %v2479, %v2929
  %v2931 = vpop.f32.mrb[0].mxu0
  %2932 = vmatprep.mubr.f32.mxu0 0.0
  %2933 = vmatmul.mubr.f32.gmra.mrb[0].mxu0 %v2648
  %v2934 = vpop.f32.mrb[0].mxu0
  %v2935 = vadd.f32 %v2484, %v2934
  %v2936 = vpop.f32.mrb[0].mxu0
  %2937 = vmatprep.mubr.f32.mxu0 0.0
  %2938 = vmatmul.mubr.f32.gmra.mrb[0].mxu0 %v2651
  %v2939 = vpop.f32.mrb[0].mxu0
  %v2940 = vadd.f32 %v2489, %v2939
  %v2941 = vpop.f32.mrb[0].mxu0
  %2942 = vmatprep.mubr.f32.mxu0 0.0
  %2943 = vmatmul.mubr.f32.gmra.mrb[0].mxu0 %v2654
  %v2944 = vpop.f32.mrb[0].mxu0
  %v2945 = vadd.f32 %v2494, %v2944
  %v2946 = vpop.f32.mrb[0].mxu0
  %2947 = vmatprep.mubr.f32.mxu0 0.0
  %2948 = vmatmul.mubr.f32.gmra.mrb[0].mxu0 %v2657
  %v2949 = vpop.f32.mrb[0].mxu0
  %v2950 = vadd.f32 %v2499, %v2949
  %v2951 = vpop.f32.mrb[0].mxu0
  %2952 = vmatprep.mubr.f32.mxu0 0.0
  %2953 = vmatmul.mubr.f32.gmra.mrb[0].mxu0 %v2660
  %v2954 = vpop.f32.mrb[0].mxu0
  %v2955 = vadd.f32 %v2504, %v2954
  %v2956 = vpop.f32.mrb[0].mxu0
  %2957 = vmatprep.mubr.f32.mxu0 0.0
  %2958 = vmatmul.mubr.f32.gmra.mrb[0].mxu0 %v2663
  %v2959 = vpop.f32.mrb[0].mxu0
  %v2960 = vadd.f32 %v2509, %v2959
  %v2961 = vpop.f32.mrb[0].mxu0
  %2962 = vmatprep.mubr.f32.mxu0 0.0
  %2963 = vmatmul.mubr.f32.gmra.mrb[0].mxu0 %v2666
  %v2964 = vpop.f32.mrb[0].mxu0
  %v2965 = vadd.f32 %v2514, %v2964
  %v2966 = vpop.f32.mrb[0].mxu0
  %2967 = vmatprep.mubr.f32.mxu0 0.0
  %2968 = vmatmul.mubr.f32.gmra.mrb[0].mxu0 %v2669
  %v2969 = vpop.f32.mrb[0].mxu0
  %v2970 = vadd.f32 %v2519, %v2969
  %v2971 = vpop.f32.mrb[0].mxu0
  %2972 = vmatprep.mubr.f32.mxu0 0.0
  %2973 = vmatmul.mubr.f32.gmra.mrb[0].mxu0 %v2672
  %v2974 = vpop.f32.mrb[0].mxu0
  %v2975 = vadd.f32 %v2524, %v2974
  %v2976 = vpop.f32.mrb[0].mxu0
  %2977 = vmatprep.mubr.f32.mxu0 0.0
  %2978 = vmatmul.mubr.f32.gmra.mrb[0].mxu0 %v2675
  %v2979 = vpop.f32.mrb[0].mxu0
  %v2980 = vadd.f32 %v2529, %v2979
  %v2981 = vpop.f32.mrb[0].mxu0
  %2982 = vmatprep.mubr.f32.mxu0 0.0
  %2983 = vmatmul.mubr.f32.gmra.mrb[0].mxu0 %v2678
  %v2984 = vpop.f32.mrb[0].mxu0
  %v2985 = vadd.f32 %v2534, %v2984
  %v2986 = vpop.f32.mrb[0].mxu0
  %2987 = vdwg.mxu0
  %v2988 = vmax.f32 %v2750, 0.0
  %v2989 = vmax.f32 %v2755, 0.0
  %v2990 = vmax.f32 %v2760, 0.0
  %v2991 = vmax.f32 %v2765, 0.0
  %v2992 = vmax.f32 %v2770, 0.0
  %v2993 = vmax.f32 %v2775, 0.0
  %v2994 = vmax.f32 %v2780, 0.0
  %v2995 = vmax.f32 %v2785, 0.0
  %v2996 = vmax.f32 %v2790, 0.0
  %v2997 = vmax.f32 %v2795, 0.0
  %v2998 = vmax.f32 %v2800, 0.0
  %v2999 = vmax.f32 %v2805, 0.0
  %v3000 = vmax.f32 %v2810, 0.0
  %v3001 = vmax.f32 %v2815, 0.0
  %v3002 = vmax.f32 %v2820, 0.0
  %v3003 = vmax.f32 %v2825, 0.0
  %v3004 = vmax.f32 %v2830, 0.0
  %v3005 = vmax.f32 %v2835, 0.0
  %v3006 = vmax.f32 %v2840, 0.0
  %v3007 = vmax.f32 %v2845, 0.0
  %v3008 = vmax.f32 %v2850, 0.0
  %v3009 = vmax.f32 %v2855, 0.0
  %v3010 = vmax.f32 %v2860, 0.0
  %v3011 = vmax.f32 %v2865, 0.0
  %v3012 = vmax.f32 %v2870, 0.0
  %v3013 = vmax.f32 %v2875, 0.0
  %v3014 = vmax.f32 %v2880, 0.0
  %v3015 = vmax.f32 %v2885, 0.0
  %v3016 = vmax.f32 %v2890, 0.0
  %v3017 = vmax.f32 %v2895, 0.0
  %v3018 = vmax.f32 %v2900, 0.0
  %v3019 = vmax.f32 %v2905, 0.0
  %v3020 = vmax.f32 %v2910, 0.0
  %v3021 = vmax.f32 %v2915, 0.0
  %v3022 = vmax.f32 %v2920, 0.0
  %v3023 = vmax.f32 %v2925, 0.0
  %v3024 = vmax.f32 %v2930, 0.0
  %v3025 = vmax.f32 %v2935, 0.0
  %v3026 = vmax.f32 %v2940, 0.0
  %v3027 = vmax.f32 %v2945, 0.0
  %v3028 = vmax.f32 %v2950, 0.0
  %v3029 = vmax.f32 %v2955, 0.0
  %v3030 = vmax.f32 %v2960, 0.0
  %v3031 = vmax.f32 %v2965, 0.0
  %v3032 = vmax.f32 %v2970, 0.0
  %v3033 = vmax.f32 %v2975, 0.0
  %v3034 = vmax.f32 %v2980, 0.0
  %v3035 = vmax.f32 %v2985, 0.0
  %v3036 = vmul.f32 %v2988, %v2988
  %v3037 = vmul.f32 %v2989, %v2989
  %v3038 = vmul.f32 %v2990, %v2990
  %v3039 = vmul.f32 %v2991, %v2991
  %v3040 = vmul.f32 %v2992, %v2992
  %v3041 = vmul.f32 %v2993, %v2993
  %v3042 = vmul.f32 %v2994, %v2994
  %v3043 = vmul.f32 %v2995, %v2995
  %v3044 = vmul.f32 %v2996, %v2996
  %v3045 = vmul.f32 %v2997, %v2997
  %v3046 = vmul.f32 %v2998, %v2998
  %v3047 = vmul.f32 %v2999, %v2999
  %v3048 = vmul.f32 %v3000, %v3000
  %v3049 = vmul.f32 %v3001, %v3001
  %v3050 = vmul.f32 %v3002, %v3002
  %v3051 = vmul.f32 %v3003, %v3003
  %v3052 = vmul.f32 %v3004, %v3004
  %v3053 = vmul.f32 %v3005, %v3005
  %v3054 = vmul.f32 %v3006, %v3006
  %v3055 = vmul.f32 %v3007, %v3007
  %v3056 = vmul.f32 %v3008, %v3008
  %v3057 = vmul.f32 %v3009, %v3009
  %v3058 = vmul.f32 %v3010, %v3010
  %v3059 = vmul.f32 %v3011, %v3011
  %v3060 = vmul.f32 %v3012, %v3012
  %v3061 = vmul.f32 %v3013, %v3013
  %v3062 = vmul.f32 %v3014, %v3014
  %v3063 = vmul.f32 %v3015, %v3015
  %v3064 = vmul.f32 %v3016, %v3016
  %v3065 = vmul.f32 %v3017, %v3017
  %v3066 = vmul.f32 %v3018, %v3018
  %v3067 = vmul.f32 %v3019, %v3019
  %v3068 = vmul.f32 %v3020, %v3020
  %v3069 = vmul.f32 %v3021, %v3021
  %v3070 = vmul.f32 %v3022, %v3022
  %v3071 = vmul.f32 %v3023, %v3023
  %v3072 = vmul.f32 %v3024, %v3024
  %v3073 = vmul.f32 %v3025, %v3025
  %v3074 = vmul.f32 %v3026, %v3026
  %v3075 = vmul.f32 %v3027, %v3027
  %v3076 = vmul.f32 %v3028, %v3028
  %v3077 = vmul.f32 %v3029, %v3029
  %v3078 = vmul.f32 %v3030, %v3030
  %v3079 = vmul.f32 %v3031, %v3031
  %v3080 = vmul.f32 %v3032, %v3032
  %v3081 = vmul.f32 %v3033, %v3033
  %v3082 = vmul.f32 %v3034, %v3034
  %v3083 = vmul.f32 %v3035, %v3035
  %vm3084 = vcmask 261120
  %v3085 = vsel %vm3084, %v3036, 0.0
  %v3086 = vsel %vm3084, %v3037, 0.0
  %v3087 = vadd.f32 %v3085, %v3086
  %v3088 = vsel %vm3084, %v3038, 0.0
  %v3089 = vadd.f32 %v3087, %v3088
  %v3090 = vsel %vm3084, %v3039, 0.0
  %v3091 = vadd.f32 %v3089, %v3090
  %v3092 = vsel %vm3084, %v3040, 0.0
  %v3093 = vadd.f32 %v3091, %v3092
  %v3094 = vsel %vm3084, %v3041, 0.0
  %v3095 = vadd.f32 %v3093, %v3094
  %v3096 = vsel %vm3084, %v3042, 0.0
  %v3097 = vadd.f32 %v3095, %v3096
  %v3098 = vsel %vm3084, %v3043, 0.0
  %v3099 = vadd.f32 %v3097, %v3098
  %v3100 = vsel %vm3084, %v3044, 0.0
  %v3101 = vadd.f32 %v3099, %v3100
  %v3102 = vsel %vm3084, %v3045, 0.0
  %v3103 = vadd.f32 %v3101, %v3102
  %v3104 = vsel %vm3084, %v3046, 0.0
  %v3105 = vadd.f32 %v3103, %v3104
  %v3106 = vsel %vm3084, %v3047, 0.0
  %v3107 = vadd.f32 %v3105, %v3106
  %v3108 = vsel %vm3084, %v3048, 0.0
  %v3109 = vadd.f32 %v3107, %v3108
  %v3110 = vsel %vm3084, %v3049, 0.0
  %v3111 = vadd.f32 %v3109, %v3110
  %v3112 = vsel %vm3084, %v3050, 0.0
  %v3113 = vadd.f32 %v3111, %v3112
  %v3114 = vsel %vm3084, %v3051, 0.0
  %v3115 = vadd.f32 %v3113, %v3114
  %v3116 = vsel %vm3084, %v3052, 0.0
  %v3117 = vadd.f32 %v3115, %v3116
  %v3118 = vsel %vm3084, %v3053, 0.0
  %v3119 = vadd.f32 %v3117, %v3118
  %v3120 = vsel %vm3084, %v3054, 0.0
  %v3121 = vadd.f32 %v3119, %v3120
  %v3122 = vsel %vm3084, %v3055, 0.0
  %v3123 = vadd.f32 %v3121, %v3122
  %v3124 = vsel %vm3084, %v3056, 0.0
  %v3125 = vadd.f32 %v3123, %v3124
  %v3126 = vsel %vm3084, %v3057, 0.0
  %v3127 = vadd.f32 %v3125, %v3126
  %v3128 = vsel %vm3084, %v3058, 0.0
  %v3129 = vadd.f32 %v3127, %v3128
  %v3130 = vsel %vm3084, %v3059, 0.0
  %v3131 = vadd.f32 %v3129, %v3130
  %v3132 = vsel %vm3084, %v3060, 0.0
  %v3133 = vadd.f32 %v3131, %v3132
  %v3134 = vsel %vm3084, %v3061, 0.0
  %v3135 = vadd.f32 %v3133, %v3134
  %v3136 = vsel %vm3084, %v3062, 0.0
  %v3137 = vadd.f32 %v3135, %v3136
  %v3138 = vsel %vm3084, %v3063, 0.0
  %v3139 = vadd.f32 %v3137, %v3138
  %v3140 = vsel %vm3084, %v3064, 0.0
  %v3141 = vadd.f32 %v3139, %v3140
  %v3142 = vsel %vm3084, %v3065, 0.0
  %v3143 = vadd.f32 %v3141, %v3142
  %v3144 = vsel %vm3084, %v3066, 0.0
  %v3145 = vadd.f32 %v3143, %v3144
  %v3146 = vsel %vm3084, %v3067, 0.0
  %v3147 = vadd.f32 %v3145, %v3146
  %v3148 = vsel %vm3084, %v3068, 0.0
  %v3149 = vadd.f32 %v3147, %v3148
  %v3150 = vsel %vm3084, %v3069, 0.0
  %v3151 = vadd.f32 %v3149, %v3150
  %v3152 = vsel %vm3084, %v3070, 0.0
  %v3153 = vadd.f32 %v3151, %v3152
  %v3154 = vsel %vm3084, %v3071, 0.0
  %v3155 = vadd.f32 %v3153, %v3154
  %v3156 = vsel %vm3084, %v3072, 0.0
  %v3157 = vadd.f32 %v3155, %v3156
  %v3158 = vsel %vm3084, %v3073, 0.0
  %v3159 = vadd.f32 %v3157, %v3158
  %v3160 = vsel %vm3084, %v3074, 0.0
  %v3161 = vadd.f32 %v3159, %v3160
  %v3162 = vsel %vm3084, %v3075, 0.0
  %v3163 = vadd.f32 %v3161, %v3162
  %v3164 = vsel %vm3084, %v3076, 0.0
  %v3165 = vadd.f32 %v3163, %v3164
  %v3166 = vsel %vm3084, %v3077, 0.0
  %v3167 = vadd.f32 %v3165, %v3166
  %v3168 = vsel %vm3084, %v3078, 0.0
  %v3169 = vadd.f32 %v3167, %v3168
  %v3170 = vsel %vm3084, %v3079, 0.0
  %v3171 = vadd.f32 %v3169, %v3170
  %v3172 = vsel %vm3084, %v3080, 0.0
  %v3173 = vadd.f32 %v3171, %v3172
  %v3174 = vsel %vm3084, %v3081, 0.0
  %v3175 = vadd.f32 %v3173, %v3174
  %v3176 = vsel %vm3084, %v3082, 0.0
  %v3177 = vadd.f32 %v3175, %v3176
  %v3178 = vsel %vm3084, %v3083, 0.0
  %v3179 = vadd.f32 %v3177, %v3178
  %v3180 = vrot.slane %v3179, 4
  %v3181 = vadd.f32 %v3179, %v3180
  %v3182 = vrot.slane %v3181, 2
  %v3183 = vadd.f32 %v3181, %v3182
  %v3184 = vrot.slane %v3183, 1
  %v3185 = vadd.f32 %v3183, %v3184
  %v3186 = vrsqrt.pop %v3185
  %v3187 = vmul.f32 %v3185, %v3186
  %vm3188 = vcmp.eq.f32.partialorder %v3185, inf
  %v3189 = vsel %vm3188, %v3185, %v3187
  %vm3190 = vcmp.eq.f32.partialorder %v3185, 0.0
  %v3191 = vand.u32 %v3185, 2147483648
  %v3192 = vsel %vm3190, %v3191, %v3189
  %v3193 = vadd.f32 %v3192, 1e-10
  %v3194 = vrcp.pop %v3193
  %v3195 = vmul.f32 %v2988, %v3194
  %v3196 = vmul.f32 %v2989, %v3194
  %v3197 = vmul.f32 %v2990, %v3194
  %v3198 = vmul.f32 %v2991, %v3194
  %v3199 = vmul.f32 %v2992, %v3194
  %v3200 = vmul.f32 %v2993, %v3194
  %v3201 = vmul.f32 %v2994, %v3194
  %v3202 = vmul.f32 %v2995, %v3194
  %v3203 = vmul.f32 %v2996, %v3194
  %v3204 = vmul.f32 %v2997, %v3194
  %v3205 = vmul.f32 %v2998, %v3194
  %v3206 = vmul.f32 %v2999, %v3194
  %v3207 = vmul.f32 %v3000, %v3194
  %v3208 = vmul.f32 %v3001, %v3194
  %v3209 = vmul.f32 %v3002, %v3194
  %v3210 = vmul.f32 %v3003, %v3194
  %v3211 = vmul.f32 %v3004, %v3194
  %v3212 = vmul.f32 %v3005, %v3194
  %v3213 = vmul.f32 %v3006, %v3194
  %v3214 = vmul.f32 %v3007, %v3194
  %v3215 = vmul.f32 %v3008, %v3194
  %v3216 = vmul.f32 %v3009, %v3194
  %v3217 = vmul.f32 %v3010, %v3194
  %v3218 = vmul.f32 %v3011, %v3194
  %v3219 = vmul.f32 %v3012, %v3194
  %v3220 = vmul.f32 %v3013, %v3194
  %v3221 = vmul.f32 %v3014, %v3194
  %v3222 = vmul.f32 %v3015, %v3194
  %v3223 = vmul.f32 %v3016, %v3194
  %v3224 = vmul.f32 %v3017, %v3194
  %v3225 = vmul.f32 %v3018, %v3194
  %v3226 = vmul.f32 %v3019, %v3194
  %v3227 = vmul.f32 %v3020, %v3194
  %v3228 = vmul.f32 %v3021, %v3194
  %v3229 = vmul.f32 %v3022, %v3194
  %v3230 = vmul.f32 %v3023, %v3194
  %v3231 = vmul.f32 %v3024, %v3194
  %v3232 = vmul.f32 %v3025, %v3194
  %v3233 = vmul.f32 %v3026, %v3194
  %v3234 = vmul.f32 %v3027, %v3194
  %v3235 = vmul.f32 %v3028, %v3194
  %v3236 = vmul.f32 %v3029, %v3194
  %v3237 = vmul.f32 %v3030, %v3194
  %v3238 = vmul.f32 %v3031, %v3194
  %v3239 = vmul.f32 %v3032, %v3194
  %v3240 = vmul.f32 %v3033, %v3194
  %v3241 = vmul.f32 %v3034, %v3194
  %v3242 = vmul.f32 %v3035, %v3194
  %v3244 = vsel %vm3084, %v3195, 0
  %v3247 = vsel %vm3084, %v3196, 0
  %v3250 = vsel %vm3084, %v3197, 0
  %v3253 = vsel %vm3084, %v3198, 0
  %v3256 = vsel %vm3084, %v3199, 0
  %v3259 = vsel %vm3084, %v3200, 0
  %v3262 = vsel %vm3084, %v3201, 0
  %v3265 = vsel %vm3084, %v3202, 0
  %v3268 = vsel %vm3084, %v3203, 0
  %v3271 = vsel %vm3084, %v3204, 0
  %v3274 = vsel %vm3084, %v3205, 0
  %v3277 = vsel %vm3084, %v3206, 0
  %v3280 = vsel %vm3084, %v3207, 0
  %v3283 = vsel %vm3084, %v3208, 0
  %v3286 = vsel %vm3084, %v3209, 0
  %v3289 = vsel %vm3084, %v3210, 0
  %v3292 = vsel %vm3084, %v3211, 0
  %v3295 = vsel %vm3084, %v3212, 0
  %v3298 = vsel %vm3084, %v3213, 0
  %v3301 = vsel %vm3084, %v3214, 0
  %v3304 = vsel %vm3084, %v3215, 0
  %v3307 = vsel %vm3084, %v3216, 0
  %v3310 = vsel %vm3084, %v3217, 0
  %v3313 = vsel %vm3084, %v3218, 0
  %v3316 = vsel %vm3084, %v3219, 0
  %v3319 = vsel %vm3084, %v3220, 0
  %v3322 = vsel %vm3084, %v3221, 0
  %v3325 = vsel %vm3084, %v3222, 0
  %v3328 = vsel %vm3084, %v3223, 0
  %v3331 = vsel %vm3084, %v3224, 0
  %v3334 = vsel %vm3084, %v3225, 0
  %v3337 = vsel %vm3084, %v3226, 0
  %v3340 = vsel %vm3084, %v3227, 0
  %v3343 = vsel %vm3084, %v3228, 0
  %v3346 = vsel %vm3084, %v3229, 0
  %v3349 = vsel %vm3084, %v3230, 0
  %v3352 = vsel %vm3084, %v3231, 0
  %v3355 = vsel %vm3084, %v3232, 0
  %v3358 = vsel %vm3084, %v3233, 0
  %v3361 = vsel %vm3084, %v3234, 0
  %v3364 = vsel %vm3084, %v3235, 0
  %v3367 = vsel %vm3084, %v3236, 0
  %v3370 = vsel %vm3084, %v3237, 0
  %v3373 = vsel %vm3084, %v3238, 0
  %v3376 = vsel %vm3084, %v3239, 0
  %v3379 = vsel %vm3084, %v3240, 0
  %v3382 = vsel %vm3084, %v3241, 0
  %v3385 = vsel %vm3084, %v3242, 0
  %3387 = vmatprep.subr.mxu0 0.0
  %3388 = vmatpush1.msra.mxu0 %v2292
  %3389 = vmatprep.subr.mxu0 0.0
  %3390 = vmatpush1.msra.mxu0 %v2293
  %3391 = vmatprep.subr.mxu0 0.0
  %3392 = vmatpush1.msra.mxu0 %v2294
  %3393 = vmatprep.subr.mxu0 0.0
  %3394 = vmatpush1.msra.mxu0 %v2295
  %3395 = vmatprep.subr.mxu0 0.0
  %3396 = vmatpush1.msra.mxu0 0.0
  %3397 = vmatprep.subr.mxu0 0.0
  %3398 = vmatpush1.msra.mxu0 0.0
  %3399 = vmatprep.subr.mxu0 0.0
  %3400 = vmatpush1.msra.mxu0 0.0
  %3401 = vmatprep.subr.mxu0 0.0
  %3402 = vmatpush1.msra.mxu0 0.0
  %3403 = vmatprep.subr.mxu0 0.0
  %3404 = vmatpush1.msra.mxu0 0.0
  %3405 = vmatprep.subr.mxu0 0.0
  %3406 = vmatpush1.msra.mxu0 0.0
  %3407 = vmatprep.subr.mxu0 0.0
  %3408 = vmatpush1.msra.mxu0 0.0
  %3409 = vmatprep.subr.mxu0 0.0
  %3410 = vmatpush1.msra.mxu0 0.0
  %3411 = vmatprep.subr.mxu0 0.0
  %3412 = vmatpush1.msra.mxu0 0.0
  %3413 = vmatprep.subr.mxu0 0.0
  %3414 = vmatpush1.msra.mxu0 0.0
  %3415 = vmatprep.subr.mxu0 0.0
  %3416 = vmatpush1.msra.mxu0 0.0
  %3417 = vmatprep.subr.mxu0 0.0
  %3418 = vmatpush1.msra.mxu0 0.0
  %3419 = vmatprep.subr.mxu0 0.0
  %3420 = vmatpush1.msra.mxu0 0.0
  %3421 = vmatprep.subr.mxu0 0.0
  %3422 = vmatpush1.msra.mxu0 0.0
  %3423 = vmatprep.subr.mxu0 0.0
  %3424 = vmatpush1.msra.mxu0 0.0
  %3425 = vmatprep.subr.mxu0 0.0
  %3426 = vmatpush1.msra.mxu0 0.0
  %3427 = vmatprep.subr.mxu0 0.0
  %3428 = vmatpush1.msra.mxu0 0.0
  %3429 = vmatprep.subr.mxu0 0.0
  %3430 = vmatpush1.msra.mxu0 0.0
  %3431 = vmatprep.subr.mxu0 0.0
  %3432 = vmatpush1.msra.mxu0 0.0
  %3433 = vmatprep.subr.mxu0 0.0
  %3434 = vmatpush1.msra.mxu0 0.0
  %3435 = vmatprep.subr.mxu0 0.0
  %3436 = vmatpush1.msra.mxu0 0.0
  %3437 = vmatprep.subr.mxu0 0.0
  %3438 = vmatpush1.msra.mxu0 0.0
  %3439 = vmatprep.subr.mxu0 0.0
  %3440 = vmatpush1.msra.mxu0 0.0
  %3441 = vmatprep.subr.mxu0 0.0
  %3442 = vmatpush1.msra.mxu0 0.0
  %3443 = vmatprep.subr.mxu0 0.0
  %3444 = vmatpush1.msra.mxu0 0.0
  %3445 = vmatprep.subr.mxu0 0.0
  %3446 = vmatpush1.msra.mxu0 0.0
  %3447 = vmatprep.subr.mxu0 0.0
  %3448 = vmatpush1.msra.mxu0 0.0
  %3449 = vmatprep.subr.mxu0 0.0
  %3450 = vmatpush1.msra.mxu0 0.0
  %3451 = vmatprep.mubr.f32.mxu0 0.0
  %3452 = vmatmul.mubr.f32.gmra.mrb[0].mxu0 %v3244
  %v3453 = vpop.f32.mrb[0].mxu0
  %v3454 = vadd.f32 0.0, %v3453
  %v3455 = vpop.f32.mrb[0].mxu0
  %3456 = vmatprep.mubr.f32.mxu0 0.0
  %3457 = vmatmul.mubr.f32.gmra.mrb[0].mxu0 %v3247
  %v3458 = vpop.f32.mrb[0].mxu0
  %v3459 = vadd.f32 0.0, %v3458
  %v3460 = vpop.f32.mrb[0].mxu0
  %3461 = vmatprep.mubr.f32.mxu0 0.0
  %3462 = vmatmul.mubr.f32.gmra.mrb[0].mxu0 %v3250
  %v3463 = vpop.f32.mrb[0].mxu0
  %v3464 = vadd.f32 0.0, %v3463
  %v3465 = vpop.f32.mrb[0].mxu0
  %3466 = vmatprep.mubr.f32.mxu0 0.0
  %3467 = vmatmul.mubr.f32.gmra.mrb[0].mxu0 %v3253
  %v3468 = vpop.f32.mrb[0].mxu0
  %v3469 = vadd.f32 0.0, %v3468
  %v3470 = vpop.f32.mrb[0].mxu0
  %3471 = vmatprep.mubr.f32.mxu0 0.0
  %3472 = vmatmul.mubr.f32.gmra.mrb[0].mxu0 %v3256
  %v3473 = vpop.f32.mrb[0].mxu0
  %v3474 = vadd.f32 0.0, %v3473
  %v3475 = vpop.f32.mrb[0].mxu0
  %3476 = vmatprep.mubr.f32.mxu0 0.0
  %3477 = vmatmul.mubr.f32.gmra.mrb[0].mxu0 %v3259
  %v3478 = vpop.f32.mrb[0].mxu0
  %v3479 = vadd.f32 0.0, %v3478
  %v3480 = vpop.f32.mrb[0].mxu0
  %3481 = vmatprep.mubr.f32.mxu0 0.0
  %3482 = vmatmul.mubr.f32.gmra.mrb[0].mxu0 %v3262
  %v3483 = vpop.f32.mrb[0].mxu0
  %v3484 = vadd.f32 0.0, %v3483
  %v3485 = vpop.f32.mrb[0].mxu0
  %3486 = vmatprep.mubr.f32.mxu0 0.0
  %3487 = vmatmul.mubr.f32.gmra.mrb[0].mxu0 %v3265
  %v3488 = vpop.f32.mrb[0].mxu0
  %v3489 = vadd.f32 0.0, %v3488
  %v3490 = vpop.f32.mrb[0].mxu0
  %3491 = vmatprep.mubr.f32.mxu0 0.0
  %3492 = vmatmul.mubr.f32.gmra.mrb[0].mxu0 %v3268
  %v3493 = vpop.f32.mrb[0].mxu0
  %v3494 = vadd.f32 0.0, %v3493
  %v3495 = vpop.f32.mrb[0].mxu0
  %3496 = vmatprep.mubr.f32.mxu0 0.0
  %3497 = vmatmul.mubr.f32.gmra.mrb[0].mxu0 %v3271
  %v3498 = vpop.f32.mrb[0].mxu0
  %v3499 = vadd.f32 0.0, %v3498
  %v3500 = vpop.f32.mrb[0].mxu0
  %3501 = vmatprep.mubr.f32.mxu0 0.0
  %3502 = vmatmul.mubr.f32.gmra.mrb[0].mxu0 %v3274
  %v3503 = vpop.f32.mrb[0].mxu0
  %v3504 = vadd.f32 0.0, %v3503
  %v3505 = vpop.f32.mrb[0].mxu0
  %3506 = vmatprep.mubr.f32.mxu0 0.0
  %3507 = vmatmul.mubr.f32.gmra.mrb[0].mxu0 %v3277
  %v3508 = vpop.f32.mrb[0].mxu0
  %v3509 = vadd.f32 0.0, %v3508
  %v3510 = vpop.f32.mrb[0].mxu0
  %3511 = vmatprep.mubr.f32.mxu0 0.0
  %3512 = vmatmul.mubr.f32.gmra.mrb[0].mxu0 %v3280
  %v3513 = vpop.f32.mrb[0].mxu0
  %v3514 = vadd.f32 0.0, %v3513
  %v3515 = vpop.f32.mrb[0].mxu0
  %3516 = vmatprep.mubr.f32.mxu0 0.0
  %3517 = vmatmul.mubr.f32.gmra.mrb[0].mxu0 %v3283
  %v3518 = vpop.f32.mrb[0].mxu0
  %v3519 = vadd.f32 0.0, %v3518
  %v3520 = vpop.f32.mrb[0].mxu0
  %3521 = vmatprep.mubr.f32.mxu0 0.0
  %3522 = vmatmul.mubr.f32.gmra.mrb[0].mxu0 %v3286
  %v3523 = vpop.f32.mrb[0].mxu0
  %v3524 = vadd.f32 0.0, %v3523
  %v3525 = vpop.f32.mrb[0].mxu0
  %3526 = vmatprep.mubr.f32.mxu0 0.0
  %3527 = vmatmul.mubr.f32.gmra.mrb[0].mxu0 %v3289
  %v3528 = vpop.f32.mrb[0].mxu0
  %v3529 = vadd.f32 0.0, %v3528
  %v3530 = vpop.f32.mrb[0].mxu0
  %3531 = vmatprep.mubr.f32.mxu0 0.0
  %3532 = vmatmul.mubr.f32.gmra.mrb[0].mxu0 %v3292
  %v3533 = vpop.f32.mrb[0].mxu0
  %v3534 = vadd.f32 0.0, %v3533
  %v3535 = vpop.f32.mrb[0].mxu0
  %3536 = vmatprep.mubr.f32.mxu0 0.0
  %3537 = vmatmul.mubr.f32.gmra.mrb[0].mxu0 %v3295
  %v3538 = vpop.f32.mrb[0].mxu0
  %v3539 = vadd.f32 0.0, %v3538
  %v3540 = vpop.f32.mrb[0].mxu0
  %3541 = vmatprep.mubr.f32.mxu0 0.0
  %3542 = vmatmul.mubr.f32.gmra.mrb[0].mxu0 %v3298
  %v3543 = vpop.f32.mrb[0].mxu0
  %v3544 = vadd.f32 0.0, %v3543
  %v3545 = vpop.f32.mrb[0].mxu0
  %3546 = vmatprep.mubr.f32.mxu0 0.0
  %3547 = vmatmul.mubr.f32.gmra.mrb[0].mxu0 %v3301
  %v3548 = vpop.f32.mrb[0].mxu0
  %v3549 = vadd.f32 0.0, %v3548
  %v3550 = vpop.f32.mrb[0].mxu0
  %3551 = vmatprep.mubr.f32.mxu0 0.0
  %3552 = vmatmul.mubr.f32.gmra.mrb[0].mxu0 %v3304
  %v3553 = vpop.f32.mrb[0].mxu0
  %v3554 = vadd.f32 0.0, %v3553
  %v3555 = vpop.f32.mrb[0].mxu0
  %3556 = vmatprep.mubr.f32.mxu0 0.0
  %3557 = vmatmul.mubr.f32.gmra.mrb[0].mxu0 %v3307
  %v3558 = vpop.f32.mrb[0].mxu0
  %v3559 = vadd.f32 0.0, %v3558
  %v3560 = vpop.f32.mrb[0].mxu0
  %3561 = vmatprep.mubr.f32.mxu0 0.0
  %3562 = vmatmul.mubr.f32.gmra.mrb[0].mxu0 %v3310
  %v3563 = vpop.f32.mrb[0].mxu0
  %v3564 = vadd.f32 0.0, %v3563
  %v3565 = vpop.f32.mrb[0].mxu0
  %3566 = vmatprep.mubr.f32.mxu0 0.0
  %3567 = vmatmul.mubr.f32.gmra.mrb[0].mxu0 %v3313
  %v3568 = vpop.f32.mrb[0].mxu0
  %v3569 = vadd.f32 0.0, %v3568
  %v3570 = vpop.f32.mrb[0].mxu0
  %3571 = vmatprep.mubr.f32.mxu0 0.0
  %3572 = vmatmul.mubr.f32.gmra.mrb[0].mxu0 %v3316
  %v3573 = vpop.f32.mrb[0].mxu0
  %v3574 = vadd.f32 0.0, %v3573
  %v3575 = vpop.f32.mrb[0].mxu0
  %3576 = vmatprep.mubr.f32.mxu0 0.0
  %3577 = vmatmul.mubr.f32.gmra.mrb[0].mxu0 %v3319
  %v3578 = vpop.f32.mrb[0].mxu0
  %v3579 = vadd.f32 0.0, %v3578
  %v3580 = vpop.f32.mrb[0].mxu0
  %3581 = vmatprep.mubr.f32.mxu0 0.0
  %3582 = vmatmul.mubr.f32.gmra.mrb[0].mxu0 %v3322
  %v3583 = vpop.f32.mrb[0].mxu0
  %v3584 = vadd.f32 0.0, %v3583
  %v3585 = vpop.f32.mrb[0].mxu0
  %3586 = vmatprep.mubr.f32.mxu0 0.0
  %3587 = vmatmul.mubr.f32.gmra.mrb[0].mxu0 %v3325
  %v3588 = vpop.f32.mrb[0].mxu0
  %v3589 = vadd.f32 0.0, %v3588
  %v3590 = vpop.f32.mrb[0].mxu0
  %3591 = vmatprep.mubr.f32.mxu0 0.0
  %3592 = vmatmul.mubr.f32.gmra.mrb[0].mxu0 %v3328
  %v3593 = vpop.f32.mrb[0].mxu0
  %v3594 = vadd.f32 0.0, %v3593
  %v3595 = vpop.f32.mrb[0].mxu0
  %3596 = vmatprep.mubr.f32.mxu0 0.0
  %3597 = vmatmul.mubr.f32.gmra.mrb[0].mxu0 %v3331
  %v3598 = vpop.f32.mrb[0].mxu0
  %v3599 = vadd.f32 0.0, %v3598
  %v3600 = vpop.f32.mrb[0].mxu0
  %3601 = vmatprep.mubr.f32.mxu0 0.0
  %3602 = vmatmul.mubr.f32.gmra.mrb[0].mxu0 %v3334
  %v3603 = vpop.f32.mrb[0].mxu0
  %v3604 = vadd.f32 0.0, %v3603
  %v3605 = vpop.f32.mrb[0].mxu0
  %3606 = vmatprep.mubr.f32.mxu0 0.0
  %3607 = vmatmul.mubr.f32.gmra.mrb[0].mxu0 %v3337
  %v3608 = vpop.f32.mrb[0].mxu0
  %v3609 = vadd.f32 0.0, %v3608
  %v3610 = vpop.f32.mrb[0].mxu0
  %3611 = vmatprep.mubr.f32.mxu0 0.0
  %3612 = vmatmul.mubr.f32.gmra.mrb[0].mxu0 %v3340
  %v3613 = vpop.f32.mrb[0].mxu0
  %v3614 = vadd.f32 0.0, %v3613
  %v3615 = vpop.f32.mrb[0].mxu0
  %3616 = vmatprep.mubr.f32.mxu0 0.0
  %3617 = vmatmul.mubr.f32.gmra.mrb[0].mxu0 %v3343
  %v3618 = vpop.f32.mrb[0].mxu0
  %v3619 = vadd.f32 0.0, %v3618
  %v3620 = vpop.f32.mrb[0].mxu0
  %3621 = vmatprep.mubr.f32.mxu0 0.0
  %3622 = vmatmul.mubr.f32.gmra.mrb[0].mxu0 %v3346
  %v3623 = vpop.f32.mrb[0].mxu0
  %v3624 = vadd.f32 0.0, %v3623
  %v3625 = vpop.f32.mrb[0].mxu0
  %3626 = vmatprep.mubr.f32.mxu0 0.0
  %3627 = vmatmul.mubr.f32.gmra.mrb[0].mxu0 %v3349
  %v3628 = vpop.f32.mrb[0].mxu0
  %v3629 = vadd.f32 0.0, %v3628
  %v3630 = vpop.f32.mrb[0].mxu0
  %3631 = vmatprep.mubr.f32.mxu0 0.0
  %3632 = vmatmul.mubr.f32.gmra.mrb[0].mxu0 %v3352
  %v3633 = vpop.f32.mrb[0].mxu0
  %v3634 = vadd.f32 0.0, %v3633
  %v3635 = vpop.f32.mrb[0].mxu0
  %3636 = vmatprep.mubr.f32.mxu0 0.0
  %3637 = vmatmul.mubr.f32.gmra.mrb[0].mxu0 %v3355
  %v3638 = vpop.f32.mrb[0].mxu0
  %v3639 = vadd.f32 0.0, %v3638
  %v3640 = vpop.f32.mrb[0].mxu0
  %3641 = vmatprep.mubr.f32.mxu0 0.0
  %3642 = vmatmul.mubr.f32.gmra.mrb[0].mxu0 %v3358
  %v3643 = vpop.f32.mrb[0].mxu0
  %v3644 = vadd.f32 0.0, %v3643
  %v3645 = vpop.f32.mrb[0].mxu0
  %3646 = vmatprep.mubr.f32.mxu0 0.0
  %3647 = vmatmul.mubr.f32.gmra.mrb[0].mxu0 %v3361
  %v3648 = vpop.f32.mrb[0].mxu0
  %v3649 = vadd.f32 0.0, %v3648
  %v3650 = vpop.f32.mrb[0].mxu0
  %3651 = vmatprep.mubr.f32.mxu0 0.0
  %3652 = vmatmul.mubr.f32.gmra.mrb[0].mxu0 %v3364
  %v3653 = vpop.f32.mrb[0].mxu0
  %v3654 = vadd.f32 0.0, %v3653
  %v3655 = vpop.f32.mrb[0].mxu0
  %3656 = vmatprep.mubr.f32.mxu0 0.0
  %3657 = vmatmul.mubr.f32.gmra.mrb[0].mxu0 %v3367
  %v3658 = vpop.f32.mrb[0].mxu0
  %v3659 = vadd.f32 0.0, %v3658
  %v3660 = vpop.f32.mrb[0].mxu0
  %3661 = vmatprep.mubr.f32.mxu0 0.0
  %3662 = vmatmul.mubr.f32.gmra.mrb[0].mxu0 %v3370
  %v3663 = vpop.f32.mrb[0].mxu0
  %v3664 = vadd.f32 0.0, %v3663
  %v3665 = vpop.f32.mrb[0].mxu0
  %3666 = vmatprep.mubr.f32.mxu0 0.0
  %3667 = vmatmul.mubr.f32.gmra.mrb[0].mxu0 %v3373
  %v3668 = vpop.f32.mrb[0].mxu0
  %v3669 = vadd.f32 0.0, %v3668
  %v3670 = vpop.f32.mrb[0].mxu0
  %3671 = vmatprep.mubr.f32.mxu0 0.0
  %3672 = vmatmul.mubr.f32.gmra.mrb[0].mxu0 %v3376
  %v3673 = vpop.f32.mrb[0].mxu0
  %v3674 = vadd.f32 0.0, %v3673
  %v3675 = vpop.f32.mrb[0].mxu0
  %3676 = vmatprep.mubr.f32.mxu0 0.0
  %3677 = vmatmul.mubr.f32.gmra.mrb[0].mxu0 %v3379
  %v3678 = vpop.f32.mrb[0].mxu0
  %v3679 = vadd.f32 0.0, %v3678
  %v3680 = vpop.f32.mrb[0].mxu0
  %3681 = vmatprep.mubr.f32.mxu0 0.0
  %3682 = vmatmul.mubr.f32.gmra.mrb[0].mxu0 %v3382
  %v3683 = vpop.f32.mrb[0].mxu0
  %v3684 = vadd.f32 0.0, %v3683
  %v3685 = vpop.f32.mrb[0].mxu0
  %3686 = vmatprep.mubr.f32.mxu0 0.0
  %3687 = vmatmul.mubr.f32.gmra.mrb[0].mxu0 %v3385
  %v3688 = vpop.f32.mrb[0].mxu0
  %v3689 = vadd.f32 0.0, %v3688
  %v3690 = vpop.f32.mrb[0].mxu0
  %3691 = vdwg.mxu0
  %3693 = vset.pattern.permute.xlu0 0
  %3694 = vperm.xlu0 %3693, %v2244
  %v3695 = vpop.permute.xlu0 %3694
  %3698 = vset.pattern.permute.xlu0 0
  %3699 = vperm.xlu0 %3698, %v2245
  %v3700 = vpop.permute.xlu0 %3699
  %3703 = vset.pattern.permute.xlu0 0
  %3704 = vperm.xlu0 %3703, %v2246
  %v3705 = vpop.permute.xlu0 %3704
  %3708 = vset.pattern.permute.xlu0 0
  %3709 = vperm.xlu0 %3708, %v2247
  %v3710 = vpop.permute.xlu0 %3709
  %3713 = vset.pattern.permute.xlu0 0
  %3714 = vperm.xlu0 %3713, %v2248
  %v3715 = vpop.permute.xlu0 %3714
  %3718 = vset.pattern.permute.xlu0 0
  %3719 = vperm.xlu0 %3718, %v2249
  %v3720 = vpop.permute.xlu0 %3719
  %3723 = vset.pattern.permute.xlu0 0
  %3724 = vperm.xlu0 %3723, %v2250
  %v3725 = vpop.permute.xlu0 %3724
  %3728 = vset.pattern.permute.xlu0 0
  %3729 = vperm.xlu0 %3728, %v2251
  %v3730 = vpop.permute.xlu0 %3729
  %3733 = vset.pattern.permute.xlu0 0
  %3734 = vperm.xlu0 %3733, %v2252
  %v3735 = vpop.permute.xlu0 %3734
  %3738 = vset.pattern.permute.xlu0 0
  %3739 = vperm.xlu0 %3738, %v2253
  %v3740 = vpop.permute.xlu0 %3739
  %3743 = vset.pattern.permute.xlu0 0
  %3744 = vperm.xlu0 %3743, %v2254
  %v3745 = vpop.permute.xlu0 %3744
  %3748 = vset.pattern.permute.xlu0 0
  %3749 = vperm.xlu0 %3748, %v2255
  %v3750 = vpop.permute.xlu0 %3749
  %3753 = vset.pattern.permute.xlu0 0
  %3754 = vperm.xlu0 %3753, %v2256
  %v3755 = vpop.permute.xlu0 %3754
  %3758 = vset.pattern.permute.xlu0 0
  %3759 = vperm.xlu0 %3758, %v2257
  %v3760 = vpop.permute.xlu0 %3759
  %3763 = vset.pattern.permute.xlu0 0
  %3764 = vperm.xlu0 %3763, %v2258
  %v3765 = vpop.permute.xlu0 %3764
  %3768 = vset.pattern.permute.xlu0 0
  %3769 = vperm.xlu0 %3768, %v2259
  %v3770 = vpop.permute.xlu0 %3769
  %3773 = vset.pattern.permute.xlu0 0
  %3774 = vperm.xlu0 %3773, %v2260
  %v3775 = vpop.permute.xlu0 %3774
  %3778 = vset.pattern.permute.xlu0 0
  %3779 = vperm.xlu0 %3778, %v2261
  %v3780 = vpop.permute.xlu0 %3779
  %3783 = vset.pattern.permute.xlu0 0
  %3784 = vperm.xlu0 %3783, %v2262
  %v3785 = vpop.permute.xlu0 %3784
  %3788 = vset.pattern.permute.xlu0 0
  %3789 = vperm.xlu0 %3788, %v2263
  %v3790 = vpop.permute.xlu0 %3789
  %3793 = vset.pattern.permute.xlu0 0
  %3794 = vperm.xlu0 %3793, %v2264
  %v3795 = vpop.permute.xlu0 %3794
  %3798 = vset.pattern.permute.xlu0 0
  %3799 = vperm.xlu0 %3798, %v2265
  %v3800 = vpop.permute.xlu0 %3799
  %3803 = vset.pattern.permute.xlu0 0
  %3804 = vperm.xlu0 %3803, %v2266
  %v3805 = vpop.permute.xlu0 %3804
  %3808 = vset.pattern.permute.xlu0 0
  %3809 = vperm.xlu0 %3808, %v2267
  %v3810 = vpop.permute.xlu0 %3809
  %3813 = vset.pattern.permute.xlu0 0
  %3814 = vperm.xlu0 %3813, %v2268
  %v3815 = vpop.permute.xlu0 %3814
  %3818 = vset.pattern.permute.xlu0 0
  %3819 = vperm.xlu0 %3818, %v2269
  %v3820 = vpop.permute.xlu0 %3819
  %3823 = vset.pattern.permute.xlu0 0
  %3824 = vperm.xlu0 %3823, %v2270
  %v3825 = vpop.permute.xlu0 %3824
  %3828 = vset.pattern.permute.xlu0 0
  %3829 = vperm.xlu0 %3828, %v2271
  %v3830 = vpop.permute.xlu0 %3829
  %3833 = vset.pattern.permute.xlu0 0
  %3834 = vperm.xlu0 %3833, %v2272
  %v3835 = vpop.permute.xlu0 %3834
  %3838 = vset.pattern.permute.xlu0 0
  %3839 = vperm.xlu0 %3838, %v2273
  %v3840 = vpop.permute.xlu0 %3839
  %3843 = vset.pattern.permute.xlu0 0
  %3844 = vperm.xlu0 %3843, %v2274
  %v3845 = vpop.permute.xlu0 %3844
  %3848 = vset.pattern.permute.xlu0 0
  %3849 = vperm.xlu0 %3848, %v2275
  %v3850 = vpop.permute.xlu0 %3849
  %3853 = vset.pattern.permute.xlu0 0
  %3854 = vperm.xlu0 %3853, %v2276
  %v3855 = vpop.permute.xlu0 %3854
  %3858 = vset.pattern.permute.xlu0 0
  %3859 = vperm.xlu0 %3858, %v2277
  %v3860 = vpop.permute.xlu0 %3859
  %3863 = vset.pattern.permute.xlu0 0
  %3864 = vperm.xlu0 %3863, %v2278
  %v3865 = vpop.permute.xlu0 %3864
  %3868 = vset.pattern.permute.xlu0 0
  %3869 = vperm.xlu0 %3868, %v2279
  %v3870 = vpop.permute.xlu0 %3869
  %3873 = vset.pattern.permute.xlu0 0
  %3874 = vperm.xlu0 %3873, %v2280
  %v3875 = vpop.permute.xlu0 %3874
  %3878 = vset.pattern.permute.xlu0 0
  %3879 = vperm.xlu0 %3878, %v2281
  %v3880 = vpop.permute.xlu0 %3879
  %3883 = vset.pattern.permute.xlu0 0
  %3884 = vperm.xlu0 %3883, %v2282
  %v3885 = vpop.permute.xlu0 %3884
  %3888 = vset.pattern.permute.xlu0 0
  %3889 = vperm.xlu0 %3888, %v2283
  %v3890 = vpop.permute.xlu0 %3889
  %3893 = vset.pattern.permute.xlu0 0
  %3894 = vperm.xlu0 %3893, %v2284
  %v3895 = vpop.permute.xlu0 %3894
  %3898 = vset.pattern.permute.xlu0 0
  %3899 = vperm.xlu0 %3898, %v2285
  %v3900 = vpop.permute.xlu0 %3899
  %3903 = vset.pattern.permute.xlu0 0
  %3904 = vperm.xlu0 %3903, %v2286
  %v3905 = vpop.permute.xlu0 %3904
  %3908 = vset.pattern.permute.xlu0 0
  %3909 = vperm.xlu0 %3908, %v2287
  %v3910 = vpop.permute.xlu0 %3909
  %3913 = vset.pattern.permute.xlu0 0
  %3914 = vperm.xlu0 %3913, %v2288
  %v3915 = vpop.permute.xlu0 %3914
  %3918 = vset.pattern.permute.xlu0 0
  %3919 = vperm.xlu0 %3918, %v2289
  %v3920 = vpop.permute.xlu0 %3919
  %3923 = vset.pattern.permute.xlu0 0
  %3924 = vperm.xlu0 %3923, %v2290
  %v3925 = vpop.permute.xlu0 %3924
  %3928 = vset.pattern.permute.xlu0 0
  %3929 = vperm.xlu0 %3928, %v2291
  %v3930 = vpop.permute.xlu0 %3929
  %v3932 = vmul.f32 %v3454, %v3695
  %v3933 = vmul.f32 %v3459, %v3700
  %v3934 = vmul.f32 %v3464, %v3705
  %v3935 = vmul.f32 %v3469, %v3710
  %v3936 = vmul.f32 %v3474, %v3715
  %v3937 = vmul.f32 %v3479, %v3720
  %v3938 = vmul.f32 %v3484, %v3725
  %v3939 = vmul.f32 %v3489, %v3730
  %v3940 = vmul.f32 %v3494, %v3735
  %v3941 = vmul.f32 %v3499, %v3740
  %v3942 = vmul.f32 %v3504, %v3745
  %v3943 = vmul.f32 %v3509, %v3750
  %v3944 = vmul.f32 %v3514, %v3755
  %v3945 = vmul.f32 %v3519, %v3760
  %v3946 = vmul.f32 %v3524, %v3765
  %v3947 = vmul.f32 %v3529, %v3770
  %v3948 = vmul.f32 %v3534, %v3775
  %v3949 = vmul.f32 %v3539, %v3780
  %v3950 = vmul.f32 %v3544, %v3785
  %v3951 = vmul.f32 %v3549, %v3790
  %v3952 = vmul.f32 %v3554, %v3795
  %v3953 = vmul.f32 %v3559, %v3800
  %v3954 = vmul.f32 %v3564, %v3805
  %v3955 = vmul.f32 %v3569, %v3810
  %v3956 = vmul.f32 %v3574, %v3815
  %v3957 = vmul.f32 %v3579, %v3820
  %v3958 = vmul.f32 %v3584, %v3825
  %v3959 = vmul.f32 %v3589, %v3830
  %v3960 = vmul.f32 %v3594, %v3835
  %v3961 = vmul.f32 %v3599, %v3840
  %v3962 = vmul.f32 %v3604, %v3845
  %v3963 = vmul.f32 %v3609, %v3850
  %v3964 = vmul.f32 %v3614, %v3855
  %v3965 = vmul.f32 %v3619, %v3860
  %v3966 = vmul.f32 %v3624, %v3865
  %v3967 = vmul.f32 %v3629, %v3870
  %v3968 = vmul.f32 %v3634, %v3875
  %v3969 = vmul.f32 %v3639, %v3880
  %v3970 = vmul.f32 %v3644, %v3885
  %v3971 = vmul.f32 %v3649, %v3890
  %v3972 = vmul.f32 %v3654, %v3895
  %v3973 = vmul.f32 %v3659, %v3900
  %v3974 = vmul.f32 %v3664, %v3905
  %v3975 = vmul.f32 %v3669, %v3910
  %v3976 = vmul.f32 %v3674, %v3915
  %v3977 = vmul.f32 %v3679, %v3920
  %v3978 = vmul.f32 %v3684, %v3925
  %v3979 = vmul.f32 %v3689, %v3930
  %3980 = vst.msk [vmem:[%s25 + $0x100] sm:$0xff] %vm916, %v3932
  %3981 = vst.msk [vmem:[%s25 + $0x108] sm:$0xff] %vm916, %v3933
  %3982 = vst.msk [vmem:[%s25 + $0x110] sm:$0xff] %vm916, %v3934
  %3983 = vst.msk [vmem:[%s25 + $0x118] sm:$0xff] %vm916, %v3935
  %3984 = vst.msk [vmem:[%s25 + $0x120] sm:$0xff] %vm916, %v3936
  %3985 = vst.msk [vmem:[%s25 + $0x128] sm:$0xff] %vm916, %v3937
  %3986 = vst.msk [vmem:[%s25 + $0x130] sm:$0xff] %vm916, %v3938
  %3987 = vst.msk [vmem:[%s25 + $0x138] sm:$0xff] %vm916, %v3939
  %3988 = vst.msk [vmem:[%s25 + $0x140] sm:$0xff] %vm916, %v3940
  %3989 = vst.msk [vmem:[%s25 + $0x148] sm:$0xff] %vm916, %v3941
  %3990 = vst.msk [vmem:[%s25 + $0x150] sm:$0xff] %vm916, %v3942
  %3991 = vst.msk [vmem:[%s25 + $0x158] sm:$0xff] %vm916, %v3943
  %3992 = vst.msk [vmem:[%s25 + $0x160] sm:$0xff] %vm916, %v3944
  %3993 = vst.msk [vmem:[%s25 + $0x168] sm:$0xff] %vm916, %v3945
  %3994 = vst.msk [vmem:[%s25 + $0x170] sm:$0xff] %vm916, %v3946
  %3995 = vst.msk [vmem:[%s25 + $0x178] sm:$0xff] %vm916, %v3947
  %3996 = vst.msk [vmem:[%s25 + $0x180] sm:$0xff] %vm916, %v3948
  %3997 = vst.msk [vmem:[%s25 + $0x188] sm:$0xff] %vm916, %v3949
  %3998 = vst.msk [vmem:[%s25 + $0x190] sm:$0xff] %vm916, %v3950
  %3999 = vst.msk [vmem:[%s25 + $0x198] sm:$0xff] %vm916, %v3951
  %4000 = vst.msk [vmem:[%s25 + $0x1a0] sm:$0xff] %vm916, %v3952
  %4001 = vst.msk [vmem:[%s25 + $0x1a8] sm:$0xff] %vm916, %v3953
  %4002 = vst.msk [vmem:[%s25 + $0x1b0] sm:$0xff] %vm916, %v3954
  %4003 = vst.msk [vmem:[%s25 + $0x1b8] sm:$0xff] %vm916, %v3955
  %4004 = vst.msk [vmem:[%s25 + $0x1c0] sm:$0xff] %vm916, %v3956
  %4005 = vst.msk [vmem:[%s25 + $0x1c8] sm:$0xff] %vm916, %v3957
  %4006 = vst.msk [vmem:[%s25 + $0x1d0] sm:$0xff] %vm916, %v3958
  %4007 = vst.msk [vmem:[%s25 + $0x1d8] sm:$0xff] %vm916, %v3959
  %4008 = vst.msk [vmem:[%s25 + $0x1e0] sm:$0xff] %vm916, %v3960
  %4009 = vst.msk [vmem:[%s25 + $0x1e8] sm:$0xff] %vm916, %v3961
  %4010 = vst.msk [vmem:[%s25 + $0x1f0] sm:$0xff] %vm916, %v3962
  %4011 = vst.msk [vmem:[%s25 + $0x1f8] sm:$0xff] %vm916, %v3963
  %4012 = vst.msk [vmem:[%s25 + $0x200] sm:$0xff] %vm916, %v3964
  %4013 = vst.msk [vmem:[%s25 + $0x208] sm:$0xff] %vm916, %v3965
  %4014 = vst.msk [vmem:[%s25 + $0x210] sm:$0xff] %vm916, %v3966
  %4015 = vst.msk [vmem:[%s25 + $0x218] sm:$0xff] %vm916, %v3967
  %4016 = vst.msk [vmem:[%s25 + $0x220] sm:$0xff] %vm916, %v3968
  %4017 = vst.msk [vmem:[%s25 + $0x228] sm:$0xff] %vm916, %v3969
  %4018 = vst.msk [vmem:[%s25 + $0x230] sm:$0xff] %vm916, %v3970
  %4019 = vst.msk [vmem:[%s25 + $0x238] sm:$0xff] %vm916, %v3971
  %4020 = vst.msk [vmem:[%s25 + $0x240] sm:$0xff] %vm916, %v3972
  %4021 = vst.msk [vmem:[%s25 + $0x248] sm:$0xff] %vm916, %v3973
  %4022 = vst.msk [vmem:[%s25 + $0x250] sm:$0xff] %vm916, %v3974
  %4023 = vst.msk [vmem:[%s25 + $0x258] sm:$0xff] %vm916, %v3975
  %4024 = vst.msk [vmem:[%s25 + $0x260] sm:$0xff] %vm916, %v3976
  %4025 = vst.msk [vmem:[%s25 + $0x268] sm:$0xff] %vm916, %v3977
  %4026 = vst.msk [vmem:[%s25 + $0x270] sm:$0xff] %vm916, %v3978
  %4027 = vst.msk [vmem:[%s25 + $0x278] sm:$0xff] %vm916, %v3979
  %v4028 = vld [vmem:[%s15] sm:$0xff]
  %v4029 = vld [vmem:[%s15 + $0x8] sm:$0xff]
  %v4030 = vld [vmem:[%s15 + $0x10] sm:$0xff]
  %v4031 = vld [vmem:[%s15 + $0x18] sm:$0xff]
  %v4032 = vsel %vm3084, %v2145, 0
  %4034 = vmatprep.subr.mxu0 0.0
  %4035 = vmatpush1.msra.mxu0 %v4028
  %4036 = vmatprep.subr.mxu0 0.0
  %4037 = vmatpush1.msra.mxu0 %v4029
  %4038 = vmatprep.subr.mxu0 0.0
  %4039 = vmatpush1.msra.mxu0 %v4030
  %4040 = vmatprep.subr.mxu0 0.0
  %4041 = vmatpush1.msra.mxu0 %v4031
  %4042 = vmatprep.subr.mxu0 0.0
  %4043 = vmatpush1.msra.mxu0 0.0
  %4044 = vmatprep.subr.mxu0 0.0
  %4045 = vmatpush1.msra.mxu0 0.0
  %4046 = vmatprep.subr.mxu0 0.0
  %4047 = vmatpush1.msra.mxu0 0.0
  %4048 = vmatprep.subr.mxu0 0.0
  %4049 = vmatpush1.msra.mxu0 0.0
  %4050 = vmatprep.subr.mxu0 0.0
  %4051 = vmatpush1.msra.mxu0 0.0
  %4052 = vmatprep.subr.mxu0 0.0
  %4053 = vmatpush1.msra.mxu0 0.0
  %4054 = vmatprep.subr.mxu0 0.0
  %4055 = vmatpush1.msra.mxu0 0.0
  %4056 = vmatprep.subr.mxu0 0.0
  %4057 = vmatpush1.msra.mxu0 0.0
  %4058 = vmatprep.subr.mxu0 0.0
  %4059 = vmatpush1.msra.mxu0 0.0
  %4060 = vmatprep.subr.mxu0 0.0
  %4061 = vmatpush1.msra.mxu0 0.0
  %4062 = vmatprep.subr.mxu0 0.0
  %4063 = vmatpush1.msra.mxu0 0.0
  %4064 = vmatprep.subr.mxu0 0.0
  %4065 = vmatpush1.msra.mxu0 0.0
  %4066 = vmatprep.subr.mxu0 0.0
  %4067 = vmatpush1.msra.mxu0 0.0
  %4068 = vmatprep.subr.mxu0 0.0
  %4069 = vmatpush1.msra.mxu0 0.0
  %4070 = vmatprep.subr.mxu0 0.0
  %4071 = vmatpush1.msra.mxu0 0.0
  %4072 = vmatprep.subr.mxu0 0.0
  %4073 = vmatpush1.msra.mxu0 0.0
  %4074 = vmatprep.subr.mxu0 0.0
  %4075 = vmatpush1.msra.mxu0 0.0
  %4076 = vmatprep.subr.mxu0 0.0
  %4077 = vmatpush1.msra.mxu0 0.0
  %4078 = vmatprep.subr.mxu0 0.0
  %4079 = vmatpush1.msra.mxu0 0.0
  %4080 = vmatprep.subr.mxu0 0.0
  %4081 = vmatpush1.msra.mxu0 0.0
  %4082 = vmatprep.subr.mxu0 0.0
  %4083 = vmatpush1.msra.mxu0 0.0
  %4084 = vmatprep.subr.mxu0 0.0
  %4085 = vmatpush1.msra.mxu0 0.0
  %4086 = vmatprep.subr.mxu0 0.0
  %4087 = vmatpush1.msra.mxu0 0.0
  %4088 = vmatprep.subr.mxu0 0.0
  %4089 = vmatpush1.msra.mxu0 0.0
  %4090 = vmatprep.subr.mxu0 0.0
  %4091 = vmatpush1.msra.mxu0 0.0
  %4092 = vmatprep.subr.mxu0 0.0
  %4093 = vmatpush1.msra.mxu0 0.0
  %4094 = vmatprep.subr.mxu0 0.0
  %4095 = vmatpush1.msra.mxu0 0.0
  %4096 = vmatprep.subr.mxu0 0.0
  %4097 = vmatpush1.msra.mxu0 0.0
  %4098 = vmatprep.mubr.f32.mxu0 0.0
  %4099 = vmatmul.mubr.f32.gmra.mrb[0].mxu0 %v4032
  %v4100 = vpop.f32.mrb[0].mxu0
  %v4101 = vadd.f32 0.0, %v4100
  %v4102 = vpop.f32.mrb[0].mxu0
  %4103 = vdwg.mxu0
  %v4104 = vld [vmem:[%s16] sm:$0xff]
  %v4105 = vld [vmem:[%s16 + $0x8] sm:$0xff]
  %v4106 = vld [vmem:[%s16 + $0x10] sm:$0xff]
  %v4107 = vld [vmem:[%s16 + $0x18] sm:$0xff]
  %v4108 = vld [vmem:[%s16 + $0x20] sm:$0xff]
  %v4109 = vld [vmem:[%s16 + $0x28] sm:$0xff]
  %v4110 = vld [vmem:[%s16 + $0x30] sm:$0xff]
  %v4111 = vld [vmem:[%s16 + $0x38] sm:$0xff]
  %v4112 = vld [vmem:[%s16 + $0x40] sm:$0xff]
  %v4113 = vld [vmem:[%s16 + $0x48] sm:$0xff]
  %v4114 = vld [vmem:[%s16 + $0x50] sm:$0xff]
  %v4115 = vld [vmem:[%s16 + $0x58] sm:$0xff]
  %v4116 = vld [vmem:[%s16 + $0x60] sm:$0xff]
  %v4117 = vld [vmem:[%s16 + $0x68] sm:$0xff]
  %v4118 = vld [vmem:[%s16 + $0x70] sm:$0xff]
  %v4119 = vld [vmem:[%s16 + $0x78] sm:$0xff]
  %v4120 = vld [vmem:[%s16 + $0x80] sm:$0xff]
  %v4121 = vld [vmem:[%s16 + $0x88] sm:$0xff]
  %v4122 = vld [vmem:[%s16 + $0x90] sm:$0xff]
  %v4123 = vld [vmem:[%s16 + $0x98] sm:$0xff]
  %v4124 = vld [vmem:[%s16 + $0xa0] sm:$0xff]
  %v4125 = vld [vmem:[%s16 + $0xa8] sm:$0xff]
  %v4126 = vld [vmem:[%s16 + $0xb0] sm:$0xff]
  %v4127 = vld [vmem:[%s16 + $0xb8] sm:$0xff]
  %v4128 = vld [vmem:[%s16 + $0xc0] sm:$0xff]
  %v4129 = vld [vmem:[%s16 + $0xc8] sm:$0xff]
  %v4130 = vld [vmem:[%s16 + $0xd0] sm:$0xff]
  %v4131 = vld [vmem:[%s16 + $0xd8] sm:$0xff]
  %v4132 = vld [vmem:[%s16 + $0xe0] sm:$0xff]
  %v4133 = vld [vmem:[%s16 + $0xe8] sm:$0xff]
  %v4134 = vld [vmem:[%s16 + $0xf0] sm:$0xff]
  %v4135 = vld [vmem:[%s16 + $0xf8] sm:$0xff]
  %v4136 = vld [vmem:[%s17] sm:$0xff]
  %v4137 = vld [vmem:[%s17 + $0x8] sm:$0xff]
  %v4138 = vld [vmem:[%s17 + $0x10] sm:$0xff]
  %v4139 = vld [vmem:[%s17 + $0x18] sm:$0xff]
  %v4140 = vld [vmem:[%s17 + $0x20] sm:$0xff]
  %v4141 = vld [vmem:[%s17 + $0x28] sm:$0xff]
  %v4142 = vld [vmem:[%s17 + $0x30] sm:$0xff]
  %v4143 = vld [vmem:[%s17 + $0x38] sm:$0xff]
  %v4144 = vld [vmem:[%s17 + $0x40] sm:$0xff]
  %v4145 = vld [vmem:[%s17 + $0x48] sm:$0xff]
  %v4146 = vld [vmem:[%s17 + $0x50] sm:$0xff]
  %v4147 = vld [vmem:[%s17 + $0x58] sm:$0xff]
  %v4148 = vld [vmem:[%s17 + $0x60] sm:$0xff]
  %v4149 = vld [vmem:[%s17 + $0x68] sm:$0xff]
  %v4150 = vld [vmem:[%s17 + $0x70] sm:$0xff]
  %v4151 = vld [vmem:[%s17 + $0x78] sm:$0xff]
  %v4152 = vld [vmem:[%s17 + $0x80] sm:$0xff]
  %v4153 = vld [vmem:[%s17 + $0x88] sm:$0xff]
  %v4154 = vld [vmem:[%s17 + $0x90] sm:$0xff]
  %v4155 = vld [vmem:[%s17 + $0x98] sm:$0xff]
  %v4156 = vld [vmem:[%s17 + $0xa0] sm:$0xff]
  %v4157 = vld [vmem:[%s17 + $0xa8] sm:$0xff]
  %v4158 = vld [vmem:[%s17 + $0xb0] sm:$0xff]
  %v4159 = vld [vmem:[%s17 + $0xb8] sm:$0xff]
  %v4160 = vld [vmem:[%s17 + $0xc0] sm:$0xff]
  %v4161 = vld [vmem:[%s17 + $0xc8] sm:$0xff]
  %v4162 = vld [vmem:[%s17 + $0xd0] sm:$0xff]
  %v4163 = vld [vmem:[%s17 + $0xd8] sm:$0xff]
  %v4164 = vld [vmem:[%s17 + $0xe0] sm:$0xff]
  %v4165 = vld [vmem:[%s17 + $0xe8] sm:$0xff]
  %v4166 = vld [vmem:[%s17 + $0xf0] sm:$0xff]
  %v4167 = vld [vmem:[%s17 + $0xf8] sm:$0xff]
  %v4168 = vld [vmem:[%s18] sm:$0xff]
  %v4169 = vld [vmem:[%s18 + $0x8] sm:$0xff]
  %v4170 = vld [vmem:[%s18 + $0x10] sm:$0xff]
  %v4171 = vld [vmem:[%s18 + $0x18] sm:$0xff]
  %v4172 = vld [vmem:[%s18 + $0x20] sm:$0xff]
  %v4173 = vld [vmem:[%s18 + $0x28] sm:$0xff]
  %v4174 = vld [vmem:[%s18 + $0x30] sm:$0xff]
  %v4175 = vld [vmem:[%s18 + $0x38] sm:$0xff]
  %v4176 = vld [vmem:[%s18 + $0x40] sm:$0xff]
  %v4177 = vld [vmem:[%s18 + $0x48] sm:$0xff]
  %v4178 = vld [vmem:[%s18 + $0x50] sm:$0xff]
  %v4179 = vld [vmem:[%s18 + $0x58] sm:$0xff]
  %v4180 = vld [vmem:[%s18 + $0x60] sm:$0xff]
  %v4181 = vld [vmem:[%s18 + $0x68] sm:$0xff]
  %v4182 = vld [vmem:[%s18 + $0x70] sm:$0xff]
  %v4183 = vld [vmem:[%s18 + $0x78] sm:$0xff]
  %v4184 = vld [vmem:[%s18 + $0x80] sm:$0xff]
  %v4185 = vld [vmem:[%s18 + $0x88] sm:$0xff]
  %v4186 = vld [vmem:[%s18 + $0x90] sm:$0xff]
  %v4187 = vld [vmem:[%s18 + $0x98] sm:$0xff]
  %v4188 = vld [vmem:[%s18 + $0xa0] sm:$0xff]
  %v4189 = vld [vmem:[%s18 + $0xa8] sm:$0xff]
  %v4190 = vld [vmem:[%s18 + $0xb0] sm:$0xff]
  %v4191 = vld [vmem:[%s18 + $0xb8] sm:$0xff]
  %v4192 = vld [vmem:[%s18 + $0xc0] sm:$0xff]
  %v4193 = vld [vmem:[%s18 + $0xc8] sm:$0xff]
  %v4194 = vld [vmem:[%s18 + $0xd0] sm:$0xff]
  %v4195 = vld [vmem:[%s18 + $0xd8] sm:$0xff]
  %v4196 = vld [vmem:[%s18 + $0xe0] sm:$0xff]
  %v4197 = vld [vmem:[%s18 + $0xe8] sm:$0xff]
  %v4198 = vld [vmem:[%s18 + $0xf0] sm:$0xff]
  %v4199 = vld [vmem:[%s18 + $0xf8] sm:$0xff]
  %v4200 = vld [vmem:[%s19] sm:$0xff]
  %4202 = vset.pattern.permute.xlu0 0
  %4203 = vperm.xlu0 %4202, %v4136
  %v4204 = vpop.permute.xlu0 %4203
  %4207 = vset.pattern.permute.xlu0 0
  %4208 = vperm.xlu0 %4207, %v4137
  %v4209 = vpop.permute.xlu0 %4208
  %4212 = vset.pattern.permute.xlu0 0
  %4213 = vperm.xlu0 %4212, %v4138
  %v4214 = vpop.permute.xlu0 %4213
  %4217 = vset.pattern.permute.xlu0 0
  %4218 = vperm.xlu0 %4217, %v4139
  %v4219 = vpop.permute.xlu0 %4218
  %4222 = vset.pattern.permute.xlu0 0
  %4223 = vperm.xlu0 %4222, %v4140
  %v4224 = vpop.permute.xlu0 %4223
  %4227 = vset.pattern.permute.xlu0 0
  %4228 = vperm.xlu0 %4227, %v4141
  %v4229 = vpop.permute.xlu0 %4228
  %4232 = vset.pattern.permute.xlu0 0
  %4233 = vperm.xlu0 %4232, %v4142
  %v4234 = vpop.permute.xlu0 %4233
  %4237 = vset.pattern.permute.xlu0 0
  %4238 = vperm.xlu0 %4237, %v4143
  %v4239 = vpop.permute.xlu0 %4238
  %4242 = vset.pattern.permute.xlu0 0
  %4243 = vperm.xlu0 %4242, %v4144
  %v4244 = vpop.permute.xlu0 %4243
  %4247 = vset.pattern.permute.xlu0 0
  %4248 = vperm.xlu0 %4247, %v4145
  %v4249 = vpop.permute.xlu0 %4248
  %4252 = vset.pattern.permute.xlu0 0
  %4253 = vperm.xlu0 %4252, %v4146
  %v4254 = vpop.permute.xlu0 %4253
  %4257 = vset.pattern.permute.xlu0 0
  %4258 = vperm.xlu0 %4257, %v4147
  %v4259 = vpop.permute.xlu0 %4258
  %4262 = vset.pattern.permute.xlu0 0
  %4263 = vperm.xlu0 %4262, %v4148
  %v4264 = vpop.permute.xlu0 %4263
  %4267 = vset.pattern.permute.xlu0 0
  %4268 = vperm.xlu0 %4267, %v4149
  %v4269 = vpop.permute.xlu0 %4268
  %4272 = vset.pattern.permute.xlu0 0
  %4273 = vperm.xlu0 %4272, %v4150
  %v4274 = vpop.permute.xlu0 %4273
  %4277 = vset.pattern.permute.xlu0 0
  %4278 = vperm.xlu0 %4277, %v4151
  %v4279 = vpop.permute.xlu0 %4278
  %4282 = vset.pattern.permute.xlu0 0
  %4283 = vperm.xlu0 %4282, %v4152
  %v4284 = vpop.permute.xlu0 %4283
  %4287 = vset.pattern.permute.xlu0 0
  %4288 = vperm.xlu0 %4287, %v4153
  %v4289 = vpop.permute.xlu0 %4288
  %4292 = vset.pattern.permute.xlu0 0
  %4293 = vperm.xlu0 %4292, %v4154
  %v4294 = vpop.permute.xlu0 %4293
  %4297 = vset.pattern.permute.xlu0 0
  %4298 = vperm.xlu0 %4297, %v4155
  %v4299 = vpop.permute.xlu0 %4298
  %4302 = vset.pattern.permute.xlu0 0
  %4303 = vperm.xlu0 %4302, %v4156
  %v4304 = vpop.permute.xlu0 %4303
  %4307 = vset.pattern.permute.xlu0 0
  %4308 = vperm.xlu0 %4307, %v4157
  %v4309 = vpop.permute.xlu0 %4308
  %4312 = vset.pattern.permute.xlu0 0
  %4313 = vperm.xlu0 %4312, %v4158
  %v4314 = vpop.permute.xlu0 %4313
  %4317 = vset.pattern.permute.xlu0 0
  %4318 = vperm.xlu0 %4317, %v4159
  %v4319 = vpop.permute.xlu0 %4318
  %4322 = vset.pattern.permute.xlu0 0
  %4323 = vperm.xlu0 %4322, %v4160
  %v4324 = vpop.permute.xlu0 %4323
  %4327 = vset.pattern.permute.xlu0 0
  %4328 = vperm.xlu0 %4327, %v4161
  %v4329 = vpop.permute.xlu0 %4328
  %4332 = vset.pattern.permute.xlu0 0
  %4333 = vperm.xlu0 %4332, %v4162
  %v4334 = vpop.permute.xlu0 %4333
  %4337 = vset.pattern.permute.xlu0 0
  %4338 = vperm.xlu0 %4337, %v4163
  %v4339 = vpop.permute.xlu0 %4338
  %4342 = vset.pattern.permute.xlu0 0
  %4343 = vperm.xlu0 %4342, %v4164
  %v4344 = vpop.permute.xlu0 %4343
  %4347 = vset.pattern.permute.xlu0 0
  %4348 = vperm.xlu0 %4347, %v4165
  %v4349 = vpop.permute.xlu0 %4348
  %4352 = vset.pattern.permute.xlu0 0
  %4353 = vperm.xlu0 %4352, %v4166
  %v4354 = vpop.permute.xlu0 %4353
  %4357 = vset.pattern.permute.xlu0 0
  %4358 = vperm.xlu0 %4357, %v4167
  %v4359 = vpop.permute.xlu0 %4358
  %v4362 = vsel %vm214, %v4104, 0
  %v4365 = vsel %vm214, %v4105, 0
  %v4368 = vsel %vm214, %v4106, 0
  %v4371 = vsel %vm214, %v4107, 0
  %v4374 = vsel %vm214, %v4108, 0
  %v4377 = vsel %vm214, %v4109, 0
  %v4380 = vsel %vm214, %v4110, 0
  %v4383 = vsel %vm214, %v4111, 0
  %v4386 = vsel %vm214, %v4112, 0
  %v4389 = vsel %vm214, %v4113, 0
  %v4392 = vsel %vm214, %v4114, 0
  %v4395 = vsel %vm214, %v4115, 0
  %v4398 = vsel %vm214, %v4116, 0
  %v4401 = vsel %vm214, %v4117, 0
  %v4404 = vsel %vm214, %v4118, 0
  %v4407 = vsel %vm214, %v4119, 0
  %v4410 = vsel %vm214, %v4120, 0
  %v4413 = vsel %vm214, %v4121, 0
  %v4416 = vsel %vm214, %v4122, 0
  %v4419 = vsel %vm214, %v4123, 0
  %v4422 = vsel %vm214, %v4124, 0
  %v4425 = vsel %vm214, %v4125, 0
  %v4428 = vsel %vm214, %v4126, 0
  %v4431 = vsel %vm214, %v4127, 0
  %v4434 = vsel %vm214, %v4128, 0
  %v4437 = vsel %vm214, %v4129, 0
  %v4440 = vsel %vm214, %v4130, 0
  %v4443 = vsel %vm214, %v4131, 0
  %v4446 = vsel %vm214, %v4132, 0
  %v4449 = vsel %vm214, %v4133, 0
  %v4452 = vsel %vm214, %v4134, 0
  %v4455 = vsel %vm214, %v4135, 0
  %v4458 = vsel %vm239, %v4101, 0
  %4460 = vmatprep.subr.mxu0 0.0
  %4461 = vmatpush1.msra.mxu0 %v4458
  %4462 = vmatprep.subr.mxu0 0.0
  %4463 = vmatpush1.msra.mxu0 0.0
  %4464 = vmatprep.subr.mxu0 0.0
  %4465 = vmatpush1.msra.mxu0 0.0
  %4466 = vmatprep.subr.mxu0 0.0
  %4467 = vmatpush1.msra.mxu0 0.0
  %4468 = vmatprep.subr.mxu0 0.0
  %4469 = vmatpush1.msra.mxu0 0.0
  %4470 = vmatprep.subr.mxu0 0.0
  %4471 = vmatpush1.msra.mxu0 0.0
  %4472 = vmatprep.subr.mxu0 0.0
  %4473 = vmatpush1.msra.mxu0 0.0
  %4474 = vmatprep.subr.mxu0 0.0
  %4475 = vmatpush1.msra.mxu0 0.0
  %4476 = vmatprep.subr.mxu0 0.0
  %4477 = vmatpush1.msra.mxu0 0.0
  %4478 = vmatprep.subr.mxu0 0.0
  %4479 = vmatpush1.msra.mxu0 0.0
  %4480 = vmatprep.subr.mxu0 0.0
  %4481 = vmatpush1.msra.mxu0 0.0
  %4482 = vmatprep.subr.mxu0 0.0
  %4483 = vmatpush1.msra.mxu0 0.0
  %4484 = vmatprep.subr.mxu0 0.0
  %4485 = vmatpush1.msra.mxu0 0.0
  %4486 = vmatprep.subr.mxu0 0.0
  %4487 = vmatpush1.msra.mxu0 0.0
  %4488 = vmatprep.subr.mxu0 0.0
  %4489 = vmatpush1.msra.mxu0 0.0
  %4490 = vmatprep.subr.mxu0 0.0
  %4491 = vmatpush1.msra.mxu0 0.0
  %4492 = vmatprep.subr.mxu0 0.0
  %4493 = vmatpush1.msra.mxu0 0.0
  %4494 = vmatprep.subr.mxu0 0.0
  %4495 = vmatpush1.msra.mxu0 0.0
  %4496 = vmatprep.subr.mxu0 0.0
  %4497 = vmatpush1.msra.mxu0 0.0
  %4498 = vmatprep.subr.mxu0 0.0
  %4499 = vmatpush1.msra.mxu0 0.0
  %4500 = vmatprep.subr.mxu0 0.0
  %4501 = vmatpush1.msra.mxu0 0.0
  %4502 = vmatprep.subr.mxu0 0.0
  %4503 = vmatpush1.msra.mxu0 0.0
  %4504 = vmatprep.subr.mxu0 0.0
  %4505 = vmatpush1.msra.mxu0 0.0
  %4506 = vmatprep.subr.mxu0 0.0
  %4507 = vmatpush1.msra.mxu0 0.0
  %4508 = vmatprep.subr.mxu0 0.0
  %4509 = vmatpush1.msra.mxu0 0.0
  %4510 = vmatprep.subr.mxu0 0.0
  %4511 = vmatpush1.msra.mxu0 0.0
  %4512 = vmatprep.subr.mxu0 0.0
  %4513 = vmatpush1.msra.mxu0 0.0
  %4514 = vmatprep.subr.mxu0 0.0
  %4515 = vmatpush1.msra.mxu0 0.0
  %4516 = vmatprep.subr.mxu0 0.0
  %4517 = vmatpush1.msra.mxu0 0.0
  %4518 = vmatprep.subr.mxu0 0.0
  %4519 = vmatpush1.msra.mxu0 0.0
  %4520 = vmatprep.subr.mxu0 0.0
  %4521 = vmatpush1.msra.mxu0 0.0
  %4522 = vmatprep.subr.mxu0 0.0
  %4523 = vmatpush1.msra.mxu0 0.0
  %4524 = vmatprep.mubr.f32.mxu0 0.0
  %4525 = vmatmul.mubr.f32.gmra.mrb[0].mxu0 %v4362
  %v4526 = vpop.f32.mrb[0].mxu0
  %v4527 = vadd.f32 %v4204, %v4526
  %v4528 = vpop.f32.mrb[0].mxu0
  %4529 = vmatprep.mubr.f32.mxu0 0.0
  %4530 = vmatmul.mubr.f32.gmra.mrb[0].mxu0 %v4365
  %v4531 = vpop.f32.mrb[0].mxu0
  %v4532 = vadd.f32 %v4209, %v4531
  %v4533 = vpop.f32.mrb[0].mxu0
  %4534 = vmatprep.mubr.f32.mxu0 0.0
  %4535 = vmatmul.mubr.f32.gmra.mrb[0].mxu0 %v4368
  %v4536 = vpop.f32.mrb[0].mxu0
  %v4537 = vadd.f32 %v4214, %v4536
  %v4538 = vpop.f32.mrb[0].mxu0
  %4539 = vmatprep.mubr.f32.mxu0 0.0
  %4540 = vmatmul.mubr.f32.gmra.mrb[0].mxu0 %v4371
  %v4541 = vpop.f32.mrb[0].mxu0
  %v4542 = vadd.f32 %v4219, %v4541
  %v4543 = vpop.f32.mrb[0].mxu0
  %4544 = vmatprep.mubr.f32.mxu0 0.0
  %4545 = vmatmul.mubr.f32.gmra.mrb[0].mxu0 %v4374
  %v4546 = vpop.f32.mrb[0].mxu0
  %v4547 = vadd.f32 %v4224, %v4546
  %v4548 = vpop.f32.mrb[0].mxu0
  %4549 = vmatprep.mubr.f32.mxu0 0.0
  %4550 = vmatmul.mubr.f32.gmra.mrb[0].mxu0 %v4377
  %v4551 = vpop.f32.mrb[0].mxu0
  %v4552 = vadd.f32 %v4229, %v4551
  %v4553 = vpop.f32.mrb[0].mxu0
  %4554 = vmatprep.mubr.f32.mxu0 0.0
  %4555 = vmatmul.mubr.f32.gmra.mrb[0].mxu0 %v4380
  %v4556 = vpop.f32.mrb[0].mxu0
  %v4557 = vadd.f32 %v4234, %v4556
  %v4558 = vpop.f32.mrb[0].mxu0
  %4559 = vmatprep.mubr.f32.mxu0 0.0
  %4560 = vmatmul.mubr.f32.gmra.mrb[0].mxu0 %v4383
  %v4561 = vpop.f32.mrb[0].mxu0
  %v4562 = vadd.f32 %v4239, %v4561
  %v4563 = vpop.f32.mrb[0].mxu0
  %4564 = vmatprep.mubr.f32.mxu0 0.0
  %4565 = vmatmul.mubr.f32.gmra.mrb[0].mxu0 %v4386
  %v4566 = vpop.f32.mrb[0].mxu0
  %v4567 = vadd.f32 %v4244, %v4566
  %v4568 = vpop.f32.mrb[0].mxu0
  %4569 = vmatprep.mubr.f32.mxu0 0.0
  %4570 = vmatmul.mubr.f32.gmra.mrb[0].mxu0 %v4389
  %v4571 = vpop.f32.mrb[0].mxu0
  %v4572 = vadd.f32 %v4249, %v4571
  %v4573 = vpop.f32.mrb[0].mxu0
  %4574 = vmatprep.mubr.f32.mxu0 0.0
  %4575 = vmatmul.mubr.f32.gmra.mrb[0].mxu0 %v4392
  %v4576 = vpop.f32.mrb[0].mxu0
  %v4577 = vadd.f32 %v4254, %v4576
  %v4578 = vpop.f32.mrb[0].mxu0
  %4579 = vmatprep.mubr.f32.mxu0 0.0
  %4580 = vmatmul.mubr.f32.gmra.mrb[0].mxu0 %v4395
  %v4581 = vpop.f32.mrb[0].mxu0
  %v4582 = vadd.f32 %v4259, %v4581
  %v4583 = vpop.f32.mrb[0].mxu0
  %4584 = vmatprep.mubr.f32.mxu0 0.0
  %4585 = vmatmul.mubr.f32.gmra.mrb[0].mxu0 %v4398
  %v4586 = vpop.f32.mrb[0].mxu0
  %v4587 = vadd.f32 %v4264, %v4586
  %v4588 = vpop.f32.mrb[0].mxu0
  %4589 = vmatprep.mubr.f32.mxu0 0.0
  %4590 = vmatmul.mubr.f32.gmra.mrb[0].mxu0 %v4401
  %v4591 = vpop.f32.mrb[0].mxu0
  %v4592 = vadd.f32 %v4269, %v4591
  %v4593 = vpop.f32.mrb[0].mxu0
  %4594 = vmatprep.mubr.f32.mxu0 0.0
  %4595 = vmatmul.mubr.f32.gmra.mrb[0].mxu0 %v4404
  %v4596 = vpop.f32.mrb[0].mxu0
  %v4597 = vadd.f32 %v4274, %v4596
  %v4598 = vpop.f32.mrb[0].mxu0
  %4599 = vmatprep.mubr.f32.mxu0 0.0
  %4600 = vmatmul.mubr.f32.gmra.mrb[0].mxu0 %v4407
  %v4601 = vpop.f32.mrb[0].mxu0
  %v4602 = vadd.f32 %v4279, %v4601
  %v4603 = vpop.f32.mrb[0].mxu0
  %4604 = vmatprep.mubr.f32.mxu0 0.0
  %4605 = vmatmul.mubr.f32.gmra.mrb[0].mxu0 %v4410
  %v4606 = vpop.f32.mrb[0].mxu0
  %v4607 = vadd.f32 %v4284, %v4606
  %v4608 = vpop.f32.mrb[0].mxu0
  %4609 = vmatprep.mubr.f32.mxu0 0.0
  %4610 = vmatmul.mubr.f32.gmra.mrb[0].mxu0 %v4413
  %v4611 = vpop.f32.mrb[0].mxu0
  %v4612 = vadd.f32 %v4289, %v4611
  %v4613 = vpop.f32.mrb[0].mxu0
  %4614 = vmatprep.mubr.f32.mxu0 0.0
  %4615 = vmatmul.mubr.f32.gmra.mrb[0].mxu0 %v4416
  %v4616 = vpop.f32.mrb[0].mxu0
  %v4617 = vadd.f32 %v4294, %v4616
  %v4618 = vpop.f32.mrb[0].mxu0
  %4619 = vmatprep.mubr.f32.mxu0 0.0
  %4620 = vmatmul.mubr.f32.gmra.mrb[0].mxu0 %v4419
  %v4621 = vpop.f32.mrb[0].mxu0
  %v4622 = vadd.f32 %v4299, %v4621
  %v4623 = vpop.f32.mrb[0].mxu0
  %4624 = vmatprep.mubr.f32.mxu0 0.0
  %4625 = vmatmul.mubr.f32.gmra.mrb[0].mxu0 %v4422
  %v4626 = vpop.f32.mrb[0].mxu0
  %v4627 = vadd.f32 %v4304, %v4626
  %v4628 = vpop.f32.mrb[0].mxu0
  %4629 = vmatprep.mubr.f32.mxu0 0.0
  %4630 = vmatmul.mubr.f32.gmra.mrb[0].mxu0 %v4425
  %v4631 = vpop.f32.mrb[0].mxu0
  %v4632 = vadd.f32 %v4309, %v4631
  %v4633 = vpop.f32.mrb[0].mxu0
  %4634 = vmatprep.mubr.f32.mxu0 0.0
  %4635 = vmatmul.mubr.f32.gmra.mrb[0].mxu0 %v4428
  %v4636 = vpop.f32.mrb[0].mxu0
  %v4637 = vadd.f32 %v4314, %v4636
  %v4638 = vpop.f32.mrb[0].mxu0
  %4639 = vmatprep.mubr.f32.mxu0 0.0
  %4640 = vmatmul.mubr.f32.gmra.mrb[0].mxu0 %v4431
  %v4641 = vpop.f32.mrb[0].mxu0
  %v4642 = vadd.f32 %v4319, %v4641
  %v4643 = vpop.f32.mrb[0].mxu0
  %4644 = vmatprep.mubr.f32.mxu0 0.0
  %4645 = vmatmul.mubr.f32.gmra.mrb[0].mxu0 %v4434
  %v4646 = vpop.f32.mrb[0].mxu0
  %v4647 = vadd.f32 %v4324, %v4646
  %v4648 = vpop.f32.mrb[0].mxu0
  %4649 = vmatprep.mubr.f32.mxu0 0.0
  %4650 = vmatmul.mubr.f32.gmra.mrb[0].mxu0 %v4437
  %v4651 = vpop.f32.mrb[0].mxu0
  %v4652 = vadd.f32 %v4329, %v4651
  %v4653 = vpop.f32.mrb[0].mxu0
  %4654 = vmatprep.mubr.f32.mxu0 0.0
  %4655 = vmatmul.mubr.f32.gmra.mrb[0].mxu0 %v4440
  %v4656 = vpop.f32.mrb[0].mxu0
  %v4657 = vadd.f32 %v4334, %v4656
  %v4658 = vpop.f32.mrb[0].mxu0
  %4659 = vmatprep.mubr.f32.mxu0 0.0
  %4660 = vmatmul.mubr.f32.gmra.mrb[0].mxu0 %v4443
  %v4661 = vpop.f32.mrb[0].mxu0
  %v4662 = vadd.f32 %v4339, %v4661
  %v4663 = vpop.f32.mrb[0].mxu0
  %4664 = vmatprep.mubr.f32.mxu0 0.0
  %4665 = vmatmul.mubr.f32.gmra.mrb[0].mxu0 %v4446
  %v4666 = vpop.f32.mrb[0].mxu0
  %v4667 = vadd.f32 %v4344, %v4666
  %v4668 = vpop.f32.mrb[0].mxu0
  %4669 = vmatprep.mubr.f32.mxu0 0.0
  %4670 = vmatmul.mubr.f32.gmra.mrb[0].mxu0 %v4449
  %v4671 = vpop.f32.mrb[0].mxu0
  %v4672 = vadd.f32 %v4349, %v4671
  %v4673 = vpop.f32.mrb[0].mxu0
  %4674 = vmatprep.mubr.f32.mxu0 0.0
  %4675 = vmatmul.mubr.f32.gmra.mrb[0].mxu0 %v4452
  %v4676 = vpop.f32.mrb[0].mxu0
  %v4677 = vadd.f32 %v4354, %v4676
  %v4678 = vpop.f32.mrb[0].mxu0
  %4679 = vmatprep.mubr.f32.mxu0 0.0
  %4680 = vmatmul.mubr.f32.gmra.mrb[0].mxu0 %v4455
  %v4681 = vpop.f32.mrb[0].mxu0
  %v4682 = vadd.f32 %v4359, %v4681
  %v4683 = vpop.f32.mrb[0].mxu0
  %4684 = vdwg.mxu0
  %v4685 = vmax.f32 %v4527, 0.0
  %v4686 = vmax.f32 %v4532, 0.0
  %v4687 = vmax.f32 %v4537, 0.0
  %v4688 = vmax.f32 %v4542, 0.0
  %v4689 = vmax.f32 %v4547, 0.0
  %v4690 = vmax.f32 %v4552, 0.0
  %v4691 = vmax.f32 %v4557, 0.0
  %v4692 = vmax.f32 %v4562, 0.0
  %v4693 = vmax.f32 %v4567, 0.0
  %v4694 = vmax.f32 %v4572, 0.0
  %v4695 = vmax.f32 %v4577, 0.0
  %v4696 = vmax.f32 %v4582, 0.0
  %v4697 = vmax.f32 %v4587, 0.0
  %v4698 = vmax.f32 %v4592, 0.0
  %v4699 = vmax.f32 %v4597, 0.0
  %v4700 = vmax.f32 %v4602, 0.0
  %v4701 = vmax.f32 %v4607, 0.0
  %v4702 = vmax.f32 %v4612, 0.0
  %v4703 = vmax.f32 %v4617, 0.0
  %v4704 = vmax.f32 %v4622, 0.0
  %v4705 = vmax.f32 %v4627, 0.0
  %v4706 = vmax.f32 %v4632, 0.0
  %v4707 = vmax.f32 %v4637, 0.0
  %v4708 = vmax.f32 %v4642, 0.0
  %v4709 = vmax.f32 %v4647, 0.0
  %v4710 = vmax.f32 %v4652, 0.0
  %v4711 = vmax.f32 %v4657, 0.0
  %v4712 = vmax.f32 %v4662, 0.0
  %v4713 = vmax.f32 %v4667, 0.0
  %v4714 = vmax.f32 %v4672, 0.0
  %v4715 = vmax.f32 %v4677, 0.0
  %v4716 = vmax.f32 %v4682, 0.0
  %v4717 = vmul.f32 %v4685, %v4685
  %v4718 = vmul.f32 %v4686, %v4686
  %v4719 = vmul.f32 %v4687, %v4687
  %v4720 = vmul.f32 %v4688, %v4688
  %v4721 = vmul.f32 %v4689, %v4689
  %v4722 = vmul.f32 %v4690, %v4690
  %v4723 = vmul.f32 %v4691, %v4691
  %v4724 = vmul.f32 %v4692, %v4692
  %v4725 = vmul.f32 %v4693, %v4693
  %v4726 = vmul.f32 %v4694, %v4694
  %v4727 = vmul.f32 %v4695, %v4695
  %v4728 = vmul.f32 %v4696, %v4696
  %v4729 = vmul.f32 %v4697, %v4697
  %v4730 = vmul.f32 %v4698, %v4698
  %v4731 = vmul.f32 %v4699, %v4699
  %v4732 = vmul.f32 %v4700, %v4700
  %v4733 = vmul.f32 %v4701, %v4701
  %v4734 = vmul.f32 %v4702, %v4702
  %v4735 = vmul.f32 %v4703, %v4703
  %v4736 = vmul.f32 %v4704, %v4704
  %v4737 = vmul.f32 %v4705, %v4705
  %v4738 = vmul.f32 %v4706, %v4706
  %v4739 = vmul.f32 %v4707, %v4707
  %v4740 = vmul.f32 %v4708, %v4708
  %v4741 = vmul.f32 %v4709, %v4709
  %v4742 = vmul.f32 %v4710, %v4710
  %v4743 = vmul.f32 %v4711, %v4711
  %v4744 = vmul.f32 %v4712, %v4712
  %v4745 = vmul.f32 %v4713, %v4713
  %v4746 = vmul.f32 %v4714, %v4714
  %v4747 = vmul.f32 %v4715, %v4715
  %v4748 = vmul.f32 %v4716, %v4716
  %vm4749 = vcmask 64512
  %v4750 = vsel %vm4749, %v4717, 0.0
  %v4751 = vsel %vm4749, %v4718, 0.0
  %v4752 = vadd.f32 %v4750, %v4751
  %v4753 = vsel %vm4749, %v4719, 0.0
  %v4754 = vadd.f32 %v4752, %v4753
  %v4755 = vsel %vm4749, %v4720, 0.0
  %v4756 = vadd.f32 %v4754, %v4755
  %v4757 = vsel %vm4749, %v4721, 0.0
  %v4758 = vadd.f32 %v4756, %v4757
  %v4759 = vsel %vm4749, %v4722, 0.0
  %v4760 = vadd.f32 %v4758, %v4759
  %v4761 = vsel %vm4749, %v4723, 0.0
  %v4762 = vadd.f32 %v4760, %v4761
  %v4763 = vsel %vm4749, %v4724, 0.0
  %v4764 = vadd.f32 %v4762, %v4763
  %v4765 = vsel %vm4749, %v4725, 0.0
  %v4766 = vadd.f32 %v4764, %v4765
  %v4767 = vsel %vm4749, %v4726, 0.0
  %v4768 = vadd.f32 %v4766, %v4767
  %v4769 = vsel %vm4749, %v4727, 0.0
  %v4770 = vadd.f32 %v4768, %v4769
  %v4771 = vsel %vm4749, %v4728, 0.0
  %v4772 = vadd.f32 %v4770, %v4771
  %v4773 = vsel %vm4749, %v4729, 0.0
  %v4774 = vadd.f32 %v4772, %v4773
  %v4775 = vsel %vm4749, %v4730, 0.0
  %v4776 = vadd.f32 %v4774, %v4775
  %v4777 = vsel %vm4749, %v4731, 0.0
  %v4778 = vadd.f32 %v4776, %v4777
  %v4779 = vsel %vm4749, %v4732, 0.0
  %v4780 = vadd.f32 %v4778, %v4779
  %v4781 = vsel %vm4749, %v4733, 0.0
  %v4782 = vadd.f32 %v4780, %v4781
  %v4783 = vsel %vm4749, %v4734, 0.0
  %v4784 = vadd.f32 %v4782, %v4783
  %v4785 = vsel %vm4749, %v4735, 0.0
  %v4786 = vadd.f32 %v4784, %v4785
  %v4787 = vsel %vm4749, %v4736, 0.0
  %v4788 = vadd.f32 %v4786, %v4787
  %v4789 = vsel %vm4749, %v4737, 0.0
  %v4790 = vadd.f32 %v4788, %v4789
  %v4791 = vsel %vm4749, %v4738, 0.0
  %v4792 = vadd.f32 %v4790, %v4791
  %v4793 = vsel %vm4749, %v4739, 0.0
  %v4794 = vadd.f32 %v4792, %v4793
  %v4795 = vsel %vm4749, %v4740, 0.0
  %v4796 = vadd.f32 %v4794, %v4795
  %v4797 = vsel %vm4749, %v4741, 0.0
  %v4798 = vadd.f32 %v4796, %v4797
  %v4799 = vsel %vm4749, %v4742, 0.0
  %v4800 = vadd.f32 %v4798, %v4799
  %v4801 = vsel %vm4749, %v4743, 0.0
  %v4802 = vadd.f32 %v4800, %v4801
  %v4803 = vsel %vm4749, %v4744, 0.0
  %v4804 = vadd.f32 %v4802, %v4803
  %v4805 = vsel %vm4749, %v4745, 0.0
  %v4806 = vadd.f32 %v4804, %v4805
  %v4807 = vsel %vm4749, %v4746, 0.0
  %v4808 = vadd.f32 %v4806, %v4807
  %v4809 = vsel %vm4749, %v4747, 0.0
  %v4810 = vadd.f32 %v4808, %v4809
  %v4811 = vsel %vm4749, %v4748, 0.0
  %v4812 = vadd.f32 %v4810, %v4811
  %v4813 = vrot.slane %v4812, 4
  %v4814 = vadd.f32 %v4812, %v4813
  %v4815 = vrot.slane %v4814, 2
  %v4816 = vadd.f32 %v4814, %v4815
  %v4817 = vrot.slane %v4816, 1
  %v4818 = vadd.f32 %v4816, %v4817
  %v4819 = vrsqrt.pop %v4818
  %v4820 = vmul.f32 %v4818, %v4819
  %vm4821 = vcmp.eq.f32.partialorder %v4818, inf
  %v4822 = vsel %vm4821, %v4818, %v4820
  %vm4823 = vcmp.eq.f32.partialorder %v4818, 0.0
  %v4824 = vand.u32 %v4818, 2147483648
  %v4825 = vsel %vm4823, %v4824, %v4822
  %v4826 = vadd.f32 %v4825, 1e-10
  %v4827 = vrcp.pop %v4826
  %v4828 = vmul.f32 %v4685, %v4827
  %v4829 = vmul.f32 %v4686, %v4827
  %v4830 = vmul.f32 %v4687, %v4827
  %v4831 = vmul.f32 %v4688, %v4827
  %v4832 = vmul.f32 %v4689, %v4827
  %v4833 = vmul.f32 %v4690, %v4827
  %v4834 = vmul.f32 %v4691, %v4827
  %v4835 = vmul.f32 %v4692, %v4827
  %v4836 = vmul.f32 %v4693, %v4827
  %v4837 = vmul.f32 %v4694, %v4827
  %v4838 = vmul.f32 %v4695, %v4827
  %v4839 = vmul.f32 %v4696, %v4827
  %v4840 = vmul.f32 %v4697, %v4827
  %v4841 = vmul.f32 %v4698, %v4827
  %v4842 = vmul.f32 %v4699, %v4827
  %v4843 = vmul.f32 %v4700, %v4827
  %v4844 = vmul.f32 %v4701, %v4827
  %v4845 = vmul.f32 %v4702, %v4827
  %v4846 = vmul.f32 %v4703, %v4827
  %v4847 = vmul.f32 %v4704, %v4827
  %v4848 = vmul.f32 %v4705, %v4827
  %v4849 = vmul.f32 %v4706, %v4827
  %v4850 = vmul.f32 %v4707, %v4827
  %v4851 = vmul.f32 %v4708, %v4827
  %v4852 = vmul.f32 %v4709, %v4827
  %v4853 = vmul.f32 %v4710, %v4827
  %v4854 = vmul.f32 %v4711, %v4827
  %v4855 = vmul.f32 %v4712, %v4827
  %v4856 = vmul.f32 %v4713, %v4827
  %v4857 = vmul.f32 %v4714, %v4827
  %v4858 = vmul.f32 %v4715, %v4827
  %v4859 = vmul.f32 %v4716, %v4827
  %v4861 = vsel %vm4749, %v4828, 0
  %v4864 = vsel %vm4749, %v4829, 0
  %v4867 = vsel %vm4749, %v4830, 0
  %v4870 = vsel %vm4749, %v4831, 0
  %v4873 = vsel %vm4749, %v4832, 0
  %v4876 = vsel %vm4749, %v4833, 0
  %v4879 = vsel %vm4749, %v4834, 0
  %v4882 = vsel %vm4749, %v4835, 0
  %v4885 = vsel %vm4749, %v4836, 0
  %v4888 = vsel %vm4749, %v4837, 0
  %v4891 = vsel %vm4749, %v4838, 0
  %v4894 = vsel %vm4749, %v4839, 0
  %v4897 = vsel %vm4749, %v4840, 0
  %v4900 = vsel %vm4749, %v4841, 0
  %v4903 = vsel %vm4749, %v4842, 0
  %v4906 = vsel %vm4749, %v4843, 0
  %v4909 = vsel %vm4749, %v4844, 0
  %v4912 = vsel %vm4749, %v4845, 0
  %v4915 = vsel %vm4749, %v4846, 0
  %v4918 = vsel %vm4749, %v4847, 0
  %v4921 = vsel %vm4749, %v4848, 0
  %v4924 = vsel %vm4749, %v4849, 0
  %v4927 = vsel %vm4749, %v4850, 0
  %v4930 = vsel %vm4749, %v4851, 0
  %v4933 = vsel %vm4749, %v4852, 0
  %v4936 = vsel %vm4749, %v4853, 0
  %v4939 = vsel %vm4749, %v4854, 0
  %v4942 = vsel %vm4749, %v4855, 0
  %v4945 = vsel %vm4749, %v4856, 0
  %v4948 = vsel %vm4749, %v4857, 0
  %v4951 = vsel %vm4749, %v4858, 0
  %v4954 = vsel %vm4749, %v4859, 0
  %4956 = vmatprep.subr.mxu0 0.0
  %4957 = vmatpush1.msra.mxu0 %v4200
  %4958 = vmatprep.subr.mxu0 0.0
  %4959 = vmatpush1.msra.mxu0 0.0
  %4960 = vmatprep.subr.mxu0 0.0
  %4961 = vmatpush1.msra.mxu0 0.0
  %4962 = vmatprep.subr.mxu0 0.0
  %4963 = vmatpush1.msra.mxu0 0.0
  %4964 = vmatprep.subr.mxu0 0.0
  %4965 = vmatpush1.msra.mxu0 0.0
  %4966 = vmatprep.subr.mxu0 0.0
  %4967 = vmatpush1.msra.mxu0 0.0
  %4968 = vmatprep.subr.mxu0 0.0
  %4969 = vmatpush1.msra.mxu0 0.0
  %4970 = vmatprep.subr.mxu0 0.0
  %4971 = vmatpush1.msra.mxu0 0.0
  %4972 = vmatprep.subr.mxu0 0.0
  %4973 = vmatpush1.msra.mxu0 0.0
  %4974 = vmatprep.subr.mxu0 0.0
  %4975 = vmatpush1.msra.mxu0 0.0
  %4976 = vmatprep.subr.mxu0 0.0
  %4977 = vmatpush1.msra.mxu0 0.0
  %4978 = vmatprep.subr.mxu0 0.0
  %4979 = vmatpush1.msra.mxu0 0.0
  %4980 = vmatprep.subr.mxu0 0.0
  %4981 = vmatpush1.msra.mxu0 0.0
  %4982 = vmatprep.subr.mxu0 0.0
  %4983 = vmatpush1.msra.mxu0 0.0
  %4984 = vmatprep.subr.mxu0 0.0
  %4985 = vmatpush1.msra.mxu0 0.0
  %4986 = vmatprep.subr.mxu0 0.0
  %4987 = vmatpush1.msra.mxu0 0.0
  %4988 = vmatprep.subr.mxu0 0.0
  %4989 = vmatpush1.msra.mxu0 0.0
  %4990 = vmatprep.subr.mxu0 0.0
  %4991 = vmatpush1.msra.mxu0 0.0
  %4992 = vmatprep.subr.mxu0 0.0
  %4993 = vmatpush1.msra.mxu0 0.0
  %4994 = vmatprep.subr.mxu0 0.0
  %4995 = vmatpush1.msra.mxu0 0.0
  %4996 = vmatprep.subr.mxu0 0.0
  %4997 = vmatpush1.msra.mxu0 0.0
  %4998 = vmatprep.subr.mxu0 0.0
  %4999 = vmatpush1.msra.mxu0 0.0
  %5000 = vmatprep.subr.mxu0 0.0
  %5001 = vmatpush1.msra.mxu0 0.0
  %5002 = vmatprep.subr.mxu0 0.0
  %5003 = vmatpush1.msra.mxu0 0.0
  %5004 = vmatprep.subr.mxu0 0.0
  %5005 = vmatpush1.msra.mxu0 0.0
  %5006 = vmatprep.subr.mxu0 0.0
  %5007 = vmatpush1.msra.mxu0 0.0
  %5008 = vmatprep.subr.mxu0 0.0
  %5009 = vmatpush1.msra.mxu0 0.0
  %5010 = vmatprep.subr.mxu0 0.0
  %5011 = vmatpush1.msra.mxu0 0.0
  %5012 = vmatprep.subr.mxu0 0.0
  %5013 = vmatpush1.msra.mxu0 0.0
  %5014 = vmatprep.subr.mxu0 0.0
  %5015 = vmatpush1.msra.mxu0 0.0
  %5016 = vmatprep.subr.mxu0 0.0
  %5017 = vmatpush1.msra.mxu0 0.0
  %5018 = vmatprep.subr.mxu0 0.0
  %5019 = vmatpush1.msra.mxu0 0.0
  %5020 = vmatprep.mubr.f32.mxu0 0.0
  %5021 = vmatmul.mubr.f32.gmra.mrb[0].mxu0 %v4861
  %v5022 = vpop.f32.mrb[0].mxu0
  %v5023 = vadd.f32 0.0, %v5022
  %v5024 = vpop.f32.mrb[0].mxu0
  %5025 = vmatprep.mubr.f32.mxu0 0.0
  %5026 = vmatmul.mubr.f32.gmra.mrb[0].mxu0 %v4864
  %v5027 = vpop.f32.mrb[0].mxu0
  %v5028 = vadd.f32 0.0, %v5027
  %v5029 = vpop.f32.mrb[0].mxu0
  %5030 = vmatprep.mubr.f32.mxu0 0.0
  %5031 = vmatmul.mubr.f32.gmra.mrb[0].mxu0 %v4867
  %v5032 = vpop.f32.mrb[0].mxu0
  %v5033 = vadd.f32 0.0, %v5032
  %v5034 = vpop.f32.mrb[0].mxu0
  %5035 = vmatprep.mubr.f32.mxu0 0.0
  %5036 = vmatmul.mubr.f32.gmra.mrb[0].mxu0 %v4870
  %v5037 = vpop.f32.mrb[0].mxu0
  %v5038 = vadd.f32 0.0, %v5037
  %v5039 = vpop.f32.mrb[0].mxu0
  %5040 = vmatprep.mubr.f32.mxu0 0.0
  %5041 = vmatmul.mubr.f32.gmra.mrb[0].mxu0 %v4873
  %v5042 = vpop.f32.mrb[0].mxu0
  %v5043 = vadd.f32 0.0, %v5042
  %v5044 = vpop.f32.mrb[0].mxu0
  %5045 = vmatprep.mubr.f32.mxu0 0.0
  %5046 = vmatmul.mubr.f32.gmra.mrb[0].mxu0 %v4876
  %v5047 = vpop.f32.mrb[0].mxu0
  %v5048 = vadd.f32 0.0, %v5047
  %v5049 = vpop.f32.mrb[0].mxu0
  %5050 = vmatprep.mubr.f32.mxu0 0.0
  %5051 = vmatmul.mubr.f32.gmra.mrb[0].mxu0 %v4879
  %v5052 = vpop.f32.mrb[0].mxu0
  %v5053 = vadd.f32 0.0, %v5052
  %v5054 = vpop.f32.mrb[0].mxu0
  %5055 = vmatprep.mubr.f32.mxu0 0.0
  %5056 = vmatmul.mubr.f32.gmra.mrb[0].mxu0 %v4882
  %v5057 = vpop.f32.mrb[0].mxu0
  %v5058 = vadd.f32 0.0, %v5057
  %v5059 = vpop.f32.mrb[0].mxu0
  %5060 = vmatprep.mubr.f32.mxu0 0.0
  %5061 = vmatmul.mubr.f32.gmra.mrb[0].mxu0 %v4885
  %v5062 = vpop.f32.mrb[0].mxu0
  %v5063 = vadd.f32 0.0, %v5062
  %v5064 = vpop.f32.mrb[0].mxu0
  %5065 = vmatprep.mubr.f32.mxu0 0.0
  %5066 = vmatmul.mubr.f32.gmra.mrb[0].mxu0 %v4888
  %v5067 = vpop.f32.mrb[0].mxu0
  %v5068 = vadd.f32 0.0, %v5067
  %v5069 = vpop.f32.mrb[0].mxu0
  %5070 = vmatprep.mubr.f32.mxu0 0.0
  %5071 = vmatmul.mubr.f32.gmra.mrb[0].mxu0 %v4891
  %v5072 = vpop.f32.mrb[0].mxu0
  %v5073 = vadd.f32 0.0, %v5072
  %v5074 = vpop.f32.mrb[0].mxu0
  %5075 = vmatprep.mubr.f32.mxu0 0.0
  %5076 = vmatmul.mubr.f32.gmra.mrb[0].mxu0 %v4894
  %v5077 = vpop.f32.mrb[0].mxu0
  %v5078 = vadd.f32 0.0, %v5077
  %v5079 = vpop.f32.mrb[0].mxu0
  %5080 = vmatprep.mubr.f32.mxu0 0.0
  %5081 = vmatmul.mubr.f32.gmra.mrb[0].mxu0 %v4897
  %v5082 = vpop.f32.mrb[0].mxu0
  %v5083 = vadd.f32 0.0, %v5082
  %v5084 = vpop.f32.mrb[0].mxu0
  %5085 = vmatprep.mubr.f32.mxu0 0.0
  %5086 = vmatmul.mubr.f32.gmra.mrb[0].mxu0 %v4900
  %v5087 = vpop.f32.mrb[0].mxu0
  %v5088 = vadd.f32 0.0, %v5087
  %v5089 = vpop.f32.mrb[0].mxu0
  %5090 = vmatprep.mubr.f32.mxu0 0.0
  %5091 = vmatmul.mubr.f32.gmra.mrb[0].mxu0 %v4903
  %v5092 = vpop.f32.mrb[0].mxu0
  %v5093 = vadd.f32 0.0, %v5092
  %v5094 = vpop.f32.mrb[0].mxu0
  %5095 = vmatprep.mubr.f32.mxu0 0.0
  %5096 = vmatmul.mubr.f32.gmra.mrb[0].mxu0 %v4906
  %v5097 = vpop.f32.mrb[0].mxu0
  %v5098 = vadd.f32 0.0, %v5097
  %v5099 = vpop.f32.mrb[0].mxu0
  %5100 = vmatprep.mubr.f32.mxu0 0.0
  %5101 = vmatmul.mubr.f32.gmra.mrb[0].mxu0 %v4909
  %v5102 = vpop.f32.mrb[0].mxu0
  %v5103 = vadd.f32 0.0, %v5102
  %v5104 = vpop.f32.mrb[0].mxu0
  %5105 = vmatprep.mubr.f32.mxu0 0.0
  %5106 = vmatmul.mubr.f32.gmra.mrb[0].mxu0 %v4912
  %v5107 = vpop.f32.mrb[0].mxu0
  %v5108 = vadd.f32 0.0, %v5107
  %v5109 = vpop.f32.mrb[0].mxu0
  %5110 = vmatprep.mubr.f32.mxu0 0.0
  %5111 = vmatmul.mubr.f32.gmra.mrb[0].mxu0 %v4915
  %v5112 = vpop.f32.mrb[0].mxu0
  %v5113 = vadd.f32 0.0, %v5112
  %v5114 = vpop.f32.mrb[0].mxu0
  %5115 = vmatprep.mubr.f32.mxu0 0.0
  %5116 = vmatmul.mubr.f32.gmra.mrb[0].mxu0 %v4918
  %v5117 = vpop.f32.mrb[0].mxu0
  %v5118 = vadd.f32 0.0, %v5117
  %v5119 = vpop.f32.mrb[0].mxu0
  %5120 = vmatprep.mubr.f32.mxu0 0.0
  %5121 = vmatmul.mubr.f32.gmra.mrb[0].mxu0 %v4921
  %v5122 = vpop.f32.mrb[0].mxu0
  %v5123 = vadd.f32 0.0, %v5122
  %v5124 = vpop.f32.mrb[0].mxu0
  %5125 = vmatprep.mubr.f32.mxu0 0.0
  %5126 = vmatmul.mubr.f32.gmra.mrb[0].mxu0 %v4924
  %v5127 = vpop.f32.mrb[0].mxu0
  %v5128 = vadd.f32 0.0, %v5127
  %v5129 = vpop.f32.mrb[0].mxu0
  %5130 = vmatprep.mubr.f32.mxu0 0.0
  %5131 = vmatmul.mubr.f32.gmra.mrb[0].mxu0 %v4927
  %v5132 = vpop.f32.mrb[0].mxu0
  %v5133 = vadd.f32 0.0, %v5132
  %v5134 = vpop.f32.mrb[0].mxu0
  %5135 = vmatprep.mubr.f32.mxu0 0.0
  %5136 = vmatmul.mubr.f32.gmra.mrb[0].mxu0 %v4930
  %v5137 = vpop.f32.mrb[0].mxu0
  %v5138 = vadd.f32 0.0, %v5137
  %v5139 = vpop.f32.mrb[0].mxu0
  %5140 = vmatprep.mubr.f32.mxu0 0.0
  %5141 = vmatmul.mubr.f32.gmra.mrb[0].mxu0 %v4933
  %v5142 = vpop.f32.mrb[0].mxu0
  %v5143 = vadd.f32 0.0, %v5142
  %v5144 = vpop.f32.mrb[0].mxu0
  %5145 = vmatprep.mubr.f32.mxu0 0.0
  %5146 = vmatmul.mubr.f32.gmra.mrb[0].mxu0 %v4936
  %v5147 = vpop.f32.mrb[0].mxu0
  %v5148 = vadd.f32 0.0, %v5147
  %v5149 = vpop.f32.mrb[0].mxu0
  %5150 = vmatprep.mubr.f32.mxu0 0.0
  %5151 = vmatmul.mubr.f32.gmra.mrb[0].mxu0 %v4939
  %v5152 = vpop.f32.mrb[0].mxu0
  %v5153 = vadd.f32 0.0, %v5152
  %v5154 = vpop.f32.mrb[0].mxu0
  %5155 = vmatprep.mubr.f32.mxu0 0.0
  %5156 = vmatmul.mubr.f32.gmra.mrb[0].mxu0 %v4942
  %v5157 = vpop.f32.mrb[0].mxu0
  %v5158 = vadd.f32 0.0, %v5157
  %v5159 = vpop.f32.mrb[0].mxu0
  %5160 = vmatprep.mubr.f32.mxu0 0.0
  %5161 = vmatmul.mubr.f32.gmra.mrb[0].mxu0 %v4945
  %v5162 = vpop.f32.mrb[0].mxu0
  %v5163 = vadd.f32 0.0, %v5162
  %v5164 = vpop.f32.mrb[0].mxu0
  %5165 = vmatprep.mubr.f32.mxu0 0.0
  %5166 = vmatmul.mubr.f32.gmra.mrb[0].mxu0 %v4948
  %v5167 = vpop.f32.mrb[0].mxu0
  %v5168 = vadd.f32 0.0, %v5167
  %v5169 = vpop.f32.mrb[0].mxu0
  %5170 = vmatprep.mubr.f32.mxu0 0.0
  %5171 = vmatmul.mubr.f32.gmra.mrb[0].mxu0 %v4951
  %v5172 = vpop.f32.mrb[0].mxu0
  %v5173 = vadd.f32 0.0, %v5172
  %v5174 = vpop.f32.mrb[0].mxu0
  %5175 = vmatprep.mubr.f32.mxu0 0.0
  %5176 = vmatmul.mubr.f32.gmra.mrb[0].mxu0 %v4954
  %v5177 = vpop.f32.mrb[0].mxu0
  %v5178 = vadd.f32 0.0, %v5177
  %v5179 = vpop.f32.mrb[0].mxu0
  %5180 = vdwg.mxu0
  %5182 = vset.pattern.permute.xlu0 0
  %5183 = vperm.xlu0 %5182, %v4168
  %v5184 = vpop.permute.xlu0 %5183
  %5187 = vset.pattern.permute.xlu0 0
  %5188 = vperm.xlu0 %5187, %v4169
  %v5189 = vpop.permute.xlu0 %5188
  %5192 = vset.pattern.permute.xlu0 0
  %5193 = vperm.xlu0 %5192, %v4170
  %v5194 = vpop.permute.xlu0 %5193
  %5197 = vset.pattern.permute.xlu0 0
  %5198 = vperm.xlu0 %5197, %v4171
  %v5199 = vpop.permute.xlu0 %5198
  %5202 = vset.pattern.permute.xlu0 0
  %5203 = vperm.xlu0 %5202, %v4172
  %v5204 = vpop.permute.xlu0 %5203
  %5207 = vset.pattern.permute.xlu0 0
  %5208 = vperm.xlu0 %5207, %v4173
  %v5209 = vpop.permute.xlu0 %5208
  %5212 = vset.pattern.permute.xlu0 0
  %5213 = vperm.xlu0 %5212, %v4174
  %v5214 = vpop.permute.xlu0 %5213
  %5217 = vset.pattern.permute.xlu0 0
  %5218 = vperm.xlu0 %5217, %v4175
  %v5219 = vpop.permute.xlu0 %5218
  %5222 = vset.pattern.permute.xlu0 0
  %5223 = vperm.xlu0 %5222, %v4176
  %v5224 = vpop.permute.xlu0 %5223
  %5227 = vset.pattern.permute.xlu0 0
  %5228 = vperm.xlu0 %5227, %v4177
  %v5229 = vpop.permute.xlu0 %5228
  %5232 = vset.pattern.permute.xlu0 0
  %5233 = vperm.xlu0 %5232, %v4178
  %v5234 = vpop.permute.xlu0 %5233
  %5237 = vset.pattern.permute.xlu0 0
  %5238 = vperm.xlu0 %5237, %v4179
  %v5239 = vpop.permute.xlu0 %5238
  %5242 = vset.pattern.permute.xlu0 0
  %5243 = vperm.xlu0 %5242, %v4180
  %v5244 = vpop.permute.xlu0 %5243
  %5247 = vset.pattern.permute.xlu0 0
  %5248 = vperm.xlu0 %5247, %v4181
  %v5249 = vpop.permute.xlu0 %5248
  %5252 = vset.pattern.permute.xlu0 0
  %5253 = vperm.xlu0 %5252, %v4182
  %v5254 = vpop.permute.xlu0 %5253
  %5257 = vset.pattern.permute.xlu0 0
  %5258 = vperm.xlu0 %5257, %v4183
  %v5259 = vpop.permute.xlu0 %5258
  %5262 = vset.pattern.permute.xlu0 0
  %5263 = vperm.xlu0 %5262, %v4184
  %v5264 = vpop.permute.xlu0 %5263
  %5267 = vset.pattern.permute.xlu0 0
  %5268 = vperm.xlu0 %5267, %v4185
  %v5269 = vpop.permute.xlu0 %5268
  %5272 = vset.pattern.permute.xlu0 0
  %5273 = vperm.xlu0 %5272, %v4186
  %v5274 = vpop.permute.xlu0 %5273
  %5277 = vset.pattern.permute.xlu0 0
  %5278 = vperm.xlu0 %5277, %v4187
  %v5279 = vpop.permute.xlu0 %5278
  %5282 = vset.pattern.permute.xlu0 0
  %5283 = vperm.xlu0 %5282, %v4188
  %v5284 = vpop.permute.xlu0 %5283
  %5287 = vset.pattern.permute.xlu0 0
  %5288 = vperm.xlu0 %5287, %v4189
  %v5289 = vpop.permute.xlu0 %5288
  %5292 = vset.pattern.permute.xlu0 0
  %5293 = vperm.xlu0 %5292, %v4190
  %v5294 = vpop.permute.xlu0 %5293
  %5297 = vset.pattern.permute.xlu0 0
  %5298 = vperm.xlu0 %5297, %v4191
  %v5299 = vpop.permute.xlu0 %5298
  %5302 = vset.pattern.permute.xlu0 0
  %5303 = vperm.xlu0 %5302, %v4192
  %v5304 = vpop.permute.xlu0 %5303
  %5307 = vset.pattern.permute.xlu0 0
  %5308 = vperm.xlu0 %5307, %v4193
  %v5309 = vpop.permute.xlu0 %5308
  %5312 = vset.pattern.permute.xlu0 0
  %5313 = vperm.xlu0 %5312, %v4194
  %v5314 = vpop.permute.xlu0 %5313
  %5317 = vset.pattern.permute.xlu0 0
  %5318 = vperm.xlu0 %5317, %v4195
  %v5319 = vpop.permute.xlu0 %5318
  %5322 = vset.pattern.permute.xlu0 0
  %5323 = vperm.xlu0 %5322, %v4196
  %v5324 = vpop.permute.xlu0 %5323
  %5327 = vset.pattern.permute.xlu0 0
  %5328 = vperm.xlu0 %5327, %v4197
  %v5329 = vpop.permute.xlu0 %5328
  %5332 = vset.pattern.permute.xlu0 0
  %5333 = vperm.xlu0 %5332, %v4198
  %v5334 = vpop.permute.xlu0 %5333
  %5337 = vset.pattern.permute.xlu0 0
  %5338 = vperm.xlu0 %5337, %v4199
  %v5339 = vpop.permute.xlu0 %5338
  %v5341 = vmul.f32 %v5023, %v5184
  %v5342 = vmul.f32 %v5028, %v5189
  %v5343 = vmul.f32 %v5033, %v5194
  %v5344 = vmul.f32 %v5038, %v5199
  %v5345 = vmul.f32 %v5043, %v5204
  %v5346 = vmul.f32 %v5048, %v5209
  %v5347 = vmul.f32 %v5053, %v5214
  %v5348 = vmul.f32 %v5058, %v5219
  %v5349 = vmul.f32 %v5063, %v5224
  %v5350 = vmul.f32 %v5068, %v5229
  %v5351 = vmul.f32 %v5073, %v5234
  %v5352 = vmul.f32 %v5078, %v5239
  %v5353 = vmul.f32 %v5083, %v5244
  %v5354 = vmul.f32 %v5088, %v5249
  %v5355 = vmul.f32 %v5093, %v5254
  %v5356 = vmul.f32 %v5098, %v5259
  %v5357 = vmul.f32 %v5103, %v5264
  %v5358 = vmul.f32 %v5108, %v5269
  %v5359 = vmul.f32 %v5113, %v5274
  %v5360 = vmul.f32 %v5118, %v5279
  %v5361 = vmul.f32 %v5123, %v5284
  %v5362 = vmul.f32 %v5128, %v5289
  %v5363 = vmul.f32 %v5133, %v5294
  %v5364 = vmul.f32 %v5138, %v5299
  %v5365 = vmul.f32 %v5143, %v5304
  %v5366 = vmul.f32 %v5148, %v5309
  %v5367 = vmul.f32 %v5153, %v5314
  %v5368 = vmul.f32 %v5158, %v5319
  %v5369 = vmul.f32 %v5163, %v5324
  %v5370 = vmul.f32 %v5168, %v5329
  %v5371 = vmul.f32 %v5173, %v5334
  %v5372 = vmul.f32 %v5178, %v5339
  %5373 = vst.msk [vmem:[%s25 + $0x280] sm:$0xff] %vm916, %v5341
  %5374 = vst.msk [vmem:[%s25 + $0x288] sm:$0xff] %vm916, %v5342
  %5375 = vst.msk [vmem:[%s25 + $0x290] sm:$0xff] %vm916, %v5343
  %5376 = vst.msk [vmem:[%s25 + $0x298] sm:$0xff] %vm916, %v5344
  %5377 = vst.msk [vmem:[%s25 + $0x2a0] sm:$0xff] %vm916, %v5345
  %5378 = vst.msk [vmem:[%s25 + $0x2a8] sm:$0xff] %vm916, %v5346
  %5379 = vst.msk [vmem:[%s25 + $0x2b0] sm:$0xff] %vm916, %v5347
  %5380 = vst.msk [vmem:[%s25 + $0x2b8] sm:$0xff] %vm916, %v5348
  %5381 = vst.msk [vmem:[%s25 + $0x2c0] sm:$0xff] %vm916, %v5349
  %5382 = vst.msk [vmem:[%s25 + $0x2c8] sm:$0xff] %vm916, %v5350
  %5383 = vst.msk [vmem:[%s25 + $0x2d0] sm:$0xff] %vm916, %v5351
  %5384 = vst.msk [vmem:[%s25 + $0x2d8] sm:$0xff] %vm916, %v5352
  %5385 = vst.msk [vmem:[%s25 + $0x2e0] sm:$0xff] %vm916, %v5353
  %5386 = vst.msk [vmem:[%s25 + $0x2e8] sm:$0xff] %vm916, %v5354
  %5387 = vst.msk [vmem:[%s25 + $0x2f0] sm:$0xff] %vm916, %v5355
  %5388 = vst.msk [vmem:[%s25 + $0x2f8] sm:$0xff] %vm916, %v5356
  %5389 = vst.msk [vmem:[%s25 + $0x300] sm:$0xff] %vm916, %v5357
  %5390 = vst.msk [vmem:[%s25 + $0x308] sm:$0xff] %vm916, %v5358
  %5391 = vst.msk [vmem:[%s25 + $0x310] sm:$0xff] %vm916, %v5359
  %5392 = vst.msk [vmem:[%s25 + $0x318] sm:$0xff] %vm916, %v5360
  %5393 = vst.msk [vmem:[%s25 + $0x320] sm:$0xff] %vm916, %v5361
  %5394 = vst.msk [vmem:[%s25 + $0x328] sm:$0xff] %vm916, %v5362
  %5395 = vst.msk [vmem:[%s25 + $0x330] sm:$0xff] %vm916, %v5363
  %5396 = vst.msk [vmem:[%s25 + $0x338] sm:$0xff] %vm916, %v5364
  %5397 = vst.msk [vmem:[%s25 + $0x340] sm:$0xff] %vm916, %v5365
  %5398 = vst.msk [vmem:[%s25 + $0x348] sm:$0xff] %vm916, %v5366
  %5399 = vst.msk [vmem:[%s25 + $0x350] sm:$0xff] %vm916, %v5367
  %5400 = vst.msk [vmem:[%s25 + $0x358] sm:$0xff] %vm916, %v5368
  %5401 = vst.msk [vmem:[%s25 + $0x360] sm:$0xff] %vm916, %v5369
  %5402 = vst.msk [vmem:[%s25 + $0x368] sm:$0xff] %vm916, %v5370
  %5403 = vst.msk [vmem:[%s25 + $0x370] sm:$0xff] %vm916, %v5371
  %5404 = vst.msk [vmem:[%s25 + $0x378] sm:$0xff] %vm916, %v5372
  %v5405 = vld [vmem:[%s20] sm:$0xff]
  %v5406 = vsel %vm4749, %v4101, 0
  %5408 = vmatprep.subr.mxu0 0.0
  %5409 = vmatpush1.msra.mxu0 %v5405
  %5410 = vmatprep.subr.mxu0 0.0
  %5411 = vmatpush1.msra.mxu0 0.0
  %5412 = vmatprep.subr.mxu0 0.0
  %5413 = vmatpush1.msra.mxu0 0.0
  %5414 = vmatprep.subr.mxu0 0.0
  %5415 = vmatpush1.msra.mxu0 0.0
  %5416 = vmatprep.subr.mxu0 0.0
  %5417 = vmatpush1.msra.mxu0 0.0
  %5418 = vmatprep.subr.mxu0 0.0
  %5419 = vmatpush1.msra.mxu0 0.0
  %5420 = vmatprep.subr.mxu0 0.0
  %5421 = vmatpush1.msra.mxu0 0.0
  %5422 = vmatprep.subr.mxu0 0.0
  %5423 = vmatpush1.msra.mxu0 0.0
  %5424 = vmatprep.subr.mxu0 0.0
  %5425 = vmatpush1.msra.mxu0 0.0
  %5426 = vmatprep.subr.mxu0 0.0
  %5427 = vmatpush1.msra.mxu0 0.0
  %5428 = vmatprep.subr.mxu0 0.0
  %5429 = vmatpush1.msra.mxu0 0.0
  %5430 = vmatprep.subr.mxu0 0.0
  %5431 = vmatpush1.msra.mxu0 0.0
  %5432 = vmatprep.subr.mxu0 0.0
  %5433 = vmatpush1.msra.mxu0 0.0
  %5434 = vmatprep.subr.mxu0 0.0
  %5435 = vmatpush1.msra.mxu0 0.0
  %5436 = vmatprep.subr.mxu0 0.0
  %5437 = vmatpush1.msra.mxu0 0.0
  %5438 = vmatprep.subr.mxu0 0.0
  %5439 = vmatpush1.msra.mxu0 0.0
  %5440 = vmatprep.subr.mxu0 0.0
  %5441 = vmatpush1.msra.mxu0 0.0
  %5442 = vmatprep.subr.mxu0 0.0
  %5443 = vmatpush1.msra.mxu0 0.0
  %5444 = vmatprep.subr.mxu0 0.0
  %5445 = vmatpush1.msra.mxu0 0.0
  %5446 = vmatprep.subr.mxu0 0.0
  %5447 = vmatpush1.msra.mxu0 0.0
  %5448 = vmatprep.subr.mxu0 0.0
  %5449 = vmatpush1.msra.mxu0 0.0
  %5450 = vmatprep.subr.mxu0 0.0
  %5451 = vmatpush1.msra.mxu0 0.0
  %5452 = vmatprep.subr.mxu0 0.0
  %5453 = vmatpush1.msra.mxu0 0.0
  %5454 = vmatprep.subr.mxu0 0.0
  %5455 = vmatpush1.msra.mxu0 0.0
  %5456 = vmatprep.subr.mxu0 0.0
  %5457 = vmatpush1.msra.mxu0 0.0
  %5458 = vmatprep.subr.mxu0 0.0
  %5459 = vmatpush1.msra.mxu0 0.0
  %5460 = vmatprep.subr.mxu0 0.0
  %5461 = vmatpush1.msra.mxu0 0.0
  %5462 = vmatprep.subr.mxu0 0.0
  %5463 = vmatpush1.msra.mxu0 0.0
  %5464 = vmatprep.subr.mxu0 0.0
  %5465 = vmatpush1.msra.mxu0 0.0
  %5466 = vmatprep.subr.mxu0 0.0
  %5467 = vmatpush1.msra.mxu0 0.0
  %5468 = vmatprep.subr.mxu0 0.0
  %5469 = vmatpush1.msra.mxu0 0.0
  %5470 = vmatprep.subr.mxu0 0.0
  %5471 = vmatpush1.msra.mxu0 0.0
  %5472 = vmatprep.mubr.f32.mxu0 0.0
  %5473 = vmatmul.mubr.f32.gmra.mrb[0].mxu0 %v5406
  %v5474 = vpop.f32.mrb[0].mxu0
  %v5475 = vadd.f32 0.0, %v5474
  %v5476 = vpop.f32.mrb[0].mxu0
  %5477 = vdwg.mxu0
  %v5478 = vld [vmem:[%s21] sm:$0xff]
  %v5479 = vld [vmem:[%s21 + $0x8] sm:$0xff]
  %v5480 = vld [vmem:[%s21 + $0x10] sm:$0xff]
  %v5481 = vld [vmem:[%s21 + $0x18] sm:$0xff]
  %v5482 = vld [vmem:[%s21 + $0x20] sm:$0xff]
  %v5483 = vld [vmem:[%s21 + $0x28] sm:$0xff]
  %v5484 = vld [vmem:[%s21 + $0x30] sm:$0xff]
  %v5485 = vld [vmem:[%s21 + $0x38] sm:$0xff]
  %v5486 = vld [vmem:[%s21 + $0x40] sm:$0xff]
  %v5487 = vld [vmem:[%s21 + $0x48] sm:$0xff]
  %v5488 = vld [vmem:[%s21 + $0x50] sm:$0xff]
  %v5489 = vld [vmem:[%s21 + $0x58] sm:$0xff]
  %v5490 = vld [vmem:[%s21 + $0x60] sm:$0xff]
  %v5491 = vld [vmem:[%s21 + $0x68] sm:$0xff]
  %v5492 = vld [vmem:[%s21 + $0x70] sm:$0xff]
  %v5493 = vld [vmem:[%s21 + $0x78] sm:$0xff]
  %v5494 = vld [vmem:[%s21 + $0x80] sm:$0xff]
  %v5495 = vld [vmem:[%s21 + $0x88] sm:$0xff]
  %v5496 = vld [vmem:[%s21 + $0x90] sm:$0xff]
  %v5497 = vld [vmem:[%s21 + $0x98] sm:$0xff]
  %v5498 = vld [vmem:[%s21 + $0xa0] sm:$0xff]
  %v5499 = vld [vmem:[%s21 + $0xa8] sm:$0xff]
  %v5500 = vld [vmem:[%s21 + $0xb0] sm:$0xff]
  %v5501 = vld [vmem:[%s21 + $0xb8] sm:$0xff]
  %v5502 = vld [vmem:[%s21 + $0xc0] sm:$0xff]
  %v5503 = vld [vmem:[%s21 + $0xc8] sm:$0xff]
  %v5504 = vld [vmem:[%s21 + $0xd0] sm:$0xff]
  %v5505 = vld [vmem:[%s21 + $0xd8] sm:$0xff]
  %v5506 = vld [vmem:[%s21 + $0xe0] sm:$0xff]
  %v5507 = vld [vmem:[%s21 + $0xe8] sm:$0xff]
  %v5508 = vld [vmem:[%s21 + $0xf0] sm:$0xff]
  %v5509 = vld [vmem:[%s21 + $0xf8] sm:$0xff]
  %v5510 = vld [vmem:[%s22] sm:$0xff]
  %v5511 = vld [vmem:[%s22 + $0x8] sm:$0xff]
  %v5512 = vld [vmem:[%s22 + $0x10] sm:$0xff]
  %v5513 = vld [vmem:[%s22 + $0x18] sm:$0xff]
  %v5514 = vld [vmem:[%s22 + $0x20] sm:$0xff]
  %v5515 = vld [vmem:[%s22 + $0x28] sm:$0xff]
  %v5516 = vld [vmem:[%s22 + $0x30] sm:$0xff]
  %v5517 = vld [vmem:[%s22 + $0x38] sm:$0xff]
  %v5518 = vld [vmem:[%s22 + $0x40] sm:$0xff]
  %v5519 = vld [vmem:[%s22 + $0x48] sm:$0xff]
  %v5520 = vld [vmem:[%s22 + $0x50] sm:$0xff]
  %v5521 = vld [vmem:[%s22 + $0x58] sm:$0xff]
  %v5522 = vld [vmem:[%s22 + $0x60] sm:$0xff]
  %v5523 = vld [vmem:[%s22 + $0x68] sm:$0xff]
  %v5524 = vld [vmem:[%s22 + $0x70] sm:$0xff]
  %v5525 = vld [vmem:[%s22 + $0x78] sm:$0xff]
  %v5526 = vld [vmem:[%s22 + $0x80] sm:$0xff]
  %v5527 = vld [vmem:[%s22 + $0x88] sm:$0xff]
  %v5528 = vld [vmem:[%s22 + $0x90] sm:$0xff]
  %v5529 = vld [vmem:[%s22 + $0x98] sm:$0xff]
  %v5530 = vld [vmem:[%s22 + $0xa0] sm:$0xff]
  %v5531 = vld [vmem:[%s22 + $0xa8] sm:$0xff]
  %v5532 = vld [vmem:[%s22 + $0xb0] sm:$0xff]
  %v5533 = vld [vmem:[%s22 + $0xb8] sm:$0xff]
  %v5534 = vld [vmem:[%s22 + $0xc0] sm:$0xff]
  %v5535 = vld [vmem:[%s22 + $0xc8] sm:$0xff]
  %v5536 = vld [vmem:[%s22 + $0xd0] sm:$0xff]
  %v5537 = vld [vmem:[%s22 + $0xd8] sm:$0xff]
  %v5538 = vld [vmem:[%s22 + $0xe0] sm:$0xff]
  %v5539 = vld [vmem:[%s22 + $0xe8] sm:$0xff]
  %v5540 = vld [vmem:[%s22 + $0xf0] sm:$0xff]
  %v5541 = vld [vmem:[%s22 + $0xf8] sm:$0xff]
  %v5542 = vld [vmem:[%s23] sm:$0xff]
  %v5543 = vld [vmem:[%s23 + $0x8] sm:$0xff]
  %v5544 = vld [vmem:[%s23 + $0x10] sm:$0xff]
  %v5545 = vld [vmem:[%s23 + $0x18] sm:$0xff]
  %v5546 = vld [vmem:[%s23 + $0x20] sm:$0xff]
  %v5547 = vld [vmem:[%s23 + $0x28] sm:$0xff]
  %v5548 = vld [vmem:[%s23 + $0x30] sm:$0xff]
  %v5549 = vld [vmem:[%s23 + $0x38] sm:$0xff]
  %v5550 = vld [vmem:[%s23 + $0x40] sm:$0xff]
  %v5551 = vld [vmem:[%s23 + $0x48] sm:$0xff]
  %v5552 = vld [vmem:[%s23 + $0x50] sm:$0xff]
  %v5553 = vld [vmem:[%s23 + $0x58] sm:$0xff]
  %v5554 = vld [vmem:[%s23 + $0x60] sm:$0xff]
  %v5555 = vld [vmem:[%s23 + $0x68] sm:$0xff]
  %v5556 = vld [vmem:[%s23 + $0x70] sm:$0xff]
  %v5557 = vld [vmem:[%s23 + $0x78] sm:$0xff]
  %v5558 = vld [vmem:[%s23 + $0x80] sm:$0xff]
  %v5559 = vld [vmem:[%s23 + $0x88] sm:$0xff]
  %v5560 = vld [vmem:[%s23 + $0x90] sm:$0xff]
  %v5561 = vld [vmem:[%s23 + $0x98] sm:$0xff]
  %v5562 = vld [vmem:[%s23 + $0xa0] sm:$0xff]
  %v5563 = vld [vmem:[%s23 + $0xa8] sm:$0xff]
  %v5564 = vld [vmem:[%s23 + $0xb0] sm:$0xff]
  %v5565 = vld [vmem:[%s23 + $0xb8] sm:$0xff]
  %v5566 = vld [vmem:[%s23 + $0xc0] sm:$0xff]
  %v5567 = vld [vmem:[%s23 + $0xc8] sm:$0xff]
  %v5568 = vld [vmem:[%s23 + $0xd0] sm:$0xff]
  %v5569 = vld [vmem:[%s23 + $0xd8] sm:$0xff]
  %v5570 = vld [vmem:[%s23 + $0xe0] sm:$0xff]
  %v5571 = vld [vmem:[%s23 + $0xe8] sm:$0xff]
  %v5572 = vld [vmem:[%s23 + $0xf0] sm:$0xff]
  %v5573 = vld [vmem:[%s23 + $0xf8] sm:$0xff]
  %v5574 = vld [vmem:[%s24] sm:$0x3]
  %5576 = vset.pattern.permute.xlu0 0
  %5577 = vperm.xlu0 %5576, %v5510
  %v5578 = vpop.permute.xlu0 %5577
  %5581 = vset.pattern.permute.xlu0 0
  %5582 = vperm.xlu0 %5581, %v5511
  %v5583 = vpop.permute.xlu0 %5582
  %5586 = vset.pattern.permute.xlu0 0
  %5587 = vperm.xlu0 %5586, %v5512
  %v5588 = vpop.permute.xlu0 %5587
  %5591 = vset.pattern.permute.xlu0 0
  %5592 = vperm.xlu0 %5591, %v5513
  %v5593 = vpop.permute.xlu0 %5592
  %5596 = vset.pattern.permute.xlu0 0
  %5597 = vperm.xlu0 %5596, %v5514
  %v5598 = vpop.permute.xlu0 %5597
  %5601 = vset.pattern.permute.xlu0 0
  %5602 = vperm.xlu0 %5601, %v5515
  %v5603 = vpop.permute.xlu0 %5602
  %5606 = vset.pattern.permute.xlu0 0
  %5607 = vperm.xlu0 %5606, %v5516
  %v5608 = vpop.permute.xlu0 %5607
  %5611 = vset.pattern.permute.xlu0 0
  %5612 = vperm.xlu0 %5611, %v5517
  %v5613 = vpop.permute.xlu0 %5612
  %5616 = vset.pattern.permute.xlu0 0
  %5617 = vperm.xlu0 %5616, %v5518
  %v5618 = vpop.permute.xlu0 %5617
  %5621 = vset.pattern.permute.xlu0 0
  %5622 = vperm.xlu0 %5621, %v5519
  %v5623 = vpop.permute.xlu0 %5622
  %5626 = vset.pattern.permute.xlu0 0
  %5627 = vperm.xlu0 %5626, %v5520
  %v5628 = vpop.permute.xlu0 %5627
  %5631 = vset.pattern.permute.xlu0 0
  %5632 = vperm.xlu0 %5631, %v5521
  %v5633 = vpop.permute.xlu0 %5632
  %5636 = vset.pattern.permute.xlu0 0
  %5637 = vperm.xlu0 %5636, %v5522
  %v5638 = vpop.permute.xlu0 %5637
  %5641 = vset.pattern.permute.xlu0 0
  %5642 = vperm.xlu0 %5641, %v5523
  %v5643 = vpop.permute.xlu0 %5642
  %5646 = vset.pattern.permute.xlu0 0
  %5647 = vperm.xlu0 %5646, %v5524
  %v5648 = vpop.permute.xlu0 %5647
  %5651 = vset.pattern.permute.xlu0 0
  %5652 = vperm.xlu0 %5651, %v5525
  %v5653 = vpop.permute.xlu0 %5652
  %5656 = vset.pattern.permute.xlu0 0
  %5657 = vperm.xlu0 %5656, %v5526
  %v5658 = vpop.permute.xlu0 %5657
  %5661 = vset.pattern.permute.xlu0 0
  %5662 = vperm.xlu0 %5661, %v5527
  %v5663 = vpop.permute.xlu0 %5662
  %5666 = vset.pattern.permute.xlu0 0
  %5667 = vperm.xlu0 %5666, %v5528
  %v5668 = vpop.permute.xlu0 %5667
  %5671 = vset.pattern.permute.xlu0 0
  %5672 = vperm.xlu0 %5671, %v5529
  %v5673 = vpop.permute.xlu0 %5672
  %5676 = vset.pattern.permute.xlu0 0
  %5677 = vperm.xlu0 %5676, %v5530
  %v5678 = vpop.permute.xlu0 %5677
  %5681 = vset.pattern.permute.xlu0 0
  %5682 = vperm.xlu0 %5681, %v5531
  %v5683 = vpop.permute.xlu0 %5682
  %5686 = vset.pattern.permute.xlu0 0
  %5687 = vperm.xlu0 %5686, %v5532
  %v5688 = vpop.permute.xlu0 %5687
  %5691 = vset.pattern.permute.xlu0 0
  %5692 = vperm.xlu0 %5691, %v5533
  %v5693 = vpop.permute.xlu0 %5692
  %5696 = vset.pattern.permute.xlu0 0
  %5697 = vperm.xlu0 %5696, %v5534
  %v5698 = vpop.permute.xlu0 %5697
  %5701 = vset.pattern.permute.xlu0 0
  %5702 = vperm.xlu0 %5701, %v5535
  %v5703 = vpop.permute.xlu0 %5702
  %5706 = vset.pattern.permute.xlu0 0
  %5707 = vperm.xlu0 %5706, %v5536
  %v5708 = vpop.permute.xlu0 %5707
  %5711 = vset.pattern.permute.xlu0 0
  %5712 = vperm.xlu0 %5711, %v5537
  %v5713 = vpop.permute.xlu0 %5712
  %5716 = vset.pattern.permute.xlu0 0
  %5717 = vperm.xlu0 %5716, %v5538
  %v5718 = vpop.permute.xlu0 %5717
  %5721 = vset.pattern.permute.xlu0 0
  %5722 = vperm.xlu0 %5721, %v5539
  %v5723 = vpop.permute.xlu0 %5722
  %5726 = vset.pattern.permute.xlu0 0
  %5727 = vperm.xlu0 %5726, %v5540
  %v5728 = vpop.permute.xlu0 %5727
  %5731 = vset.pattern.permute.xlu0 0
  %5732 = vperm.xlu0 %5731, %v5541
  %v5733 = vpop.permute.xlu0 %5732
  %v5736 = vsel %vm214, %v5478, 0
  %v5739 = vsel %vm214, %v5479, 0
  %v5742 = vsel %vm214, %v5480, 0
  %v5745 = vsel %vm214, %v5481, 0
  %v5748 = vsel %vm214, %v5482, 0
  %v5751 = vsel %vm214, %v5483, 0
  %v5754 = vsel %vm214, %v5484, 0
  %v5757 = vsel %vm214, %v5485, 0
  %v5760 = vsel %vm214, %v5486, 0
  %v5763 = vsel %vm214, %v5487, 0
  %v5766 = vsel %vm214, %v5488, 0
  %v5769 = vsel %vm214, %v5489, 0
  %v5772 = vsel %vm214, %v5490, 0
  %v5775 = vsel %vm214, %v5491, 0
  %v5778 = vsel %vm214, %v5492, 0
  %v5781 = vsel %vm214, %v5493, 0
  %v5784 = vsel %vm214, %v5494, 0
  %v5787 = vsel %vm214, %v5495, 0
  %v5790 = vsel %vm214, %v5496, 0
  %v5793 = vsel %vm214, %v5497, 0
  %v5796 = vsel %vm214, %v5498, 0
  %v5799 = vsel %vm214, %v5499, 0
  %v5802 = vsel %vm214, %v5500, 0
  %v5805 = vsel %vm214, %v5501, 0
  %v5808 = vsel %vm214, %v5502, 0
  %v5811 = vsel %vm214, %v5503, 0
  %v5814 = vsel %vm214, %v5504, 0
  %v5817 = vsel %vm214, %v5505, 0
  %v5820 = vsel %vm214, %v5506, 0
  %v5823 = vsel %vm214, %v5507, 0
  %v5826 = vsel %vm214, %v5508, 0
  %v5829 = vsel %vm214, %v5509, 0
  %v5832 = vsel %vm239, %v5475, 0
  %5834 = vmatprep.subr.mxu0 0.0
  %5835 = vmatpush1.msra.mxu0 %v5832
  %5836 = vmatprep.subr.mxu0 0.0
  %5837 = vmatpush1.msra.mxu0 0.0
  %5838 = vmatprep.subr.mxu0 0.0
  %5839 = vmatpush1.msra.mxu0 0.0
  %5840 = vmatprep.subr.mxu0 0.0
  %5841 = vmatpush1.msra.mxu0 0.0
  %5842 = vmatprep.subr.mxu0 0.0
  %5843 = vmatpush1.msra.mxu0 0.0
  %5844 = vmatprep.subr.mxu0 0.0
  %5845 = vmatpush1.msra.mxu0 0.0
  %5846 = vmatprep.subr.mxu0 0.0
  %5847 = vmatpush1.msra.mxu0 0.0
  %5848 = vmatprep.subr.mxu0 0.0
  %5849 = vmatpush1.msra.mxu0 0.0
  %5850 = vmatprep.subr.mxu0 0.0
  %5851 = vmatpush1.msra.mxu0 0.0
  %5852 = vmatprep.subr.mxu0 0.0
  %5853 = vmatpush1.msra.mxu0 0.0
  %5854 = vmatprep.subr.mxu0 0.0
  %5855 = vmatpush1.msra.mxu0 0.0
  %5856 = vmatprep.subr.mxu0 0.0
  %5857 = vmatpush1.msra.mxu0 0.0
  %5858 = vmatprep.subr.mxu0 0.0
  %5859 = vmatpush1.msra.mxu0 0.0
  %5860 = vmatprep.subr.mxu0 0.0
  %5861 = vmatpush1.msra.mxu0 0.0
  %5862 = vmatprep.subr.mxu0 0.0
  %5863 = vmatpush1.msra.mxu0 0.0
  %5864 = vmatprep.subr.mxu0 0.0
  %5865 = vmatpush1.msra.mxu0 0.0
  %5866 = vmatprep.subr.mxu0 0.0
  %5867 = vmatpush1.msra.mxu0 0.0
  %5868 = vmatprep.subr.mxu0 0.0
  %5869 = vmatpush1.msra.mxu0 0.0
  %5870 = vmatprep.subr.mxu0 0.0
  %5871 = vmatpush1.msra.mxu0 0.0
  %5872 = vmatprep.subr.mxu0 0.0
  %5873 = vmatpush1.msra.mxu0 0.0
  %5874 = vmatprep.subr.mxu0 0.0
  %5875 = vmatpush1.msra.mxu0 0.0
  %5876 = vmatprep.subr.mxu0 0.0
  %5877 = vmatpush1.msra.mxu0 0.0
  %5878 = vmatprep.subr.mxu0 0.0
  %5879 = vmatpush1.msra.mxu0 0.0
  %5880 = vmatprep.subr.mxu0 0.0
  %5881 = vmatpush1.msra.mxu0 0.0
  %5882 = vmatprep.subr.mxu0 0.0
  %5883 = vmatpush1.msra.mxu0 0.0
  %5884 = vmatprep.subr.mxu0 0.0
  %5885 = vmatpush1.msra.mxu0 0.0
  %5886 = vmatprep.subr.mxu0 0.0
  %5887 = vmatpush1.msra.mxu0 0.0
  %5888 = vmatprep.subr.mxu0 0.0
  %5889 = vmatpush1.msra.mxu0 0.0
  %5890 = vmatprep.subr.mxu0 0.0
  %5891 = vmatpush1.msra.mxu0 0.0
  %5892 = vmatprep.subr.mxu0 0.0
  %5893 = vmatpush1.msra.mxu0 0.0
  %5894 = vmatprep.subr.mxu0 0.0
  %5895 = vmatpush1.msra.mxu0 0.0
  %5896 = vmatprep.subr.mxu0 0.0
  %5897 = vmatpush1.msra.mxu0 0.0
  %5898 = vmatprep.mubr.f32.mxu0 0.0
  %5899 = vmatmul.mubr.f32.gmra.mrb[0].mxu0 %v5736
  %v5900 = vpop.f32.mrb[0].mxu0
  %v5901 = vadd.f32 %v5578, %v5900
  %v5902 = vpop.f32.mrb[0].mxu0
  %5903 = vmatprep.mubr.f32.mxu0 0.0
  %5904 = vmatmul.mubr.f32.gmra.mrb[0].mxu0 %v5739
  %v5905 = vpop.f32.mrb[0].mxu0
  %v5906 = vadd.f32 %v5583, %v5905
  %v5907 = vpop.f32.mrb[0].mxu0
  %5908 = vmatprep.mubr.f32.mxu0 0.0
  %5909 = vmatmul.mubr.f32.gmra.mrb[0].mxu0 %v5742
  %v5910 = vpop.f32.mrb[0].mxu0
  %v5911 = vadd.f32 %v5588, %v5910
  %v5912 = vpop.f32.mrb[0].mxu0
  %5913 = vmatprep.mubr.f32.mxu0 0.0
  %5914 = vmatmul.mubr.f32.gmra.mrb[0].mxu0 %v5745
  %v5915 = vpop.f32.mrb[0].mxu0
  %v5916 = vadd.f32 %v5593, %v5915
  %v5917 = vpop.f32.mrb[0].mxu0
  %5918 = vmatprep.mubr.f32.mxu0 0.0
  %5919 = vmatmul.mubr.f32.gmra.mrb[0].mxu0 %v5748
  %v5920 = vpop.f32.mrb[0].mxu0
  %v5921 = vadd.f32 %v5598, %v5920
  %v5922 = vpop.f32.mrb[0].mxu0
  %5923 = vmatprep.mubr.f32.mxu0 0.0
  %5924 = vmatmul.mubr.f32.gmra.mrb[0].mxu0 %v5751
  %v5925 = vpop.f32.mrb[0].mxu0
  %v5926 = vadd.f32 %v5603, %v5925
  %v5927 = vpop.f32.mrb[0].mxu0
  %5928 = vmatprep.mubr.f32.mxu0 0.0
  %5929 = vmatmul.mubr.f32.gmra.mrb[0].mxu0 %v5754
  %v5930 = vpop.f32.mrb[0].mxu0
  %v5931 = vadd.f32 %v5608, %v5930
  %v5932 = vpop.f32.mrb[0].mxu0
  %5933 = vmatprep.mubr.f32.mxu0 0.0
  %5934 = vmatmul.mubr.f32.gmra.mrb[0].mxu0 %v5757
  %v5935 = vpop.f32.mrb[0].mxu0
  %v5936 = vadd.f32 %v5613, %v5935
  %v5937 = vpop.f32.mrb[0].mxu0
  %5938 = vmatprep.mubr.f32.mxu0 0.0
  %5939 = vmatmul.mubr.f32.gmra.mrb[0].mxu0 %v5760
  %v5940 = vpop.f32.mrb[0].mxu0
  %v5941 = vadd.f32 %v5618, %v5940
  %v5942 = vpop.f32.mrb[0].mxu0
  %5943 = vmatprep.mubr.f32.mxu0 0.0
  %5944 = vmatmul.mubr.f32.gmra.mrb[0].mxu0 %v5763
  %v5945 = vpop.f32.mrb[0].mxu0
  %v5946 = vadd.f32 %v5623, %v5945
  %v5947 = vpop.f32.mrb[0].mxu0
  %5948 = vmatprep.mubr.f32.mxu0 0.0
  %5949 = vmatmul.mubr.f32.gmra.mrb[0].mxu0 %v5766
  %v5950 = vpop.f32.mrb[0].mxu0
  %v5951 = vadd.f32 %v5628, %v5950
  %v5952 = vpop.f32.mrb[0].mxu0
  %5953 = vmatprep.mubr.f32.mxu0 0.0
  %5954 = vmatmul.mubr.f32.gmra.mrb[0].mxu0 %v5769
  %v5955 = vpop.f32.mrb[0].mxu0
  %v5956 = vadd.f32 %v5633, %v5955
  %v5957 = vpop.f32.mrb[0].mxu0
  %5958 = vmatprep.mubr.f32.mxu0 0.0
  %5959 = vmatmul.mubr.f32.gmra.mrb[0].mxu0 %v5772
  %v5960 = vpop.f32.mrb[0].mxu0
  %v5961 = vadd.f32 %v5638, %v5960
  %v5962 = vpop.f32.mrb[0].mxu0
  %5963 = vmatprep.mubr.f32.mxu0 0.0
  %5964 = vmatmul.mubr.f32.gmra.mrb[0].mxu0 %v5775
  %v5965 = vpop.f32.mrb[0].mxu0
  %v5966 = vadd.f32 %v5643, %v5965
  %v5967 = vpop.f32.mrb[0].mxu0
  %5968 = vmatprep.mubr.f32.mxu0 0.0
  %5969 = vmatmul.mubr.f32.gmra.mrb[0].mxu0 %v5778
  %v5970 = vpop.f32.mrb[0].mxu0
  %v5971 = vadd.f32 %v5648, %v5970
  %v5972 = vpop.f32.mrb[0].mxu0
  %5973 = vmatprep.mubr.f32.mxu0 0.0
  %5974 = vmatmul.mubr.f32.gmra.mrb[0].mxu0 %v5781
  %v5975 = vpop.f32.mrb[0].mxu0
  %v5976 = vadd.f32 %v5653, %v5975
  %v5977 = vpop.f32.mrb[0].mxu0
  %5978 = vmatprep.mubr.f32.mxu0 0.0
  %5979 = vmatmul.mubr.f32.gmra.mrb[0].mxu0 %v5784
  %v5980 = vpop.f32.mrb[0].mxu0
  %v5981 = vadd.f32 %v5658, %v5980
  %v5982 = vpop.f32.mrb[0].mxu0
  %5983 = vmatprep.mubr.f32.mxu0 0.0
  %5984 = vmatmul.mubr.f32.gmra.mrb[0].mxu0 %v5787
  %v5985 = vpop.f32.mrb[0].mxu0
  %v5986 = vadd.f32 %v5663, %v5985
  %v5987 = vpop.f32.mrb[0].mxu0
  %5988 = vmatprep.mubr.f32.mxu0 0.0
  %5989 = vmatmul.mubr.f32.gmra.mrb[0].mxu0 %v5790
  %v5990 = vpop.f32.mrb[0].mxu0
  %v5991 = vadd.f32 %v5668, %v5990
  %v5992 = vpop.f32.mrb[0].mxu0
  %5993 = vmatprep.mubr.f32.mxu0 0.0
  %5994 = vmatmul.mubr.f32.gmra.mrb[0].mxu0 %v5793
  %v5995 = vpop.f32.mrb[0].mxu0
  %v5996 = vadd.f32 %v5673, %v5995
  %v5997 = vpop.f32.mrb[0].mxu0
  %5998 = vmatprep.mubr.f32.mxu0 0.0
  %5999 = vmatmul.mubr.f32.gmra.mrb[0].mxu0 %v5796
  %v6000 = vpop.f32.mrb[0].mxu0
  %v6001 = vadd.f32 %v5678, %v6000
  %v6002 = vpop.f32.mrb[0].mxu0
  %6003 = vmatprep.mubr.f32.mxu0 0.0
  %6004 = vmatmul.mubr.f32.gmra.mrb[0].mxu0 %v5799
  %v6005 = vpop.f32.mrb[0].mxu0
  %v6006 = vadd.f32 %v5683, %v6005
  %v6007 = vpop.f32.mrb[0].mxu0
  %6008 = vmatprep.mubr.f32.mxu0 0.0
  %6009 = vmatmul.mubr.f32.gmra.mrb[0].mxu0 %v5802
  %v6010 = vpop.f32.mrb[0].mxu0
  %v6011 = vadd.f32 %v5688, %v6010
  %v6012 = vpop.f32.mrb[0].mxu0
  %6013 = vmatprep.mubr.f32.mxu0 0.0
  %6014 = vmatmul.mubr.f32.gmra.mrb[0].mxu0 %v5805
  %v6015 = vpop.f32.mrb[0].mxu0
  %v6016 = vadd.f32 %v5693, %v6015
  %v6017 = vpop.f32.mrb[0].mxu0
  %6018 = vmatprep.mubr.f32.mxu0 0.0
  %6019 = vmatmul.mubr.f32.gmra.mrb[0].mxu0 %v5808
  %v6020 = vpop.f32.mrb[0].mxu0
  %v6021 = vadd.f32 %v5698, %v6020
  %v6022 = vpop.f32.mrb[0].mxu0
  %6023 = vmatprep.mubr.f32.mxu0 0.0
  %6024 = vmatmul.mubr.f32.gmra.mrb[0].mxu0 %v5811
  %v6025 = vpop.f32.mrb[0].mxu0
  %v6026 = vadd.f32 %v5703, %v6025
  %v6027 = vpop.f32.mrb[0].mxu0
  %6028 = vmatprep.mubr.f32.mxu0 0.0
  %6029 = vmatmul.mubr.f32.gmra.mrb[0].mxu0 %v5814
  %v6030 = vpop.f32.mrb[0].mxu0
  %v6031 = vadd.f32 %v5708, %v6030
  %v6032 = vpop.f32.mrb[0].mxu0
  %6033 = vmatprep.mubr.f32.mxu0 0.0
  %6034 = vmatmul.mubr.f32.gmra.mrb[0].mxu0 %v5817
  %v6035 = vpop.f32.mrb[0].mxu0
  %v6036 = vadd.f32 %v5713, %v6035
  %v6037 = vpop.f32.mrb[0].mxu0
  %6038 = vmatprep.mubr.f32.mxu0 0.0
  %6039 = vmatmul.mubr.f32.gmra.mrb[0].mxu0 %v5820
  %v6040 = vpop.f32.mrb[0].mxu0
  %v6041 = vadd.f32 %v5718, %v6040
  %v6042 = vpop.f32.mrb[0].mxu0
  %6043 = vmatprep.mubr.f32.mxu0 0.0
  %6044 = vmatmul.mubr.f32.gmra.mrb[0].mxu0 %v5823
  %v6045 = vpop.f32.mrb[0].mxu0
  %v6046 = vadd.f32 %v5723, %v6045
  %v6047 = vpop.f32.mrb[0].mxu0
  %6048 = vmatprep.mubr.f32.mxu0 0.0
  %6049 = vmatmul.mubr.f32.gmra.mrb[0].mxu0 %v5826
  %v6050 = vpop.f32.mrb[0].mxu0
  %v6051 = vadd.f32 %v5728, %v6050
  %v6052 = vpop.f32.mrb[0].mxu0
  %6053 = vmatprep.mubr.f32.mxu0 0.0
  %6054 = vmatmul.mubr.f32.gmra.mrb[0].mxu0 %v5829
  %v6055 = vpop.f32.mrb[0].mxu0
  %v6056 = vadd.f32 %v5733, %v6055
  %v6057 = vpop.f32.mrb[0].mxu0
  %6058 = vdwg.mxu0
  %v6059 = vmax.f32 %v5901, 0.0
  %v6060 = vmax.f32 %v5906, 0.0
  %v6061 = vmax.f32 %v5911, 0.0
  %v6062 = vmax.f32 %v5916, 0.0
  %v6063 = vmax.f32 %v5921, 0.0
  %v6064 = vmax.f32 %v5926, 0.0
  %v6065 = vmax.f32 %v5931, 0.0
  %v6066 = vmax.f32 %v5936, 0.0
  %v6067 = vmax.f32 %v5941, 0.0
  %v6068 = vmax.f32 %v5946, 0.0
  %v6069 = vmax.f32 %v5951, 0.0
  %v6070 = vmax.f32 %v5956, 0.0
  %v6071 = vmax.f32 %v5961, 0.0
  %v6072 = vmax.f32 %v5966, 0.0
  %v6073 = vmax.f32 %v5971, 0.0
  %v6074 = vmax.f32 %v5976, 0.0
  %v6075 = vmax.f32 %v5981, 0.0
  %v6076 = vmax.f32 %v5986, 0.0
  %v6077 = vmax.f32 %v5991, 0.0
  %v6078 = vmax.f32 %v5996, 0.0
  %v6079 = vmax.f32 %v6001, 0.0
  %v6080 = vmax.f32 %v6006, 0.0
  %v6081 = vmax.f32 %v6011, 0.0
  %v6082 = vmax.f32 %v6016, 0.0
  %v6083 = vmax.f32 %v6021, 0.0
  %v6084 = vmax.f32 %v6026, 0.0
  %v6085 = vmax.f32 %v6031, 0.0
  %v6086 = vmax.f32 %v6036, 0.0
  %v6087 = vmax.f32 %v6041, 0.0
  %v6088 = vmax.f32 %v6046, 0.0
  %v6089 = vmax.f32 %v6051, 0.0
  %v6090 = vmax.f32 %v6056, 0.0
  %v6091 = vmul.f32 %v6059, %v6059
  %v6092 = vmul.f32 %v6060, %v6060
  %v6093 = vmul.f32 %v6061, %v6061
  %v6094 = vmul.f32 %v6062, %v6062
  %v6095 = vmul.f32 %v6063, %v6063
  %v6096 = vmul.f32 %v6064, %v6064
  %v6097 = vmul.f32 %v6065, %v6065
  %v6098 = vmul.f32 %v6066, %v6066
  %v6099 = vmul.f32 %v6067, %v6067
  %v6100 = vmul.f32 %v6068, %v6068
  %v6101 = vmul.f32 %v6069, %v6069
  %v6102 = vmul.f32 %v6070, %v6070
  %v6103 = vmul.f32 %v6071, %v6071
  %v6104 = vmul.f32 %v6072, %v6072
  %v6105 = vmul.f32 %v6073, %v6073
  %v6106 = vmul.f32 %v6074, %v6074
  %v6107 = vmul.f32 %v6075, %v6075
  %v6108 = vmul.f32 %v6076, %v6076
  %v6109 = vmul.f32 %v6077, %v6077
  %v6110 = vmul.f32 %v6078, %v6078
  %v6111 = vmul.f32 %v6079, %v6079
  %v6112 = vmul.f32 %v6080, %v6080
  %v6113 = vmul.f32 %v6081, %v6081
  %v6114 = vmul.f32 %v6082, %v6082
  %v6115 = vmul.f32 %v6083, %v6083
  %v6116 = vmul.f32 %v6084, %v6084
  %v6117 = vmul.f32 %v6085, %v6085
  %v6118 = vmul.f32 %v6086, %v6086
  %v6119 = vmul.f32 %v6087, %v6087
  %v6120 = vmul.f32 %v6088, %v6088
  %v6121 = vmul.f32 %v6089, %v6089
  %v6122 = vmul.f32 %v6090, %v6090
  %v6123 = vsel %vm916, %v6091, 0.0
  %v6124 = vsel %vm916, %v6092, 0.0
  %v6125 = vadd.f32 %v6123, %v6124
  %v6126 = vsel %vm916, %v6093, 0.0
  %v6127 = vadd.f32 %v6125, %v6126
  %v6128 = vsel %vm916, %v6094, 0.0
  %v6129 = vadd.f32 %v6127, %v6128
  %v6130 = vsel %vm916, %v6095, 0.0
  %v6131 = vadd.f32 %v6129, %v6130
  %v6132 = vsel %vm916, %v6096, 0.0
  %v6133 = vadd.f32 %v6131, %v6132
  %v6134 = vsel %vm916, %v6097, 0.0
  %v6135 = vadd.f32 %v6133, %v6134
  %v6136 = vsel %vm916, %v6098, 0.0
  %v6137 = vadd.f32 %v6135, %v6136
  %v6138 = vsel %vm916, %v6099, 0.0
  %v6139 = vadd.f32 %v6137, %v6138
  %v6140 = vsel %vm916, %v6100, 0.0
  %v6141 = vadd.f32 %v6139, %v6140
  %v6142 = vsel %vm916, %v6101, 0.0
  %v6143 = vadd.f32 %v6141, %v6142
  %v6144 = vsel %vm916, %v6102, 0.0
  %v6145 = vadd.f32 %v6143, %v6144
  %v6146 = vsel %vm916, %v6103, 0.0
  %v6147 = vadd.f32 %v6145, %v6146
  %v6148 = vsel %vm916, %v6104, 0.0
  %v6149 = vadd.f32 %v6147, %v6148
  %v6150 = vsel %vm916, %v6105, 0.0
  %v6151 = vadd.f32 %v6149, %v6150
  %v6152 = vsel %vm916, %v6106, 0.0
  %v6153 = vadd.f32 %v6151, %v6152
  %v6154 = vsel %vm916, %v6107, 0.0
  %v6155 = vadd.f32 %v6153, %v6154
  %v6156 = vsel %vm916, %v6108, 0.0
  %v6157 = vadd.f32 %v6155, %v6156
  %v6158 = vsel %vm916, %v6109, 0.0
  %v6159 = vadd.f32 %v6157, %v6158
  %v6160 = vsel %vm916, %v6110, 0.0
  %v6161 = vadd.f32 %v6159, %v6160
  %v6162 = vsel %vm916, %v6111, 0.0
  %v6163 = vadd.f32 %v6161, %v6162
  %v6164 = vsel %vm916, %v6112, 0.0
  %v6165 = vadd.f32 %v6163, %v6164
  %v6166 = vsel %vm916, %v6113, 0.0
  %v6167 = vadd.f32 %v6165, %v6166
  %v6168 = vsel %vm916, %v6114, 0.0
  %v6169 = vadd.f32 %v6167, %v6168
  %v6170 = vsel %vm916, %v6115, 0.0
  %v6171 = vadd.f32 %v6169, %v6170
  %v6172 = vsel %vm916, %v6116, 0.0
  %v6173 = vadd.f32 %v6171, %v6172
  %v6174 = vsel %vm916, %v6117, 0.0
  %v6175 = vadd.f32 %v6173, %v6174
  %v6176 = vsel %vm916, %v6118, 0.0
  %v6177 = vadd.f32 %v6175, %v6176
  %v6178 = vsel %vm916, %v6119, 0.0
  %v6179 = vadd.f32 %v6177, %v6178
  %v6180 = vsel %vm916, %v6120, 0.0
  %v6181 = vadd.f32 %v6179, %v6180
  %v6182 = vsel %vm916, %v6121, 0.0
  %v6183 = vadd.f32 %v6181, %v6182
  %v6184 = vsel %vm916, %v6122, 0.0
  %v6185 = vadd.f32 %v6183, %v6184
  %v6186 = vrot.slane %v6185, 4
  %v6187 = vadd.f32 %v6185, %v6186
  %v6188 = vrot.slane %v6187, 2
  %v6189 = vadd.f32 %v6187, %v6188
  %v6190 = vrot.slane %v6189, 1
  %v6191 = vadd.f32 %v6189, %v6190
  %v6192 = vrsqrt.pop %v6191
  %v6193 = vmul.f32 %v6191, %v6192
  %vm6194 = vcmp.eq.f32.partialorder %v6191, inf
  %v6195 = vsel %vm6194, %v6191, %v6193
  %vm6196 = vcmp.eq.f32.partialorder %v6191, 0.0
  %v6197 = vand.u32 %v6191, 2147483648
  %v6198 = vsel %vm6196, %v6197, %v6195
  %v6199 = vadd.f32 %v6198, 1e-10
  %v6200 = vrcp.pop %v6199
  %v6201 = vmul.f32 %v6059, %v6200
  %v6202 = vmul.f32 %v6060, %v6200
  %v6203 = vmul.f32 %v6061, %v6200
  %v6204 = vmul.f32 %v6062, %v6200
  %v6205 = vmul.f32 %v6063, %v6200
  %v6206 = vmul.f32 %v6064, %v6200
  %v6207 = vmul.f32 %v6065, %v6200
  %v6208 = vmul.f32 %v6066, %v6200
  %v6209 = vmul.f32 %v6067, %v6200
  %v6210 = vmul.f32 %v6068, %v6200
  %v6211 = vmul.f32 %v6069, %v6200
  %v6212 = vmul.f32 %v6070, %v6200
  %v6213 = vmul.f32 %v6071, %v6200
  %v6214 = vmul.f32 %v6072, %v6200
  %v6215 = vmul.f32 %v6073, %v6200
  %v6216 = vmul.f32 %v6074, %v6200
  %v6217 = vmul.f32 %v6075, %v6200
  %v6218 = vmul.f32 %v6076, %v6200
  %v6219 = vmul.f32 %v6077, %v6200
  %v6220 = vmul.f32 %v6078, %v6200
  %v6221 = vmul.f32 %v6079, %v6200
  %v6222 = vmul.f32 %v6080, %v6200
  %v6223 = vmul.f32 %v6081, %v6200
  %v6224 = vmul.f32 %v6082, %v6200
  %v6225 = vmul.f32 %v6083, %v6200
  %v6226 = vmul.f32 %v6084, %v6200
  %v6227 = vmul.f32 %v6085, %v6200
  %v6228 = vmul.f32 %v6086, %v6200
  %v6229 = vmul.f32 %v6087, %v6200
  %v6230 = vmul.f32 %v6088, %v6200
  %v6231 = vmul.f32 %v6089, %v6200
  %v6232 = vmul.f32 %v6090, %v6200
  %v6234 = vsel %vm916, %v6201, 0
  %v6237 = vsel %vm916, %v6202, 0
  %v6240 = vsel %vm916, %v6203, 0
  %v6243 = vsel %vm916, %v6204, 0
  %v6246 = vsel %vm916, %v6205, 0
  %v6249 = vsel %vm916, %v6206, 0
  %v6252 = vsel %vm916, %v6207, 0
  %v6255 = vsel %vm916, %v6208, 0
  %v6258 = vsel %vm916, %v6209, 0
  %v6261 = vsel %vm916, %v6210, 0
  %v6264 = vsel %vm916, %v6211, 0
  %v6267 = vsel %vm916, %v6212, 0
  %v6270 = vsel %vm916, %v6213, 0
  %v6273 = vsel %vm916, %v6214, 0
  %v6276 = vsel %vm916, %v6215, 0
  %v6279 = vsel %vm916, %v6216, 0
  %v6282 = vsel %vm916, %v6217, 0
  %v6285 = vsel %vm916, %v6218, 0
  %v6288 = vsel %vm916, %v6219, 0
  %v6291 = vsel %vm916, %v6220, 0
  %v6294 = vsel %vm916, %v6221, 0
  %v6297 = vsel %vm916, %v6222, 0
  %v6300 = vsel %vm916, %v6223, 0
  %v6303 = vsel %vm916, %v6224, 0
  %v6306 = vsel %vm916, %v6225, 0
  %v6309 = vsel %vm916, %v6226, 0
  %v6312 = vsel %vm916, %v6227, 0
  %v6315 = vsel %vm916, %v6228, 0
  %v6318 = vsel %vm916, %v6229, 0
  %v6321 = vsel %vm916, %v6230, 0
  %v6324 = vsel %vm916, %v6231, 0
  %v6327 = vsel %vm916, %v6232, 0
  %vm6329 = vcmask 1041408
  %v6331 = vsel %vm6329, %v5574, 0
  %6333 = vmatprep.subr.mxu0 0.0
  %6334 = vmatpush1.msra.mxu0 %v6331
  %6335 = vmatprep.subr.mxu0 0.0
  %6336 = vmatpush1.msra.mxu0 0.0
  %6337 = vmatprep.subr.mxu0 0.0
  %6338 = vmatpush1.msra.mxu0 0.0
  %6339 = vmatprep.subr.mxu0 0.0
  %6340 = vmatpush1.msra.mxu0 0.0
  %6341 = vmatprep.subr.mxu0 0.0
  %6342 = vmatpush1.msra.mxu0 0.0
  %6343 = vmatprep.subr.mxu0 0.0
  %6344 = vmatpush1.msra.mxu0 0.0
  %6345 = vmatprep.subr.mxu0 0.0
  %6346 = vmatpush1.msra.mxu0 0.0
  %6347 = vmatprep.subr.mxu0 0.0
  %6348 = vmatpush1.msra.mxu0 0.0
  %6349 = vmatprep.subr.mxu0 0.0
  %6350 = vmatpush1.msra.mxu0 0.0
  %6351 = vmatprep.subr.mxu0 0.0
  %6352 = vmatpush1.msra.mxu0 0.0
  %6353 = vmatprep.subr.mxu0 0.0
  %6354 = vmatpush1.msra.mxu0 0.0
  %6355 = vmatprep.subr.mxu0 0.0
  %6356 = vmatpush1.msra.mxu0 0.0
  %6357 = vmatprep.subr.mxu0 0.0
  %6358 = vmatpush1.msra.mxu0 0.0
  %6359 = vmatprep.subr.mxu0 0.0
  %6360 = vmatpush1.msra.mxu0 0.0
  %6361 = vmatprep.subr.mxu0 0.0
  %6362 = vmatpush1.msra.mxu0 0.0
  %6363 = vmatprep.subr.mxu0 0.0
  %6364 = vmatpush1.msra.mxu0 0.0
  %6365 = vmatprep.subr.mxu0 0.0
  %6366 = vmatpush1.msra.mxu0 0.0
  %6367 = vmatprep.subr.mxu0 0.0
  %6368 = vmatpush1.msra.mxu0 0.0
  %6369 = vmatprep.subr.mxu0 0.0
  %6370 = vmatpush1.msra.mxu0 0.0
  %6371 = vmatprep.subr.mxu0 0.0
  %6372 = vmatpush1.msra.mxu0 0.0
  %6373 = vmatprep.subr.mxu0 0.0
  %6374 = vmatpush1.msra.mxu0 0.0
  %6375 = vmatprep.subr.mxu0 0.0
  %6376 = vmatpush1.msra.mxu0 0.0
  %6377 = vmatprep.subr.mxu0 0.0
  %6378 = vmatpush1.msra.mxu0 0.0
  %6379 = vmatprep.subr.mxu0 0.0
  %6380 = vmatpush1.msra.mxu0 0.0
  %6381 = vmatprep.subr.mxu0 0.0
  %6382 = vmatpush1.msra.mxu0 0.0
  %6383 = vmatprep.subr.mxu0 0.0
  %6384 = vmatpush1.msra.mxu0 0.0
  %6385 = vmatprep.subr.mxu0 0.0
  %6386 = vmatpush1.msra.mxu0 0.0
  %6387 = vmatprep.subr.mxu0 0.0
  %6388 = vmatpush1.msra.mxu0 0.0
  %6389 = vmatprep.subr.mxu0 0.0
  %6390 = vmatpush1.msra.mxu0 0.0
  %6391 = vmatprep.subr.mxu0 0.0
  %6392 = vmatpush1.msra.mxu0 0.0
  %6393 = vmatprep.subr.mxu0 0.0
  %6394 = vmatpush1.msra.mxu0 0.0
  %6395 = vmatprep.subr.mxu0 0.0
  %6396 = vmatpush1.msra.mxu0 0.0
  %6397 = vmatprep.mubr.f32.mxu0 0.0
  %6398 = vmatmul.mubr.f32.gmra.mrb[0].mxu0 %v6234
  %v6399 = vpop.f32.mrb[0].mxu0
  %v6400 = vadd.f32 0.0, %v6399
  %v6401 = vpop.f32.mrb[0].mxu0
  %6402 = vmatprep.mubr.f32.mxu0 0.0
  %6403 = vmatmul.mubr.f32.gmra.mrb[0].mxu0 %v6237
  %v6404 = vpop.f32.mrb[0].mxu0
  %v6405 = vadd.f32 0.0, %v6404
  %v6406 = vpop.f32.mrb[0].mxu0
  %6407 = vmatprep.mubr.f32.mxu0 0.0
  %6408 = vmatmul.mubr.f32.gmra.mrb[0].mxu0 %v6240
  %v6409 = vpop.f32.mrb[0].mxu0
  %v6410 = vadd.f32 0.0, %v6409
  %v6411 = vpop.f32.mrb[0].mxu0
  %6412 = vmatprep.mubr.f32.mxu0 0.0
  %6413 = vmatmul.mubr.f32.gmra.mrb[0].mxu0 %v6243
  %v6414 = vpop.f32.mrb[0].mxu0
  %v6415 = vadd.f32 0.0, %v6414
  %v6416 = vpop.f32.mrb[0].mxu0
  %6417 = vmatprep.mubr.f32.mxu0 0.0
  %6418 = vmatmul.mubr.f32.gmra.mrb[0].mxu0 %v6246
  %v6419 = vpop.f32.mrb[0].mxu0
  %v6420 = vadd.f32 0.0, %v6419
  %v6421 = vpop.f32.mrb[0].mxu0
  %6422 = vmatprep.mubr.f32.mxu0 0.0
  %6423 = vmatmul.mubr.f32.gmra.mrb[0].mxu0 %v6249
  %v6424 = vpop.f32.mrb[0].mxu0
  %v6425 = vadd.f32 0.0, %v6424
  %v6426 = vpop.f32.mrb[0].mxu0
  %6427 = vmatprep.mubr.f32.mxu0 0.0
  %6428 = vmatmul.mubr.f32.gmra.mrb[0].mxu0 %v6252
  %v6429 = vpop.f32.mrb[0].mxu0
  %v6430 = vadd.f32 0.0, %v6429
  %v6431 = vpop.f32.mrb[0].mxu0
  %6432 = vmatprep.mubr.f32.mxu0 0.0
  %6433 = vmatmul.mubr.f32.gmra.mrb[0].mxu0 %v6255
  %v6434 = vpop.f32.mrb[0].mxu0
  %v6435 = vadd.f32 0.0, %v6434
  %v6436 = vpop.f32.mrb[0].mxu0
  %6437 = vmatprep.mubr.f32.mxu0 0.0
  %6438 = vmatmul.mubr.f32.gmra.mrb[0].mxu0 %v6258
  %v6439 = vpop.f32.mrb[0].mxu0
  %v6440 = vadd.f32 0.0, %v6439
  %v6441 = vpop.f32.mrb[0].mxu0
  %6442 = vmatprep.mubr.f32.mxu0 0.0
  %6443 = vmatmul.mubr.f32.gmra.mrb[0].mxu0 %v6261
  %v6444 = vpop.f32.mrb[0].mxu0
  %v6445 = vadd.f32 0.0, %v6444
  %v6446 = vpop.f32.mrb[0].mxu0
  %6447 = vmatprep.mubr.f32.mxu0 0.0
  %6448 = vmatmul.mubr.f32.gmra.mrb[0].mxu0 %v6264
  %v6449 = vpop.f32.mrb[0].mxu0
  %v6450 = vadd.f32 0.0, %v6449
  %v6451 = vpop.f32.mrb[0].mxu0
  %6452 = vmatprep.mubr.f32.mxu0 0.0
  %6453 = vmatmul.mubr.f32.gmra.mrb[0].mxu0 %v6267
  %v6454 = vpop.f32.mrb[0].mxu0
  %v6455 = vadd.f32 0.0, %v6454
  %v6456 = vpop.f32.mrb[0].mxu0
  %6457 = vmatprep.mubr.f32.mxu0 0.0
  %6458 = vmatmul.mubr.f32.gmra.mrb[0].mxu0 %v6270
  %v6459 = vpop.f32.mrb[0].mxu0
  %v6460 = vadd.f32 0.0, %v6459
  %v6461 = vpop.f32.mrb[0].mxu0
  %6462 = vmatprep.mubr.f32.mxu0 0.0
  %6463 = vmatmul.mubr.f32.gmra.mrb[0].mxu0 %v6273
  %v6464 = vpop.f32.mrb[0].mxu0
  %v6465 = vadd.f32 0.0, %v6464
  %v6466 = vpop.f32.mrb[0].mxu0
  %6467 = vmatprep.mubr.f32.mxu0 0.0
  %6468 = vmatmul.mubr.f32.gmra.mrb[0].mxu0 %v6276
  %v6469 = vpop.f32.mrb[0].mxu0
  %v6470 = vadd.f32 0.0, %v6469
  %v6471 = vpop.f32.mrb[0].mxu0
  %6472 = vmatprep.mubr.f32.mxu0 0.0
  %6473 = vmatmul.mubr.f32.gmra.mrb[0].mxu0 %v6279
  %v6474 = vpop.f32.mrb[0].mxu0
  %v6475 = vadd.f32 0.0, %v6474
  %v6476 = vpop.f32.mrb[0].mxu0
  %6477 = vmatprep.mubr.f32.mxu0 0.0
  %6478 = vmatmul.mubr.f32.gmra.mrb[0].mxu0 %v6282
  %v6479 = vpop.f32.mrb[0].mxu0
  %v6480 = vadd.f32 0.0, %v6479
  %v6481 = vpop.f32.mrb[0].mxu0
  %6482 = vmatprep.mubr.f32.mxu0 0.0
  %6483 = vmatmul.mubr.f32.gmra.mrb[0].mxu0 %v6285
  %v6484 = vpop.f32.mrb[0].mxu0
  %v6485 = vadd.f32 0.0, %v6484
  %v6486 = vpop.f32.mrb[0].mxu0
  %6487 = vmatprep.mubr.f32.mxu0 0.0
  %6488 = vmatmul.mubr.f32.gmra.mrb[0].mxu0 %v6288
  %v6489 = vpop.f32.mrb[0].mxu0
  %v6490 = vadd.f32 0.0, %v6489
  %v6491 = vpop.f32.mrb[0].mxu0
  %6492 = vmatprep.mubr.f32.mxu0 0.0
  %6493 = vmatmul.mubr.f32.gmra.mrb[0].mxu0 %v6291
  %v6494 = vpop.f32.mrb[0].mxu0
  %v6495 = vadd.f32 0.0, %v6494
  %v6496 = vpop.f32.mrb[0].mxu0
  %6497 = vmatprep.mubr.f32.mxu0 0.0
  %6498 = vmatmul.mubr.f32.gmra.mrb[0].mxu0 %v6294
  %v6499 = vpop.f32.mrb[0].mxu0
  %v6500 = vadd.f32 0.0, %v6499
  %v6501 = vpop.f32.mrb[0].mxu0
  %6502 = vmatprep.mubr.f32.mxu0 0.0
  %6503 = vmatmul.mubr.f32.gmra.mrb[0].mxu0 %v6297
  %v6504 = vpop.f32.mrb[0].mxu0
  %v6505 = vadd.f32 0.0, %v6504
  %v6506 = vpop.f32.mrb[0].mxu0
  %6507 = vmatprep.mubr.f32.mxu0 0.0
  %6508 = vmatmul.mubr.f32.gmra.mrb[0].mxu0 %v6300
  %v6509 = vpop.f32.mrb[0].mxu0
  %v6510 = vadd.f32 0.0, %v6509
  %v6511 = vpop.f32.mrb[0].mxu0
  %6512 = vmatprep.mubr.f32.mxu0 0.0
  %6513 = vmatmul.mubr.f32.gmra.mrb[0].mxu0 %v6303
  %v6514 = vpop.f32.mrb[0].mxu0
  %v6515 = vadd.f32 0.0, %v6514
  %v6516 = vpop.f32.mrb[0].mxu0
  %6517 = vmatprep.mubr.f32.mxu0 0.0
  %6518 = vmatmul.mubr.f32.gmra.mrb[0].mxu0 %v6306
  %v6519 = vpop.f32.mrb[0].mxu0
  %v6520 = vadd.f32 0.0, %v6519
  %v6521 = vpop.f32.mrb[0].mxu0
  %6522 = vmatprep.mubr.f32.mxu0 0.0
  %6523 = vmatmul.mubr.f32.gmra.mrb[0].mxu0 %v6309
  %v6524 = vpop.f32.mrb[0].mxu0
  %v6525 = vadd.f32 0.0, %v6524
  %v6526 = vpop.f32.mrb[0].mxu0
  %6527 = vmatprep.mubr.f32.mxu0 0.0
  %6528 = vmatmul.mubr.f32.gmra.mrb[0].mxu0 %v6312
  %v6529 = vpop.f32.mrb[0].mxu0
  %v6530 = vadd.f32 0.0, %v6529
  %v6531 = vpop.f32.mrb[0].mxu0
  %6532 = vmatprep.mubr.f32.mxu0 0.0
  %6533 = vmatmul.mubr.f32.gmra.mrb[0].mxu0 %v6315
  %v6534 = vpop.f32.mrb[0].mxu0
  %v6535 = vadd.f32 0.0, %v6534
  %v6536 = vpop.f32.mrb[0].mxu0
  %6537 = vmatprep.mubr.f32.mxu0 0.0
  %6538 = vmatmul.mubr.f32.gmra.mrb[0].mxu0 %v6318
  %v6539 = vpop.f32.mrb[0].mxu0
  %v6540 = vadd.f32 0.0, %v6539
  %v6541 = vpop.f32.mrb[0].mxu0
  %6542 = vmatprep.mubr.f32.mxu0 0.0
  %6543 = vmatmul.mubr.f32.gmra.mrb[0].mxu0 %v6321
  %v6544 = vpop.f32.mrb[0].mxu0
  %v6545 = vadd.f32 0.0, %v6544
  %v6546 = vpop.f32.mrb[0].mxu0
  %6547 = vmatprep.mubr.f32.mxu0 0.0
  %6548 = vmatmul.mubr.f32.gmra.mrb[0].mxu0 %v6324
  %v6549 = vpop.f32.mrb[0].mxu0
  %v6550 = vadd.f32 0.0, %v6549
  %v6551 = vpop.f32.mrb[0].mxu0
  %6552 = vmatprep.mubr.f32.mxu0 0.0
  %6553 = vmatmul.mubr.f32.gmra.mrb[0].mxu0 %v6327
  %v6554 = vpop.f32.mrb[0].mxu0
  %v6555 = vadd.f32 0.0, %v6554
  %v6556 = vpop.f32.mrb[0].mxu0
  %6557 = vdwg.mxu0
  %6559 = vset.pattern.permute.xlu0 0
  %6560 = vperm.xlu0 %6559, %v5542
  %v6561 = vpop.permute.xlu0 %6560
  %6564 = vset.pattern.permute.xlu0 0
  %6565 = vperm.xlu0 %6564, %v5543
  %v6566 = vpop.permute.xlu0 %6565
  %6569 = vset.pattern.permute.xlu0 0
  %6570 = vperm.xlu0 %6569, %v5544
  %v6571 = vpop.permute.xlu0 %6570
  %6574 = vset.pattern.permute.xlu0 0
  %6575 = vperm.xlu0 %6574, %v5545
  %v6576 = vpop.permute.xlu0 %6575
  %6579 = vset.pattern.permute.xlu0 0
  %6580 = vperm.xlu0 %6579, %v5546
  %v6581 = vpop.permute.xlu0 %6580
  %6584 = vset.pattern.permute.xlu0 0
  %6585 = vperm.xlu0 %6584, %v5547
  %v6586 = vpop.permute.xlu0 %6585
  %6589 = vset.pattern.permute.xlu0 0
  %6590 = vperm.xlu0 %6589, %v5548
  %v6591 = vpop.permute.xlu0 %6590
  %6594 = vset.pattern.permute.xlu0 0
  %6595 = vperm.xlu0 %6594, %v5549
  %v6596 = vpop.permute.xlu0 %6595
  %6599 = vset.pattern.permute.xlu0 0
  %6600 = vperm.xlu0 %6599, %v5550
  %v6601 = vpop.permute.xlu0 %6600
  %6604 = vset.pattern.permute.xlu0 0
  %6605 = vperm.xlu0 %6604, %v5551
  %v6606 = vpop.permute.xlu0 %6605
  %6609 = vset.pattern.permute.xlu0 0
  %6610 = vperm.xlu0 %6609, %v5552
  %v6611 = vpop.permute.xlu0 %6610
  %6614 = vset.pattern.permute.xlu0 0
  %6615 = vperm.xlu0 %6614, %v5553
  %v6616 = vpop.permute.xlu0 %6615
  %6619 = vset.pattern.permute.xlu0 0
  %6620 = vperm.xlu0 %6619, %v5554
  %v6621 = vpop.permute.xlu0 %6620
  %6624 = vset.pattern.permute.xlu0 0
  %6625 = vperm.xlu0 %6624, %v5555
  %v6626 = vpop.permute.xlu0 %6625
  %6629 = vset.pattern.permute.xlu0 0
  %6630 = vperm.xlu0 %6629, %v5556
  %v6631 = vpop.permute.xlu0 %6630
  %6634 = vset.pattern.permute.xlu0 0
  %6635 = vperm.xlu0 %6634, %v5557
  %v6636 = vpop.permute.xlu0 %6635
  %6639 = vset.pattern.permute.xlu0 0
  %6640 = vperm.xlu0 %6639, %v5558
  %v6641 = vpop.permute.xlu0 %6640
  %6644 = vset.pattern.permute.xlu0 0
  %6645 = vperm.xlu0 %6644, %v5559
  %v6646 = vpop.permute.xlu0 %6645
  %6649 = vset.pattern.permute.xlu0 0
  %6650 = vperm.xlu0 %6649, %v5560
  %v6651 = vpop.permute.xlu0 %6650
  %6654 = vset.pattern.permute.xlu0 0
  %6655 = vperm.xlu0 %6654, %v5561
  %v6656 = vpop.permute.xlu0 %6655
  %6659 = vset.pattern.permute.xlu0 0
  %6660 = vperm.xlu0 %6659, %v5562
  %v6661 = vpop.permute.xlu0 %6660
  %6664 = vset.pattern.permute.xlu0 0
  %6665 = vperm.xlu0 %6664, %v5563
  %v6666 = vpop.permute.xlu0 %6665
  %6669 = vset.pattern.permute.xlu0 0
  %6670 = vperm.xlu0 %6669, %v5564
  %v6671 = vpop.permute.xlu0 %6670
  %6674 = vset.pattern.permute.xlu0 0
  %6675 = vperm.xlu0 %6674, %v5565
  %v6676 = vpop.permute.xlu0 %6675
  %6679 = vset.pattern.permute.xlu0 0
  %6680 = vperm.xlu0 %6679, %v5566
  %v6681 = vpop.permute.xlu0 %6680
  %6684 = vset.pattern.permute.xlu0 0
  %6685 = vperm.xlu0 %6684, %v5567
  %v6686 = vpop.permute.xlu0 %6685
  %6689 = vset.pattern.permute.xlu0 0
  %6690 = vperm.xlu0 %6689, %v5568
  %v6691 = vpop.permute.xlu0 %6690
  %6694 = vset.pattern.permute.xlu0 0
  %6695 = vperm.xlu0 %6694, %v5569
  %v6696 = vpop.permute.xlu0 %6695
  %6699 = vset.pattern.permute.xlu0 0
  %6700 = vperm.xlu0 %6699, %v5570
  %v6701 = vpop.permute.xlu0 %6700
  %6704 = vset.pattern.permute.xlu0 0
  %6705 = vperm.xlu0 %6704, %v5571
  %v6706 = vpop.permute.xlu0 %6705
  %6709 = vset.pattern.permute.xlu0 0
  %6710 = vperm.xlu0 %6709, %v5572
  %v6711 = vpop.permute.xlu0 %6710
  %6714 = vset.pattern.permute.xlu0 0
  %6715 = vperm.xlu0 %6714, %v5573
  %v6716 = vpop.permute.xlu0 %6715
  %v6718 = vmul.f32 %v6400, %v6561
  %v6719 = vmul.f32 %v6405, %v6566
  %v6720 = vmul.f32 %v6410, %v6571
  %v6721 = vmul.f32 %v6415, %v6576
  %v6722 = vmul.f32 %v6420, %v6581
  %v6723 = vmul.f32 %v6425, %v6586
  %v6724 = vmul.f32 %v6430, %v6591
  %v6725 = vmul.f32 %v6435, %v6596
  %v6726 = vmul.f32 %v6440, %v6601
  %v6727 = vmul.f32 %v6445, %v6606
  %v6728 = vmul.f32 %v6450, %v6611
  %v6729 = vmul.f32 %v6455, %v6616
  %v6730 = vmul.f32 %v6460, %v6621
  %v6731 = vmul.f32 %v6465, %v6626
  %v6732 = vmul.f32 %v6470, %v6631
  %v6733 = vmul.f32 %v6475, %v6636
  %v6734 = vmul.f32 %v6480, %v6641
  %v6735 = vmul.f32 %v6485, %v6646
  %v6736 = vmul.f32 %v6490, %v6651
  %v6737 = vmul.f32 %v6495, %v6656
  %v6738 = vmul.f32 %v6500, %v6661
  %v6739 = vmul.f32 %v6505, %v6666
  %v6740 = vmul.f32 %v6510, %v6671
  %v6741 = vmul.f32 %v6515, %v6676
  %v6742 = vmul.f32 %v6520, %v6681
  %v6743 = vmul.f32 %v6525, %v6686
  %v6744 = vmul.f32 %v6530, %v6691
  %v6745 = vmul.f32 %v6535, %v6696
  %v6746 = vmul.f32 %v6540, %v6701
  %v6747 = vmul.f32 %v6545, %v6706
  %v6748 = vmul.f32 %v6550, %v6711
  %v6749 = vmul.f32 %v6555, %v6716
  %6750 = vst.msk [vmem:[%s25 + $0x380] sm:$0xff] %vm916, %v6718
  %6751 = vst.msk [vmem:[%s25 + $0x388] sm:$0xff] %vm916, %v6719
  %6752 = vst.msk [vmem:[%s25 + $0x390] sm:$0xff] %vm916, %v6720
  %6753 = vst.msk [vmem:[%s25 + $0x398] sm:$0xff] %vm916, %v6721
  %6754 = vst.msk [vmem:[%s25 + $0x3a0] sm:$0xff] %vm916, %v6722
  %6755 = vst.msk [vmem:[%s25 + $0x3a8] sm:$0xff] %vm916, %v6723
  %6756 = vst.msk [vmem:[%s25 + $0x3b0] sm:$0xff] %vm916, %v6724
  %6757 = vst.msk [vmem:[%s25 + $0x3b8] sm:$0xff] %vm916, %v6725
  %6758 = vst.msk [vmem:[%s25 + $0x3c0] sm:$0xff] %vm916, %v6726
  %6759 = vst.msk [vmem:[%s25 + $0x3c8] sm:$0xff] %vm916, %v6727
  %6760 = vst.msk [vmem:[%s25 + $0x3d0] sm:$0xff] %vm916, %v6728
  %6761 = vst.msk [vmem:[%s25 + $0x3d8] sm:$0xff] %vm916, %v6729
  %6762 = vst.msk [vmem:[%s25 + $0x3e0] sm:$0xff] %vm916, %v6730
  %6763 = vst.msk [vmem:[%s25 + $0x3e8] sm:$0xff] %vm916, %v6731
  %6764 = vst.msk [vmem:[%s25 + $0x3f0] sm:$0xff] %vm916, %v6732
  %6765 = vst.msk [vmem:[%s25 + $0x3f8] sm:$0xff] %vm916, %v6733
  %6766 = vst.msk [vmem:[%s25 + $0x400] sm:$0xff] %vm916, %v6734
  %6767 = vst.msk [vmem:[%s25 + $0x408] sm:$0xff] %vm916, %v6735
  %6768 = vst.msk [vmem:[%s25 + $0x410] sm:$0xff] %vm916, %v6736
  %6769 = vst.msk [vmem:[%s25 + $0x418] sm:$0xff] %vm916, %v6737
  %6770 = vst.msk [vmem:[%s25 + $0x420] sm:$0xff] %vm916, %v6738
  %6771 = vst.msk [vmem:[%s25 + $0x428] sm:$0xff] %vm916, %v6739
  %6772 = vst.msk [vmem:[%s25 + $0x430] sm:$0xff] %vm916, %v6740
  %6773 = vst.msk [vmem:[%s25 + $0x438] sm:$0xff] %vm916, %v6741
  %6774 = vst.msk [vmem:[%s25 + $0x440] sm:$0xff] %vm916, %v6742
  %6775 = vst.msk [vmem:[%s25 + $0x448] sm:$0xff] %vm916, %v6743
  %6776 = vst.msk [vmem:[%s25 + $0x450] sm:$0xff] %vm916, %v6744
  %6777 = vst.msk [vmem:[%s25 + $0x458] sm:$0xff] %vm916, %v6745
  %6778 = vst.msk [vmem:[%s25 + $0x460] sm:$0xff] %vm916, %v6746
  %6779 = vst.msk [vmem:[%s25 + $0x468] sm:$0xff] %vm916, %v6747
  %6780 = vst.msk [vmem:[%s25 + $0x470] sm:$0xff] %vm916, %v6748
  %6781 = vst.msk [vmem:[%s25 + $0x478] sm:$0xff] %vm916, %v6749
  // Predicated region
  $region102: #{tpu_custom_call.1} parent=0 // pred_check
    _
  $region103: #{tpu_custom_call.1} parent=0 // pred_check_branch
    %6783 = sbr.rel (0) target = $region105
  $region104: #{tpu_custom_call.1} parent=0 // pred_region
    _
  $region105: #{tpu_custom_call.1} parent=0 // pred_fallthru
    _
  // Predicated region
  $region106: #{tpu_custom_call.1} parent=0 // pred_check
    _
  $region107: #{tpu_custom_call.1} parent=0 // pred_check_branch
    %6785 = sbr.rel (0) target = $region109
  $region108: #{tpu_custom_call.1} parent=0 // pred_region
    _
  $region109: #{tpu_custom_call.1} parent=0 // pred_fallthru
    _

</llo_original>
